<compile_context>
chip_gen: v7x
topology: tpu7x:2x2x1
jax: 0.10.0
libtpu: 0.0.40
codegen_flags: <defaults>
</compile_context>

<pallas_src>
import functools

import jax
import jax.numpy as jnp
from jax.experimental import pallas as pl
from jax.experimental.pallas import tpu as pltpu


# ---------------------------------------------------------------------------
# Hardware-aware knobs
# ---------------------------------------------------------------------------
@functools.lru_cache(maxsize=None)
def _vmem_budget_bytes():
    """Per-generation VMEM budget: ~3/4 of physical capacity (96 MiB on
    v5e/v6e's 128 MiB, 48 MiB on v7x's 64 MiB).  Falls back to the
    conservative 48 MiB if the query is unavailable."""
    try:
        cap = pltpu.get_tpu_info().vmem_capacity_bytes
        return int(cap) * 3 // 4
    except Exception:
        return 48 * 1024 * 1024


def _round_up(v, m):
    return ((v + m - 1) // m) * m


def _pick_tm(M, target=None):
    """Row tile for the 1x1-conv matmuls: as large as the per-generation VMEM
    budget allows, but always >= 4 grid steps (when M allows) so the two v7x
    TensorCores each get >= 2 steps and the BlockSpec double-buffers actually
    overlap DMA with compute."""
    if target is None:
        target = 1024 if _vmem_budget_bytes() > 64 * 1024 * 1024 else 512
    tm = min(target, _round_up(M, 8))
    if M >= 4 * 8 and pl.cdiv(M, tm) < 4:
        tm = _round_up(pl.cdiv(M, 4), 8)
    return max(tm, 8)


def _compiler_params(sem):
    return pltpu.CompilerParams(dimension_semantics=sem,
                                vmem_limit_bytes=_vmem_budget_bytes())


# ---------------------------------------------------------------------------
# 1x1-conv (matmul) kernels
# ---------------------------------------------------------------------------
def _matmul_bias_kernel(x_ref, w_ref, b_ref, o_ref, *, relu):
    y = jnp.dot(x_ref[...], w_ref[...], preferred_element_type=jnp.float32)
    y = y + b_ref[...]
    if relu:
        y = jnp.maximum(y, 0.0)
    o_ref[...] = y.astype(o_ref.dtype)


def _matmul_bias_id_res_kernel(x_ref, w_ref, b_ref, r_ref, o_ref):
    y = jnp.dot(x_ref[...], w_ref[...], preferred_element_type=jnp.float32)
    y = y + b_ref[...] + r_ref[...].astype(jnp.float32)
    o_ref[...] = jnp.maximum(y, 0.0).astype(o_ref.dtype)


def _matmul_bias_proj_res_kernel(x_ref, w_ref, b_ref, xs_ref, ws_ref, bs_ref, o_ref):
    y = jnp.dot(x_ref[...], w_ref[...], preferred_element_type=jnp.float32) + b_ref[...]
    sc = jnp.dot(xs_ref[...], ws_ref[...], preferred_element_type=jnp.float32) + bs_ref[...]
    o_ref[...] = jnp.maximum(y + sc, 0.0).astype(o_ref.dtype)


# ---------------------------------------------------------------------------
# 3x3-conv kernels
# ---------------------------------------------------------------------------
def _conv3x3_packed_kernel(x_ref, w_ref, b_ref, o_ref, packed_ref, acc_ref, *, d):
    """Stride-1 3x3 conv (any dilation d).

    The three kw taps are channel-concatenated into a bf16 VMEM scratch
        packed[i, w, kw*Cin + c] == zero-padded-x[i, w + kw*d, c]
    so every matmul sees K = 3*Cin (better MXU fill for narrow bottleneck
    widths) and the 3x3 collapses to 3 MXU pushes per image instead of 9,
    with no per-tap casts.  The f32 accumulator lives in VMEM, not vregs.
    """
    _, H, W, Cin = x_ref.shape
    x = x_ref[0]                                            # (H, W, Cin) bf16

    # Zero only the halo strips, not the whole buffer (the interior is fully
    # overwritten below).  This is done every step rather than gated with
    # @pl.when(program_id==0): with dimension_semantics=("parallel",) the grid
    # is sharded across TensorCores and each core has its own uninitialised
    # scratch, so a first-step-only gate would be wrong on v7x.
    z_row = jnp.zeros((d, W, 3 * Cin), packed_ref.dtype)
    z_col = jnp.zeros((H, d, Cin), packed_ref.dtype)
    packed_ref[0:d, :, :] = z_row                           # top halo rows
    packed_ref[d + H:d + H + d, :, :] = z_row               # bottom halo rows
    packed_ref[d:d + H, 0:d, 0:Cin] = z_col                 # kw=0 left edge
    packed_ref[d:d + H, W - d:W, 2 * Cin:3 * Cin] = z_col   # kw=2 right edge

    # Three shifted copies of x build the kw-packed padded image (bf16 -> bf16).
    packed_ref[d:d + H, d:W, 0:Cin] = x[:, 0:W - d, :]
    packed_ref[d:d + H, 0:W, Cin:2 * Cin] = x
    packed_ref[d:d + H, 0:W - d, 2 * Cin:3 * Cin] = x[:, d:W, :]

    for kh in range(3):
        lhs = packed_ref[kh * d:kh * d + H, :, :].reshape(H * W, 3 * Cin)
        contrib = jnp.dot(lhs, w_ref[kh], preferred_element_type=jnp.float32)
        if kh == 0:
            acc_ref[...] = contrib        # first tap initialises (no extra zero store)
        else:
            acc_ref[...] += contrib
    y = jnp.maximum(acc_ref[...] + b_ref[...], 0.0)
    o_ref[...] = y[None].astype(o_ref.dtype)


def _conv3x3_tap_kernel(x_ref, w_ref, b_ref, o_ref, pad_ref, acc_ref,
                        *, d, s, Hout, Wout):
    """General (strided) 3x3 conv, used only for the rare stride>1 blocks.

    The padded image lives in an f32 VMEM scratch (f32 keeps the per-tap
    strided sublane reads on the plain word-aligned path); 9 strided windows
    accumulate into a VMEM f32 accumulator.  Only the halo strips are zeroed.
    # TODO(synk): pre-split the padded image into column phases for stride 2
    #             so the 9 per-tap strided sublane reads become 2 copies.
    """
    _, H, W, Cin = x_ref.shape
    z_row = jnp.zeros((d, W + 2 * d, Cin), pad_ref.dtype)
    z_col = jnp.zeros((H, d, Cin), pad_ref.dtype)
    pad_ref[0:d, :, :] = z_row
    pad_ref[d + H:d + H + d, :, :] = z_row
    pad_ref[d:d + H, 0:d, :] = z_col
    pad_ref[d:d + H, d + W:d + W + d, :] = z_col
    pad_ref[d:d + H, d:d + W, :] = x_ref[0].astype(pad_ref.dtype)

    first = True
    for kh in range(3):
        for kw in range(3):
            win = pad_ref[pl.ds(kh * d, Hout, stride=s),
                          pl.ds(kw * d, Wout, stride=s), :]
            lhs = win.reshape(Hout * Wout, Cin).astype(jnp.bfloat16)
            contrib = jnp.dot(lhs, w_ref[kh, kw], preferred_element_type=jnp.float32)
            if first:
                acc_ref[...] = contrib
                first = False
            else:
                acc_ref[...] += contrib
    y = jnp.maximum(acc_ref[...] + b_ref[...], 0.0)
    o_ref[...] = y[None].astype(o_ref.dtype)


# ---------------------------------------------------------------------------
# Wrappers
# ---------------------------------------------------------------------------
def fused_matmul(x, w, bias, *, relu=True, residual=None, shortcut=None,
                 out_dtype=jnp.bfloat16, tm_target=None):
    """y = x @ w + bias, optionally + residual or + (xs @ ws + bs), optional ReLU.

    K and N are never tiled (full-extent blocks), so the only partial block is
    the trailing M tile, whose out-of-range rows Pallas masks on store; do not
    tile N without revisiting that assumption.
    # TODO(synk): outputs narrower than 128 lanes (bottleneck widths < 128)
    #             still lower to masked stores; fold rows into lanes in the
    #             out_spec if a bundle dump shows vst.msk dominating.
    """
    M, K = x.shape
    N = w.shape[1]
    tm = _pick_tm(M, tm_target)
    grid = (pl.cdiv(M, tm),)
    bias2 = bias.reshape(1, N).astype(jnp.float32)

    in_specs = [
        pl.BlockSpec((tm, K), lambda i: (i, 0)),
        pl.BlockSpec((K, N), lambda i: (0, 0)),
        pl.BlockSpec((1, N), lambda i: (0, 0)),
    ]
    args = [x, w, bias2]

    if shortcut is not None:
        xs, ws, bs = shortcut
        Ks = xs.shape[1]
        in_specs += [
            pl.BlockSpec((tm, Ks), lambda i: (i, 0)),
            pl.BlockSpec((Ks, N), lambda i: (0, 0)),
            pl.BlockSpec((1, N), lambda i: (0, 0)),
        ]
        args += [xs, ws, bs.reshape(1, N).astype(jnp.float32)]
        kernel = _matmul_bias_proj_res_kernel
    elif residual is not None:
        in_specs.append(pl.BlockSpec((tm, N), lambda i: (i, 0)))
        args.append(residual)
        kernel = _matmul_bias_id_res_kernel
    else:
        kernel = functools.partial(_matmul_bias_kernel, relu=relu)

    return pl.pallas_call(
        kernel,
        out_shape=jax.ShapeDtypeStruct((M, N), out_dtype),
        grid=grid,
        in_specs=in_specs,
        out_specs=pl.BlockSpec((tm, N), lambda i: (i, 0)),
        compiler_params=_compiler_params(("parallel",)),
    )(*args)


def conv3x3_bn_relu(x_nhwc, w_hwio, bias, *, stride=1, dilation=1,
                    out_dtype=jnp.bfloat16):
    """3x3 conv (pad=dilation, dil=dilation) + folded-BN bias + ReLU.

    One image per grid step (whole-image blocks).
    # TODO(synk): for very large spatial extents, tile H with a 2*dilation-row
    #             halo (manual DMA) so VMEM stays bounded on v7x and the grid
    #             has more steps than `batch` for megacore pipelining.
    """
    N, H, W, Cin = x_nhwc.shape
    Cout = w_hwio.shape[-1]
    d, s = dilation, stride
    assert H > d and W > d, "spatial extent must exceed the dilation"
    Hout = (H - 1) // s + 1
    Wout = (W - 1) // s + 1
    bias2 = bias.reshape(1, Cout).astype(jnp.float32)

    if s == 1:
        # kw taps folded into K: weight (3, 3*Cin, Cout); 3 matmuls per image.
        w_packed = w_hwio.reshape(3, 3 * Cin, Cout)
        kernel = functools.partial(_conv3x3_packed_kernel, d=d)
        in_specs = [
            pl.BlockSpec((1, H, W, Cin), lambda n: (n, 0, 0, 0)),
            pl.BlockSpec((3, 3 * Cin, Cout), lambda n: (0, 0, 0)),
            pl.BlockSpec((1, Cout), lambda n: (0, 0)),
        ]
        args = (x_nhwc, w_packed, bias2)
        scratch = [pltpu.VMEM((H + 2 * d, W, 3 * Cin), jnp.bfloat16),
                   pltpu.VMEM((H * W, Cout), jnp.float32)]
    else:
        kernel = functools.partial(_conv3x3_tap_kernel, d=d, s=s,
                                   Hout=Hout, Wout=Wout)
        in_specs = [
            pl.BlockSpec((1, H, W, Cin), lambda n: (n, 0, 0, 0)),
            pl.BlockSpec((3, 3, Cin, Cout), lambda n: (0, 0, 0, 0)),
            pl.BlockSpec((1, Cout), lambda n: (0, 0)),
        ]
        args = (x_nhwc, w_hwio, bias2)
        scratch = [pltpu.VMEM((H + 2 * d, W + 2 * d, Cin), jnp.float32),
                   pltpu.VMEM((Hout * Wout, Cout), jnp.float32)]

    out = pl.pallas_call(
        kernel,
        out_shape=jax.ShapeDtypeStruct((N, Hout * Wout, Cout), out_dtype),
        grid=(N,),
        in_specs=in_specs,
        out_specs=pl.BlockSpec((1, Hout * Wout, Cout), lambda n: (n, 0, 0)),
        scratch_shapes=scratch,
        compiler_params=_compiler_params(("parallel",)),
    )(*args)
    return out.reshape(N, Hout, Wout, Cout)


# ---------------------------------------------------------------------------
# Param prep (BN folding into weights) and the block itself
# ---------------------------------------------------------------------------
def fold_bn(gamma, beta, mean, var, eps=1e-5):
    scale = gamma / jnp.sqrt(var + eps)
    bias = beta - mean * scale
    return scale, bias


def _prep_1x1(w_oihw, bn):
    scale, bias = fold_bn(*bn)
    O, I = w_oihw.shape[0], w_oihw.shape[1]
    w = w_oihw.reshape(O, I).T * scale[None, :]           # (I, O), scale folded
    return w.astype(jnp.bfloat16), bias.astype(jnp.float32)


def _prep_3x3(w_oihw, bn):
    scale, bias = fold_bn(*bn)
    w = jnp.transpose(w_oihw, (2, 3, 1, 0)) * scale[None, None, None, :]  # (3,3,I,O)
    return w.astype(jnp.bfloat16), bias.astype(jnp.float32)


def bottleneck_block(x_nchw, p, *, stride=1, dilation=1, stride_in_1x1=False,
                     out_dtype=None):
    """Eval-mode BottleneckBlock forward.  `out_dtype=None` keeps the input
    dtype at the module boundary; pass jnp.bfloat16 when the consumer is
    another block (halves the final HBM write + NCHW transpose traffic)."""
    # TODO(synk): num_groups > 1 (grouped 3x3 conv) not implemented (module default is 1).
    N, Cin, H, W = x_nchw.shape
    Cb = p["w1"].shape[0]
    Cout = p["w3"].shape[0]
    if out_dtype is None:
        out_dtype = x_nchw.dtype

    # Single layout change + bf16 cast at the module boundary (NCHW -> NHWC).
    # TODO(synk): for stacked blocks keep activations NHWC/bf16 end-to-end and
    #             transpose only once at network entry/exit.
    x = jnp.transpose(x_nchw, (0, 2, 3, 1)).astype(jnp.bfloat16)

    s1, s3 = (stride, 1) if stride_in_1x1 else (1, stride)

    # conv1: 1x1 (stride s1) + BN + ReLU.
    # TODO(synk): fold the (rare) spatial subsample into the kernel index_map
    #             instead of an XLA strided slice (saves an HBM pass).
    w1, b1 = _prep_1x1(p["w1"], p["bn1"])
    x1 = x[:, ::s1, ::s1, :] if s1 > 1 else x
    N1, H1, W1, _ = x1.shape
    out1 = fused_matmul(x1.reshape(-1, Cin), w1, b1, relu=True,
                        out_dtype=jnp.bfloat16)
    out1 = out1.reshape(N1, H1, W1, Cb)

    # conv2: 3x3 (stride s3, dilation d, pad=d) + BN + ReLU — no HBM im2col.
    w2, b2 = _prep_3x3(p["w2"], p["bn2"])
    out2 = conv3x3_bn_relu(out1, w2, b2, stride=s3, dilation=dilation,
                           out_dtype=jnp.bfloat16)
    N2, H2, W2, _ = out2.shape

    # conv3: 1x1 + BN, fused with the shortcut, residual add and the final ReLU.
    w3, b3 = _prep_1x1(p["w3"], p["bn3"])
    xs = x[:, ::stride, ::stride, :] if stride > 1 else x
    if "ws" in p:
        ws, bs = _prep_1x1(p["ws"], p["bns"])
        out3 = fused_matmul(out2.reshape(-1, Cb), w3, b3, relu=True,
                            shortcut=(xs.reshape(-1, Cin), ws, bs),
                            out_dtype=out_dtype)
    else:
        assert Cin == Cout, "identity shortcut requires in_channels == out_channels"
        assert stride == 1, "identity shortcut is only valid with stride == 1"
        out3 = fused_matmul(out2.reshape(-1, Cb), w3, b3, relu=True,
                            residual=xs.reshape(-1, Cout),
                            out_dtype=out_dtype)
    out3 = out3.reshape(N2, H2, W2, Cout)
    return jnp.transpose(out3, (0, 3, 1, 2))  # back to NCHW


# ---------------------------------------------------------------------------
# Pure-JAX reference (BN in eval mode, matching the folded-BN semantics)
# ---------------------------------------------------------------------------
def ref_bottleneck(x, p, *, stride=1, dilation=1, stride_in_1x1=False):
    def conv(x, w, stride, padding, dil=1):
        return jax.lax.conv_general_dilated(
            x, w, window_strides=(stride, stride),
            padding=[(padding, padding)] * 2, rhs_dilation=(dil, dil),
            dimension_numbers=("NCHW", "OIHW", "NCHW"))

    def bn(x, g, b, m, v, eps=1e-5):
        r = lambda a: a[None, :, None, None]
        return (x - r(m)) / jnp.sqrt(r(v) + eps) * r(g) + r(b)

    s1, s3 = (stride, 1) if stride_in_1x1 else (1, stride)
    out = jax.nn.relu(bn(conv(x, p["w1"], s1, 0), *p["bn1"]))
    out = jax.nn.relu(bn(conv(out, p["w2"], s3, dilation, dilation), *p["bn2"]))
    out = bn(conv(out, p["w3"], 1, 0), *p["bn3"])
    sc = bn(conv(x, p["ws"], stride, 0), *p["bns"]) if "ws" in p else x
    return jax.nn.relu(out + sc)


# ---------------------------------------------------------------------------
if __name__ == "__main__":
    key = jax.random.PRNGKey(0)

    def bn_params(k, c):
        k1, k2, k3, k4 = jax.random.split(k, 4)
        gamma = 1.0 + 0.1 * jax.random.normal(k1, (c,), jnp.float32)
        beta = 0.1 * jax.random.normal(k2, (c,), jnp.float32)
        mean = 0.05 * jax.random.normal(k3, (c,), jnp.float32)
        var = 0.5 + jax.random.uniform(k4, (c,), jnp.float32)
        return (gamma, beta, mean, var)

    def make_params(k, in_c, out_c, bott_c, projection):
        ks = jax.random.split(k, 8)
        p = {
            "w1": 0.1 * jax.random.normal(ks[0], (bott_c, in_c, 1, 1), jnp.float32),
            "bn1": bn_params(ks[1], bott_c),
            "w2": 0.1 * jax.random.normal(ks[2], (bott_c, bott_c, 3, 3), jnp.float32),
            "bn2": bn_params(ks[3], bott_c),
            "w3": 0.1 * jax.random.normal(ks[4], (out_c, bott_c, 1, 1), jnp.float32),
            "bn3": bn_params(ks[5], out_c),
        }
        if projection:
            p["ws"] = 0.1 * jax.random.normal(ks[6], (out_c, in_c, 1, 1), jnp.float32)
            p["bns"] = bn_params(ks[7], out_c)
        return p

    batch = 2
    configs = [
        # projection shortcut, stride 1, dilation 1 (packed conv2 path)
        dict(in_c=16, out_c=32, bott_c=8, hw=16, stride=1, dilation=1),
        # projection shortcut, stride 2 (strided 9-tap conv2 path)
        dict(in_c=16, out_c=32, bott_c=8, hw=16, stride=2, dilation=1),
        # identity shortcut, dilation 2 (packed conv2 path with dilation)
        dict(in_c=32, out_c=32, bott_c=8, hw=16, stride=1, dilation=2),
    ]

    for i, cfg in enumerate(configs):
        kk = jax.random.fold_in(key, i)
        kp, kx = jax.random.split(kk)
        proj = cfg["in_c"] != cfg["out_c"]
        params = make_params(kp, cfg["in_c"], cfg["out_c"], cfg["bott_c"], proj)
        x = jax.random.normal(kx, (batch, cfg["in_c"], cfg["hw"], cfg["hw"]),
                              jnp.float32)

        fwd = jax.jit(functools.partial(bottleneck_block, stride=cfg["stride"],
                                        dilation=cfg["dilation"]))
        out = jax.block_until_ready(fwd(x, params))
        ref = jax.block_until_ready(
            ref_bottleneck(x, params, stride=cfg["stride"],
                           dilation=cfg["dilation"]))
        assert out.shape == ref.shape, (i, out.shape, ref.shape)
        err = jnp.max(jnp.abs(out - ref))
        # bf16 operands / f32 accumulation (and a bf16 identity residual) vs
        # the pure-f32 XLA reference.
        assert err < 5e-2, f"config {i}: mismatch vs reference: {err}"

    print("KERNEL_OK")
</pallas_src>

<mosaic_0001>
module attributes {stable_mosaic.version = 11 : i64} {
  func.func @_matmul_bias_kernel(%arg0: i32, %arg1: memref<128x16xbf16, #tpu.memory_space<vmem>>, %arg2: memref<16x8xbf16, #tpu.memory_space<vmem>>, %arg3: memref<1x8xf32, #tpu.memory_space<vmem>>, %arg4: memref<128x8xbf16, #tpu.memory_space<vmem>>) attributes {dimension_semantics = [#tpu.dimension_semantics<parallel>], iteration_bounds = array<i64: 4>, scalar_prefetch = 0 : i64, scratch_operands = 0 : i64, tpu.core_type = #tpu.core_type<tc>, window_params = [{transform_indices = @transform_0, window_bounds = array<i64: 128, 16>}, {pipeline_mode = #tpu.pipeline_mode<synchronous>, transform_indices = @transform_1, window_bounds = array<i64: 16, 8>}, {pipeline_mode = #tpu.pipeline_mode<synchronous>, transform_indices = @transform_2, window_bounds = array<i64: 1, 8>}, {transform_indices = @transform_3, window_bounds = array<i64: 128, 8>}]} {
    %c0 = arith.constant 0 : index
    %c0_0 = arith.constant 0 : index
    %0 = vector.load %arg1[%c0, %c0_0] : memref<128x16xbf16, #tpu.memory_space<vmem>>, vector<128x16xbf16>
    %c0_1 = arith.constant 0 : index
    %c0_2 = arith.constant 0 : index
    %1 = vector.load %arg2[%c0_1, %c0_2] : memref<16x8xbf16, #tpu.memory_space<vmem>>, vector<16x8xbf16>
    %cst = arith.constant dense<0.000000e+00> : vector<128x8xf32>
    %2 = tpu.matmul %0, %1, %cst {dimension_numbers = #tpu.dot_dimension_numbers<[1], [0], [0], [1], [0, 0, 1, 1], [], []>} : vector<128x16xbf16>, vector<16x8xbf16>, vector<128x8xf32> -> vector<128x8xf32>
    %c0_3 = arith.constant 0 : index
    %c0_4 = arith.constant 0 : index
    %3 = vector.load %arg3[%c0_3, %c0_4] : memref<1x8xf32, #tpu.memory_space<vmem>>, vector<1x8xf32>
    %4 = vector.broadcast %3 : vector<1x8xf32> to vector<128x8xf32>
    %5 = arith.addf %2, %4 : vector<128x8xf32>
    %cst_5 = arith.constant 0.000000e+00 : f32
    %6 = vector.broadcast %cst_5 : f32 to vector<128x8xf32>
    %7 = arith.maximumf %5, %6 : vector<128x8xf32>
    %8 = arith.truncf %7 : vector<128x8xf32> to vector<128x8xbf16>
    %c0_6 = arith.constant 0 : index
    %c0_7 = arith.constant 0 : index
    %9 = vector.load %arg4[%c0_6, %c0_7] : memref<128x8xbf16, #tpu.memory_space<vmem>>, vector<128x8xbf16>
    tpu.vector_store %arg4[%c0_6, %c0_7], %8 {strides = array<i32>} : memref<128x8xbf16, #tpu.memory_space<vmem>>, vector<128x8xbf16>,
    return
  }
  func.func @transform_0(%arg0: i32) -> (i32, i32) {
    %c0_i32 = arith.constant 0 : i32
    %c0_i32_0 = arith.constant 0 : i32
    return %arg0, %c0_i32 : i32, i32
  }
  func.func @transform_1(%arg0: i32) -> (i32, i32) {
    %c0_i32 = arith.constant 0 : i32
    %c0_i32_0 = arith.constant 0 : i32
    %c0_i32_1 = arith.constant 0 : i32
    return %c0_i32, %c0_i32_0 : i32, i32
  }
  func.func @transform_2(%arg0: i32) -> (i32, i32) {
    %c0_i32 = arith.constant 0 : i32
    %c0_i32_0 = arith.constant 0 : i32
    %c0_i32_1 = arith.constant 0 : i32
    return %c0_i32, %c0_i32_0 : i32, i32
  }
  func.func @transform_3(%arg0: i32) -> (i32, i32) {
    %c0_i32 = arith.constant 0 : i32
    %c0_i32_0 = arith.constant 0 : i32
    return %arg0, %c0_i32 : i32, i32
  }
}

module attributes {stable_mosaic.version = 11 : i64} {
  func.func @_conv3x3_packed_kernel(%arg0: i32, %arg1: memref<1x16x16x8xbf16, #tpu.memory_space<vmem>>, %arg2: memref<3x24x8xbf16, #tpu.memory_space<vmem>>, %arg3: memref<1x8xf32, #tpu.memory_space<vmem>>, %arg4: memref<1x256x8xbf16, #tpu.memory_space<vmem>>, %arg5: memref<18x16x24xbf16, #tpu.memory_space<vmem>>, %arg6: memref<256x8xf32, #tpu.memory_space<vmem>>) attributes {dimension_semantics = [#tpu.dimension_semantics<parallel>], iteration_bounds = array<i64: 2>, scalar_prefetch = 0 : i64, scratch_operands = 2 : i64, tpu.core_type = #tpu.core_type<tc>, window_params = [{transform_indices = @transform_0, window_bounds = array<i64: 1, 16, 16, 8>}, {pipeline_mode = #tpu.pipeline_mode<synchronous>, transform_indices = @transform_1, window_bounds = array<i64: 3, 24, 8>}, {pipeline_mode = #tpu.pipeline_mode<synchronous>, transform_indices = @transform_2, window_bounds = array<i64: 1, 8>}, {transform_indices = @transform_3, window_bounds = array<i64: 1, 256, 8>}]} {
    %c0 = arith.constant 0 : index
    %c0_0 = arith.constant 0 : index
    %c0_1 = arith.constant 0 : index
    %c0_2 = arith.constant 0 : index
    %0 = vector.load %arg1[%c0, %c0_0, %c0_1, %c0_2] : memref<1x16x16x8xbf16, #tpu.memory_space<vmem>>, vector<1x16x16x8xbf16>
    %1 = vector.shape_cast %0 : vector<1x16x16x8xbf16> to vector<16x16x8xbf16>
    %cst = arith.constant 0.000000e+00 : bf16
    %2 = vector.broadcast %cst : bf16 to vector<1x16x24xbf16>
    %cst_3 = arith.constant 0.000000e+00 : bf16
    %3 = vector.broadcast %cst_3 : bf16 to vector<16x1x8xbf16>
    %c0_4 = arith.constant 0 : index
    %c0_5 = arith.constant 0 : index
    %c0_6 = arith.constant 0 : index
    %4 = vector.load %arg5[%c0_4, %c0_5, %c0_6] : memref<18x16x24xbf16, #tpu.memory_space<vmem>>, vector<1x16x24xbf16>
    tpu.vector_store %arg5[%c0_4, %c0_5, %c0_6], %2 {strides = array<i32>} : memref<18x16x24xbf16, #tpu.memory_space<vmem>>, vector<1x16x24xbf16>,
    %c17 = arith.constant 17 : index
    %c0_7 = arith.constant 0 : index
    %c0_8 = arith.constant 0 : index
    %5 = vector.load %arg5[%c17, %c0_7, %c0_8] : memref<18x16x24xbf16, #tpu.memory_space<vmem>>, vector<1x16x24xbf16>
    tpu.vector_store %arg5[%c17, %c0_7, %c0_8], %2 {strides = array<i32>} : memref<18x16x24xbf16, #tpu.memory_space<vmem>>, vector<1x16x24xbf16>,
    %c1 = arith.constant 1 : index
    %c0_9 = arith.constant 0 : index
    %c0_10 = arith.constant 0 : index
    %6 = vector.load %arg5[%c1, %c0_9, %c0_10] : memref<18x16x24xbf16, #tpu.memory_space<vmem>>, vector<16x1x8xbf16>
    tpu.vector_store %arg5[%c1, %c0_9, %c0_10], %3 {strides = array<i32>} : memref<18x16x24xbf16, #tpu.memory_space<vmem>>, vector<16x1x8xbf16>,
    %c1_11 = arith.constant 1 : index
    %c15 = arith.constant 15 : index
    %c16 = arith.constant 16 : index
    %7 = vector.load %arg5[%c1_11, %c15, %c16] : memref<18x16x24xbf16, #tpu.memory_space<vmem>>, vector<16x1x8xbf16>
    tpu.vector_store %arg5[%c1_11, %c15, %c16], %3 {strides = array<i32>} : memref<18x16x24xbf16, #tpu.memory_space<vmem>>, vector<16x1x8xbf16>,
    %8 = vector.extract_strided_slice %1 {offsets = [0, 0, 0], sizes = [16, 15, 8], strides = [1, 1, 1]} : vector<16x16x8xbf16> to vector<16x15x8xbf16>
    %c1_12 = arith.constant 1 : index
    %c1_13 = arith.constant 1 : index
    %c0_14 = arith.constant 0 : index
    %9 = vector.load %arg5[%c1_12, %c1_13, %c0_14] : memref<18x16x24xbf16, #tpu.memory_space<vmem>>, vector<16x15x8xbf16>
    tpu.vector_store %arg5[%c1_12, %c1_13, %c0_14], %8 {strides = array<i32>} : memref<18x16x24xbf16, #tpu.memory_space<vmem>>, vector<16x15x8xbf16>,
    %c1_15 = arith.constant 1 : index
    %c0_16 = arith.constant 0 : index
    %c8 = arith.constant 8 : index
    %10 = vector.load %arg5[%c1_15, %c0_16, %c8] : memref<18x16x24xbf16, #tpu.memory_space<vmem>>, vector<16x16x8xbf16>
    tpu.vector_store %arg5[%c1_15, %c0_16, %c8], %1 {strides = array<i32>} : memref<18x16x24xbf16, #tpu.memory_space<vmem>>, vector<16x16x8xbf16>,
    %11 = vector.extract_strided_slice %1 {offsets = [0, 1, 0], sizes = [16, 15, 8], strides = [1, 1, 1]} : vector<16x16x8xbf16> to vector<16x15x8xbf16>
    %c1_17 = arith.constant 1 : index
    %c0_18 = arith.constant 0 : index
    %c16_19 = arith.constant 16 : index
    %12 = vector.load %arg5[%c1_17, %c0_18, %c16_19] : memref<18x16x24xbf16, #tpu.memory_space<vmem>>, vector<16x15x8xbf16>
    tpu.vector_store %arg5[%c1_17, %c0_18, %c16_19], %11 {strides = array<i32>} : memref<18x16x24xbf16, #tpu.memory_space<vmem>>, vector<16x15x8xbf16>,
    %c0_20 = arith.constant 0 : index
    %c0_21 = arith.constant 0 : index
    %c0_22 = arith.constant 0 : index
    %13 = vector.load %arg5[%c0_20, %c0_21, %c0_22] : memref<18x16x24xbf16, #tpu.memory_space<vmem>>, vector<16x16x24xbf16>
    %14 = vector.shape_cast %13 : vector<16x16x24xbf16> to vector<256x24xbf16>
    %c0_23 = arith.constant 0 : index
    %c0_24 = arith.constant 0 : index
    %c0_25 = arith.constant 0 : index
    %15 = vector.load %arg2[%c0_23, %c0_24, %c0_25] : memref<3x24x8xbf16, #tpu.memory_space<vmem>>, vector<1x24x8xbf16>
    %16 = vector.shape_cast %15 : vector<1x24x8xbf16> to vector<24x8xbf16>
    %cst_26 = arith.constant dense<0.000000e+00> : vector<256x8xf32>
    %17 = tpu.matmul %14, %16, %cst_26 {dimension_numbers = #tpu.dot_dimension_numbers<[1], [0], [0], [1], [0, 0, 1, 1], [], []>} : vector<256x24xbf16>, vector<24x8xbf16>, vector<256x8xf32> -> vector<256x8xf32>
    %c0_27 = arith.constant 0 : index
    %c0_28 = arith.constant 0 : index
    %18 = vector.load %arg6[%c0_27, %c0_28] : memref<256x8xf32, #tpu.memory_space<vmem>>, vector<256x8xf32>
    tpu.vector_store %arg6[%c0_27, %c0_28], %17 {strides = array<i32>} : memref<256x8xf32, #tpu.memory_space<vmem>>, vector<256x8xf32>,
    %c1_29 = arith.constant 1 : index
    %c0_30 = arith.constant 0 : index
    %c0_31 = arith.constant 0 : index
    %19 = vector.load %arg5[%c1_29, %c0_30, %c0_31] : memref<18x16x24xbf16, #tpu.memory_space<vmem>>, vector<16x16x24xbf16>
    %20 = vector.shape_cast %19 : vector<16x16x24xbf16> to vector<256x24xbf16>
    %c1_32 = arith.constant 1 : index
    %c0_33 = arith.constant 0 : index
    %c0_34 = arith.constant 0 : index
    %21 = vector.load %arg2[%c1_32, %c0_33, %c0_34] : memref<3x24x8xbf16, #tpu.memory_space<vmem>>, vector<1x24x8xbf16>
    %22 = vector.shape_cast %21 : vector<1x24x8xbf16> to vector<24x8xbf16>
    %cst_35 = arith.constant dense<0.000000e+00> : vector<256x8xf32>
    %23 = tpu.matmul %20, %22, %cst_35 {dimension_numbers = #tpu.dot_dimension_numbers<[1], [0], [0], [1], [0, 0, 1, 1], [], []>} : vector<256x24xbf16>, vector<24x8xbf16>, vector<256x8xf32> -> vector<256x8xf32>
    %c0_36 = arith.constant 0 : index
    %c0_37 = arith.constant 0 : index
    %24 = vector.load %arg6[%c0_36, %c0_37] : memref<256x8xf32, #tpu.memory_space<vmem>>, vector<256x8xf32>
    %25 = arith.addf %24, %23 : vector<256x8xf32>
    %c0_38 = arith.constant 0 : index
    %c0_39 = arith.constant 0 : index
    %26 = vector.load %arg6[%c0_38, %c0_39] : memref<256x8xf32, #tpu.memory_space<vmem>>, vector<256x8xf32>
    tpu.vector_store %arg6[%c0_38, %c0_39], %25 {strides = array<i32>} : memref<256x8xf32, #tpu.memory_space<vmem>>, vector<256x8xf32>,
    %c2 = arith.constant 2 : index
    %c0_40 = arith.constant 0 : index
    %c0_41 = arith.constant 0 : index
    %27 = vector.load %arg5[%c2, %c0_40, %c0_41] : memref<18x16x24xbf16, #tpu.memory_space<vmem>>, vector<16x16x24xbf16>
    %28 = vector.shape_cast %27 : vector<16x16x24xbf16> to vector<256x24xbf16>
    %c2_42 = arith.constant 2 : index
    %c0_43 = arith.constant 0 : index
    %c0_44 = arith.constant 0 : index
    %29 = vector.load %arg2[%c2_42, %c0_43, %c0_44] : memref<3x24x8xbf16, #tpu.memory_space<vmem>>, vector<1x24x8xbf16>
    %30 = vector.shape_cast %29 : vector<1x24x8xbf16> to vector<24x8xbf16>
    %cst_45 = arith.constant dense<0.000000e+00> : vector<256x8xf32>
    %31 = tpu.matmul %28, %30, %cst_45 {dimension_numbers = #tpu.dot_dimension_numbers<[1], [0], [0], [1], [0, 0, 1, 1], [], []>} : vector<256x24xbf16>, vector<24x8xbf16>, vector<256x8xf32> -> vector<256x8xf32>
    %c0_46 = arith.constant 0 : index
    %c0_47 = arith.constant 0 : index
    %32 = vector.load %arg6[%c0_46, %c0_47] : memref<256x8xf32, #tpu.memory_space<vmem>>, vector<256x8xf32>
    %33 = arith.addf %32, %31 : vector<256x8xf32>
    %c0_48 = arith.constant 0 : index
    %c0_49 = arith.constant 0 : index
    %34 = vector.load %arg6[%c0_48, %c0_49] : memref<256x8xf32, #tpu.memory_space<vmem>>, vector<256x8xf32>
    tpu.vector_store %arg6[%c0_48, %c0_49], %33 {strides = array<i32>} : memref<256x8xf32, #tpu.memory_space<vmem>>, vector<256x8xf32>,
    %c0_50 = arith.constant 0 : index
    %c0_51 = arith.constant 0 : index
    %35 = vector.load %arg6[%c0_50, %c0_51] : memref<256x8xf32, #tpu.memory_space<vmem>>, vector<256x8xf32>
    %c0_52 = arith.constant 0 : index
    %c0_53 = arith.constant 0 : index
    %36 = vector.load %arg3[%c0_52, %c0_53] : memref<1x8xf32, #tpu.memory_space<vmem>>, vector<1x8xf32>
    %37 = vector.broadcast %36 : vector<1x8xf32> to vector<256x8xf32>
    %38 = arith.addf %35, %37 : vector<256x8xf32>
    %cst_54 = arith.constant 0.000000e+00 : f32
    %39 = vector.broadcast %cst_54 : f32 to vector<256x8xf32>
    %40 = arith.maximumf %38, %39 : vector<256x8xf32>
    %41 = vector.shape_cast %40 : vector<256x8xf32> to vector<1x256x8xf32>
    %42 = arith.truncf %41 : vector<1x256x8xf32> to vector<1x256x8xbf16>
    %c0_55 = arith.constant 0 : index
    %c0_56 = arith.constant 0 : index
    %c0_57 = arith.constant 0 : index
    %43 = vector.load %arg4[%c0_55, %c0_56, %c0_57] : memref<1x256x8xbf16, #tpu.memory_space<vmem>>, vector<1x256x8xbf16>
    tpu.vector_store %arg4[%c0_55, %c0_56, %c0_57], %42 {strides = array<i32>} : memref<1x256x8xbf16, #tpu.memory_space<vmem>>, vector<1x256x8xbf16>,
    return
  }
  func.func @transform_0(%arg0: i32) -> (i32, i32, i32, i32) {
    %c0_i32 = arith.constant 0 : i32
    %c0_i32_0 = arith.constant 0 : i32
    %c0_i32_1 = arith.constant 0 : i32
    %c0_i32_2 = arith.constant 0 : i32
    return %arg0, %c0_i32, %c0_i32_0, %c0_i32_1 : i32, i32, i32, i32
  }
  func.func @transform_1(%arg0: i32) -> (i32, i32, i32) {
    %c0_i32 = arith.constant 0 : i32
    %c0_i32_0 = arith.constant 0 : i32
    %c0_i32_1 = arith.constant 0 : i32
    %c0_i32_2 = arith.constant 0 : i32
    return %c0_i32, %c0_i32_0, %c0_i32_1 : i32, i32, i32
  }
  func.func @transform_2(%arg0: i32) -> (i32, i32) {
    %c0_i32 = arith.constant 0 : i32
    %c0_i32_0 = arith.constant 0 : i32
    %c0_i32_1 = arith.constant 0 : i32
    return %c0_i32, %c0_i32_0 : i32, i32
  }
  func.func @transform_3(%arg0: i32) -> (i32, i32, i32) {
    %c0_i32 = arith.constant 0 : i32
    %c0_i32_0 = arith.constant 0 : i32
    %c0_i32_1 = arith.constant 0 : i32
    return %arg0, %c0_i32, %c0_i32_0 : i32, i32, i32
  }
}

module attributes {stable_mosaic.version = 11 : i64} {
  func.func @_matmul_bias_proj_res_kernel(%arg0: i32, %arg1: memref<128x8xbf16, #tpu.memory_space<vmem>>, %arg2: memref<8x32xbf16, #tpu.memory_space<vmem>>, %arg3: memref<1x32xf32, #tpu.memory_space<vmem>>, %arg4: memref<128x16xbf16, #tpu.memory_space<vmem>>, %arg5: memref<16x32xbf16, #tpu.memory_space<vmem>>, %arg6: memref<1x32xf32, #tpu.memory_space<vmem>>, %arg7: memref<128x32xf32, #tpu.memory_space<vmem>>) attributes {dimension_semantics = [#tpu.dimension_semantics<parallel>], iteration_bounds = array<i64: 4>, scalar_prefetch = 0 : i64, scratch_operands = 0 : i64, tpu.core_type = #tpu.core_type<tc>, window_params = [{transform_indices = @transform_0, window_bounds = array<i64: 128, 8>}, {pipeline_mode = #tpu.pipeline_mode<synchronous>, transform_indices = @transform_1, window_bounds = array<i64: 8, 32>}, {pipeline_mode = #tpu.pipeline_mode<synchronous>, transform_indices = @transform_2, window_bounds = array<i64: 1, 32>}, {transform_indices = @transform_3, window_bounds = array<i64: 128, 16>}, {pipeline_mode = #tpu.pipeline_mode<synchronous>, transform_indices = @transform_4, window_bounds = array<i64: 16, 32>}, {pipeline_mode = #tpu.pipeline_mode<synchronous>, transform_indices = @transform_5, window_bounds = array<i64: 1, 32>}, {transform_indices = @transform_6, window_bounds = array<i64: 128, 32>}]} {
    %c0 = arith.constant 0 : index
    %c0_0 = arith.constant 0 : index
    %0 = vector.load %arg1[%c0, %c0_0] : memref<128x8xbf16, #tpu.memory_space<vmem>>, vector<128x8xbf16>
    %c0_1 = arith.constant 0 : index
    %c0_2 = arith.constant 0 : index
    %1 = vector.load %arg2[%c0_1, %c0_2] : memref<8x32xbf16, #tpu.memory_space<vmem>>, vector<8x32xbf16>
    %cst = arith.constant dense<0.000000e+00> : vector<128x32xf32>
    %2 = tpu.matmul %0, %1, %cst {dimension_numbers = #tpu.dot_dimension_numbers<[1], [0], [0], [1], [0, 0, 1, 1], [], []>} : vector<128x8xbf16>, vector<8x32xbf16>, vector<128x32xf32> -> vector<128x32xf32>
    %c0_3 = arith.constant 0 : index
    %c0_4 = arith.constant 0 : index
    %3 = vector.load %arg3[%c0_3, %c0_4] : memref<1x32xf32, #tpu.memory_space<vmem>>, vector<1x32xf32>
    %4 = vector.broadcast %3 : vector<1x32xf32> to vector<128x32xf32>
    %5 = arith.addf %2, %4 : vector<128x32xf32>
    %c0_5 = arith.constant 0 : index
    %c0_6 = arith.constant 0 : index
    %6 = vector.load %arg4[%c0_5, %c0_6] : memref<128x16xbf16, #tpu.memory_space<vmem>>, vector<128x16xbf16>
    %c0_7 = arith.constant 0 : index
    %c0_8 = arith.constant 0 : index
    %7 = vector.load %arg5[%c0_7, %c0_8] : memref<16x32xbf16, #tpu.memory_space<vmem>>, vector<16x32xbf16>
    %cst_9 = arith.constant dense<0.000000e+00> : vector<128x32xf32>
    %8 = tpu.matmul %6, %7, %cst_9 {dimension_numbers = #tpu.dot_dimension_numbers<[1], [0], [0], [1], [0, 0, 1, 1], [], []>} : vector<128x16xbf16>, vector<16x32xbf16>, vector<128x32xf32> -> vector<128x32xf32>
    %c0_10 = arith.constant 0 : index
    %c0_11 = arith.constant 0 : index
    %9 = vector.load %arg6[%c0_10, %c0_11] : memref<1x32xf32, #tpu.memory_space<vmem>>, vector<1x32xf32>
    %10 = vector.broadcast %9 : vector<1x32xf32> to vector<128x32xf32>
    %11 = arith.addf %8, %10 : vector<128x32xf32>
    %12 = arith.addf %5, %11 : vector<128x32xf32>
    %cst_12 = arith.constant 0.000000e+00 : f32
    %13 = vector.broadcast %cst_12 : f32 to vector<128x32xf32>
    %14 = arith.maximumf %12, %13 : vector<128x32xf32>
    %c0_13 = arith.constant 0 : index
    %c0_14 = arith.constant 0 : index
    %15 = vector.load %arg7[%c0_13, %c0_14] : memref<128x32xf32, #tpu.memory_space<vmem>>, vector<128x32xf32>
    tpu.vector_store %arg7[%c0_13, %c0_14], %14 {strides = array<i32>} : memref<128x32xf32, #tpu.memory_space<vmem>>, vector<128x32xf32>,
    return
  }
  func.func @transform_0(%arg0: i32) -> (i32, i32) {
    %c0_i32 = arith.constant 0 : i32
    %c0_i32_0 = arith.constant 0 : i32
    return %arg0, %c0_i32 : i32, i32
  }
  func.func @transform_1(%arg0: i32) -> (i32, i32) {
    %c0_i32 = arith.constant 0 : i32
    %c0_i32_0 = arith.constant 0 : i32
    %c0_i32_1 = arith.constant 0 : i32
    return %c0_i32, %c0_i32_0 : i32, i32
  }
  func.func @transform_2(%arg0: i32) -> (i32, i32) {
    %c0_i32 = arith.constant 0 : i32
    %c0_i32_0 = arith.constant 0 : i32
    %c0_i32_1 = arith.constant 0 : i32
    return %c0_i32, %c0_i32_0 : i32, i32
  }
  func.func @transform_3(%arg0: i32) -> (i32, i32) {
    %c0_i32 = arith.constant 0 : i32
    %c0_i32_0 = arith.constant 0 : i32
    return %arg0, %c0_i32 : i32, i32
  }
  func.func @transform_4(%arg0: i32) -> (i32, i32) {
    %c0_i32 = arith.constant 0 : i32
    %c0_i32_0 = arith.constant 0 : i32
    %c0_i32_1 = arith.constant 0 : i32
    return %c0_i32, %c0_i32_0 : i32, i32
  }
  func.func @transform_5(%arg0: i32) -> (i32, i32) {
    %c0_i32 = arith.constant 0 : i32
    %c0_i32_0 = arith.constant 0 : i32
    %c0_i32_1 = arith.constant 0 : i32
    return %c0_i32, %c0_i32_0 : i32, i32
  }
  func.func @transform_6(%arg0: i32) -> (i32, i32) {
    %c0_i32 = arith.constant 0 : i32
    %c0_i32_0 = arith.constant 0 : i32
    return %arg0, %c0_i32 : i32, i32
  }
}

</mosaic_0001>

<llo_original>
// kernel: bottleneck_block.3
$region0: #{bottleneck_block.3}
  #allocation0 [shape = 'u32[]', space=smem, size = 0x4, offset = 0x4, fixed_abs, tag = 'smem constant byte address 0x4 - core index']
  #allocation1 [shape = 'u32[144,128]{1,0:T(1,128)}', space=vmem, size = 0x12000, scoped, tag = 'internal scratch']
  %s0 = inlined_call_operand.vmem [shape: bf16[512,16], index: 0, kind: input, shape index: {}]
  %s1 = inlined_call_operand.vmem [shape: bf16[16,8], index: 1, kind: input, shape index: {}]
  %s2 = inlined_call_operand.vmem [shape: f32[1,8], index: 2, kind: input, shape index: {}]
  %s3 = inlined_call_operand.vmem [shape: bf16[512,8], index: 3, kind: output, shape index: {}]
  %s4 = sld [smem:[#allocation0]]
  $region45: #{bottleneck_block.3} parent=0
    _
  %s6 = ssub.s32 1, %s4
  %s7 = scalar_select 0, %s6, %s4
  loop: start=0, step=1, limit=6
  $region2: #{bottleneck_block.3} parent=0 // loop_pre_header
    _
  $region3: #{bottleneck_block.3} parent=0 // loop_header
    %s9 = sphi 0, %s13
    %p10 = scmp.ge.s32.totalorder %s9, 6
    %s19 = sphi 0, %s21
    %s22 = sphi 0, %s19
    %s23 = sphi 0, %s22
    %s39 = sphi 0, %s23
    %s43 = sphi 0, %s43
    %s45 = sphi 0, %s43
    %s46 = sphi 0, %s45
    %s60 = sphi 0, %s46
    %s64 = sphi 0, %s64
    %s66 = sphi 0, %s64
    %s67 = sphi 0, %s66
    %s81 = sphi 0, %s67
    %s87 = sphi 0, %s89
    %s90 = sphi 0, %s87
    %s91 = sphi 0, %s90
    %s107 = sphi 0, %s91
  $region4: #{bottleneck_block.3} parent=0 // loop_header_branch
    %12 = sbr.rel (%p10) target = $region8
  $region5: #{bottleneck_block.3} parent=0 // loop_body
    %s14 = ssub.s32 %s9, 1
    %s15 = ssub.s32 %s9, 2
    %s16 = sadd.s32 %s9, 1
    %s17 = ssub.s32 %s9, %s16
    %p18 = scmp.eq.s32.totalorder %s17, 0
    %s20 = sadd.s32 %s19, 1
    %s21 = scalar_select %p18, %s19, %s20
    %p24 = pneg %p18
    %p25 = scmp.eq.s32.totalorder %s9, 3
    %p26 = por %p24, %p25
    %p27 = scmp.ne.s32.totalorder %s19, %s22
    %p28 = scmp.eq.s32.totalorder %s9, 0
    %p29 = por %p27, %p28
    %p30 = scmp.ne.s32.totalorder %s19, %s22
    %p31 = scmp.eq.s32.totalorder %s14, 3
    %p32 = por %p30, %p31
    %p33 = scmp.ne.s32.totalorder %s22, %s23
    %p34 = scmp.eq.s32.totalorder %s14, 0
    %p35 = por %p33, %p34
    %p36 = scmp.ne.s32.totalorder %s22, %s23
    %p37 = scmp.eq.s32.totalorder %s15, 3
    %p38 = por %p36, %p37
    %p40 = scmp.ne.s32.totalorder %s23, %s39
    %p41 = scmp.eq.s32.totalorder %s15, 0
    %p42 = por %p40, %p41
    %s44 = sadd.s32 %s43, 1
    %p47 = scmp.eq.s32.totalorder %s9, 3
    %p48 = scmp.ne.s32.totalorder %s43, %s45
    %p49 = scmp.eq.s32.totalorder %s9, 0
    %p50 = por %p48, %p49
    %p51 = scmp.ne.s32.totalorder %s43, %s45
    %p52 = scmp.eq.s32.totalorder %s14, 3
    %p53 = por %p51, %p52
    %p54 = scmp.ne.s32.totalorder %s45, %s46
    %p55 = scmp.eq.s32.totalorder %s14, 0
    %p56 = por %p54, %p55
    %p57 = scmp.ne.s32.totalorder %s45, %s46
    %p58 = scmp.eq.s32.totalorder %s15, 3
    %p59 = por %p57, %p58
    %p61 = scmp.ne.s32.totalorder %s46, %s60
    %p62 = scmp.eq.s32.totalorder %s15, 0
    %p63 = por %p61, %p62
    %s65 = sadd.s32 %s64, 1
    %p68 = scmp.eq.s32.totalorder %s9, 3
    %p69 = scmp.ne.s32.totalorder %s64, %s66
    %p70 = scmp.eq.s32.totalorder %s9, 0
    %p71 = por %p69, %p70
    %p72 = scmp.ne.s32.totalorder %s64, %s66
    %p73 = scmp.eq.s32.totalorder %s14, 3
    %p74 = por %p72, %p73
    %p75 = scmp.ne.s32.totalorder %s66, %s67
    %p76 = scmp.eq.s32.totalorder %s14, 0
    %p77 = por %p75, %p76
    %p78 = scmp.ne.s32.totalorder %s66, %s67
    %p79 = scmp.eq.s32.totalorder %s15, 3
    %p80 = por %p78, %p79
    %p82 = scmp.ne.s32.totalorder %s67, %s81
    %p83 = scmp.eq.s32.totalorder %s15, 0
    %p84 = por %p82, %p83
    %s85 = ssub.s32 %s9, %s16
    %p86 = scmp.eq.s32.totalorder %s85, 0
    %s88 = sadd.s32 %s87, 1
    %s89 = scalar_select %p86, %s87, %s88
    %p92 = pneg %p86
    %p93 = scmp.eq.s32.totalorder %s9, 3
    %p94 = por %p92, %p93
    %p95 = scmp.ne.s32.totalorder %s87, %s90
    %p96 = scmp.eq.s32.totalorder %s9, 0
    %p97 = por %p95, %p96
    %p98 = scmp.ne.s32.totalorder %s87, %s90
    %p99 = scmp.eq.s32.totalorder %s14, 3
    %p100 = por %p98, %p99
    %p101 = scmp.ne.s32.totalorder %s90, %s91
    %p102 = scmp.eq.s32.totalorder %s14, 0
    %p103 = por %p101, %p102
    %p104 = scmp.ne.s32.totalorder %s90, %s91
    %p105 = scmp.eq.s32.totalorder %s15, 3
    %p106 = por %p104, %p105
    %p108 = scmp.ne.s32.totalorder %s91, %s107
    %p109 = scmp.eq.s32.totalorder %s15, 0
    %p110 = por %p108, %p109
    %p111 = scmp.le.s32.totalorder 1, %s9
    %p112 = scmp.lt.s32.totalorder %s9, 5
    %p113 = pnand %p111, %p112
    %p114 = pneg %p113
    // Predicated region
    $region9: #{bottleneck_block.3} parent=5 // pred_check
      _
    $region10: #{bottleneck_block.3} parent=5 // pred_check_branch
      %116 = sbr.rel (%p113) target = $region12
    $region11: #{bottleneck_block.3} parent=5 // pred_region
      %s117 = ssub.s32 %s9, 1
      // Predicated region
      $region13: #{bottleneck_block.3} parent=11 // pred_check
        %p118 = pneg %p56
      $region14: #{bottleneck_block.3} parent=11 // pred_check_branch
        %120 = sbr.rel (%p118) target = $region16
      $region15: #{bottleneck_block.3} parent=11 // pred_region
        _
      $region16: #{bottleneck_block.3} parent=11 // pred_fallthru
        _
      // Predicated region
      $region17: #{bottleneck_block.3} parent=11 // pred_check
        %p121 = pneg %p77
      $region18: #{bottleneck_block.3} parent=11 // pred_check_branch
        %123 = sbr.rel (%p121) target = $region20
      $region19: #{bottleneck_block.3} parent=11 // pred_region
        _
      $region20: #{bottleneck_block.3} parent=11 // pred_fallthru
        _
    $region12: #{bottleneck_block.3} parent=5 // pred_fallthru
      _
    %p124 = scmp.lt.s32.totalorder %s9, 4
    // Predicated region
    $region21: #{bottleneck_block.3} parent=5 // pred_check
      %p125 = pneg %p124
    $region22: #{bottleneck_block.3} parent=5 // pred_check_branch
      %127 = sbr.rel (%p125) target = $region24
    $region23: #{bottleneck_block.3} parent=5 // pred_region
      // Predicated region
      $region25: #{bottleneck_block.3} parent=23 // pred_check
        %p128 = pneg %p29
      $region26: #{bottleneck_block.3} parent=23 // pred_check_branch
        %130 = sbr.rel (%p128) target = $region28
      $region27: #{bottleneck_block.3} parent=23 // pred_region
        %s131 = smul.u32 16, %s9
        %p132 = scmp.lt.s32.totalorder %s131, 63
        %s133 = scalar_select %p132, %s131, 63
        %s134 = smul.addr %s133, 4
        %s135 = scalar_lea.vmem %s0, %s134
        %s136 = smul.u32 16, %s9
      $region28: #{bottleneck_block.3} parent=23 // pred_fallthru
        _
    $region24: #{bottleneck_block.3} parent=5 // pred_fallthru
      _
    %p137 = scmp.le.s32.totalorder 1, %s9
    %p138 = scmp.lt.s32.totalorder %s9, 5
    %p139 = pnand %p137, %p138
    %p140 = pneg %p139
    // Predicated region
    $region29: #{bottleneck_block.3} parent=5 // pred_check
      _
    $region30: #{bottleneck_block.3} parent=5 // pred_check_branch
      %142 = sbr.rel (%p139) target = $region32
    $region31: #{bottleneck_block.3} parent=5 // pred_region
      %s143 = ssub.s32 %s9, 1
      %s144 = smul.u32 16, %s14
      %p145 = scmp.lt.s32.totalorder %s144, 63
      %s146 = scalar_select %p145, %s144, 63
      %s147 = smul.addr %s146, 4
      %s148 = scalar_lea.vmem %s0, %s147
      %p149 = pneg %p35
      %p150 = pneg %p32
      %p151 = pneg %p56
      %p152 = pneg %p53
      %p153 = pneg %p77
      %p154 = pneg %p74
      %p155 = pneg %p103
      %p156 = pneg %p100
      %s157 = smul.u32 16, %s14
      %p158 = scmp.lt.s32.totalorder %s157, 63
      %s159 = scalar_select %p158, %s157, 63
      %s160 = smul.addr %s159, 4
      %s161 = scalar_lea.vmem %s3, %s160
      %s162 = smul.u32 16, %s14
      %p163 = scmp.lt.s32.totalorder %s162, 63
      %s164 = scalar_select %p163, %s162, 63
      %s165 = smul.addr %s164, 4
      %s166 = scalar_lea.vmem %s0, %s165
      %s167 = smul.u32 16, %s14
      %s168 = smul.u32 16, %s14
      %p169 = scmp.lt.s32.totalorder %s168, 63
      %s170 = scalar_select %p169, %s168, 63
      %s171 = smul.addr %s170, 4
      %s172 = scalar_lea.vmem %s3, %s171
      %s173 = smul.u32 16, %s14
      %v175 = vld [vmem:[%s166] sm:$0xf]
      %v176 = vld [vmem:[%s166 + $0x4] sm:$0xf]
      %v177 = vld [vmem:[%s166 + $0x8] sm:$0xf]
      %v178 = vld [vmem:[%s166 + $0xc] sm:$0xf]
      %v179 = vld [vmem:[%s166 + $0x10] sm:$0xf]
      %v180 = vld [vmem:[%s166 + $0x14] sm:$0xf]
      %v181 = vld [vmem:[%s166 + $0x18] sm:$0xf]
      %v182 = vld [vmem:[%s166 + $0x1c] sm:$0xf]
      %v183 = vld [vmem:[%s166 + $0x20] sm:$0xf]
      %v184 = vld [vmem:[%s166 + $0x24] sm:$0xf]
      %v185 = vld [vmem:[%s166 + $0x28] sm:$0xf]
      %v186 = vld [vmem:[%s166 + $0x2c] sm:$0xf]
      %v187 = vld [vmem:[%s166 + $0x30] sm:$0xf]
      %v188 = vld [vmem:[%s166 + $0x34] sm:$0xf]
      %v189 = vld [vmem:[%s166 + $0x38] sm:$0xf]
      %v190 = vld [vmem:[%s166 + $0x3c] sm:$0xf]
      %v191 = vld [vmem:[%s1] sm:$0xf]
      %v192 = vld [vmem:[%s1 + $0x4] sm:$0xf]
      %v193 = vld [vmem:[%s2] sm:$0x1]
      %v195 = vlaneseq
      %v196 = vshrl.u32 %v195, 7
      %v197 = vsub.s32 0, %v196
      %v198 = vrot.slane %v193, %v197
      %v216 = vunpack.c.l.b16 %v175
      %v217 = vunpack.c.l.b16 %v176
      %v218 = vunpack.c.l.b16 %v177
      %v219 = vunpack.c.l.b16 %v178
      %v220 = vunpack.c.l.b16 %v179
      %v221 = vunpack.c.l.b16 %v180
      %v222 = vunpack.c.l.b16 %v181
      %v223 = vunpack.c.l.b16 %v182
      %v224 = vunpack.c.l.b16 %v183
      %v225 = vunpack.c.l.b16 %v184
      %v226 = vunpack.c.l.b16 %v185
      %v227 = vunpack.c.l.b16 %v186
      %v228 = vunpack.c.l.b16 %v187
      %v229 = vunpack.c.l.b16 %v188
      %v230 = vunpack.c.l.b16 %v189
      %v231 = vunpack.c.l.b16 %v190
      %v232 = vpack.c.b16 %v217, %v216
      %v233 = vpack.c.b16 %v219, %v218
      %v234 = vpack.c.b16 %v221, %v220
      %v235 = vpack.c.b16 %v223, %v222
      %v236 = vpack.c.b16 %v225, %v224
      %v237 = vpack.c.b16 %v227, %v226
      %v238 = vpack.c.b16 %v229, %v228
      %v239 = vpack.c.b16 %v231, %v230
      %v242 = vunpack.c.l.b16 %v191
      %v243 = vunpack.c.l.b16 %v192
      %v244 = vpack.c.b16 %v243, %v242
      %vm246 = vcmask 130048
      %v248 = vsel %vm246, %v232, 0
      %v251 = vsel %vm246, %v233, 0
      %v254 = vsel %vm246, %v234, 0
      %v257 = vsel %vm246, %v235, 0
      %v260 = vsel %vm246, %v236, 0
      %v263 = vsel %vm246, %v237, 0
      %v266 = vsel %vm246, %v238, 0
      %v269 = vsel %vm246, %v239, 0
      %271 = vmatprep.subr.bf16.mxu0 0
      %272 = vmatpush1.bf16.msra.mxu0 %v244
      %273 = vmatprep.subr.bf16.mxu0 0
      %274 = vmatpush1.bf16.msra.mxu0 0
      %275 = vmatprep.subr.bf16.mxu0 0
      %276 = vmatpush1.bf16.msra.mxu0 0
      %277 = vmatprep.subr.bf16.mxu0 0
      %278 = vmatpush1.bf16.msra.mxu0 0
      %279 = vmatprep.subr.bf16.mxu0 0
      %280 = vmatpush1.bf16.msra.mxu0 0
      %281 = vmatprep.subr.bf16.mxu0 0
      %282 = vmatpush1.bf16.msra.mxu0 0
      %283 = vmatprep.subr.bf16.mxu0 0
      %284 = vmatpush1.bf16.msra.mxu0 0
      %285 = vmatprep.subr.bf16.mxu0 0
      %286 = vmatpush1.bf16.msra.mxu0 0
      %287 = vmatprep.subr.bf16.mxu0 0
      %288 = vmatpush1.bf16.msra.mxu0 0
      %289 = vmatprep.subr.bf16.mxu0 0
      %290 = vmatpush1.bf16.msra.mxu0 0
      %291 = vmatprep.subr.bf16.mxu0 0
      %292 = vmatpush1.bf16.msra.mxu0 0
      %293 = vmatprep.subr.bf16.mxu0 0
      %294 = vmatpush1.bf16.msra.mxu0 0
      %295 = vmatprep.subr.bf16.mxu0 0
      %296 = vmatpush1.bf16.msra.mxu0 0
      %297 = vmatprep.subr.bf16.mxu0 0
      %298 = vmatpush1.bf16.msra.mxu0 0
      %299 = vmatprep.subr.bf16.mxu0 0
      %300 = vmatpush1.bf16.msra.mxu0 0
      %301 = vmatprep.subr.bf16.mxu0 0
      %302 = vmatpush1.bf16.msra.mxu0 0
      %303 = vmatprep.mubr.bf16.mxu0 0
      %304 = vmatmul.mubr.bf16.gmra.mrb[0].mxu0 %v248
      %v305 = vpop.f32.mrb[0].mxu0
      %v306 = vadd.f32 %v198, %v305
      %v307 = vpop.f32.mrb[0].mxu0
      %v308 = vpop.f32.mrb[0].mxu0
      %v309 = vadd.f32 %v198, %v308
      %v310 = vpop.f32.mrb[0].mxu0
      %311 = vmatprep.mubr.bf16.mxu0 0
      %312 = vmatmul.mubr.bf16.gmra.mrb[0].mxu0 %v251
      %v313 = vpop.f32.mrb[0].mxu0
      %v314 = vadd.f32 %v198, %v313
      %v315 = vpop.f32.mrb[0].mxu0
      %v316 = vpop.f32.mrb[0].mxu0
      %v317 = vadd.f32 %v198, %v316
      %v318 = vpop.f32.mrb[0].mxu0
      %319 = vmatprep.mubr.bf16.mxu0 0
      %320 = vmatmul.mubr.bf16.gmra.mrb[0].mxu0 %v254
      %v321 = vpop.f32.mrb[0].mxu0
      %v322 = vadd.f32 %v198, %v321
      %v323 = vpop.f32.mrb[0].mxu0
      %v324 = vpop.f32.mrb[0].mxu0
      %v325 = vadd.f32 %v198, %v324
      %v326 = vpop.f32.mrb[0].mxu0
      %327 = vmatprep.mubr.bf16.mxu0 0
      %328 = vmatmul.mubr.bf16.gmra.mrb[0].mxu0 %v257
      %v329 = vpop.f32.mrb[0].mxu0
      %v330 = vadd.f32 %v198, %v329
      %v331 = vpop.f32.mrb[0].mxu0
      %v332 = vpop.f32.mrb[0].mxu0
      %v333 = vadd.f32 %v198, %v332
      %v334 = vpop.f32.mrb[0].mxu0
      %335 = vmatprep.mubr.bf16.mxu0 0
      %336 = vmatmul.mubr.bf16.gmra.mrb[0].mxu0 %v260
      %v337 = vpop.f32.mrb[0].mxu0
      %v338 = vadd.f32 %v198, %v337
      %v339 = vpop.f32.mrb[0].mxu0
      %v340 = vpop.f32.mrb[0].mxu0
      %v341 = vadd.f32 %v198, %v340
      %v342 = vpop.f32.mrb[0].mxu0
      %343 = vmatprep.mubr.bf16.mxu0 0
      %344 = vmatmul.mubr.bf16.gmra.mrb[0].mxu0 %v263
      %v345 = vpop.f32.mrb[0].mxu0
      %v346 = vadd.f32 %v198, %v345
      %v347 = vpop.f32.mrb[0].mxu0
      %v348 = vpop.f32.mrb[0].mxu0
      %v349 = vadd.f32 %v198, %v348
      %v350 = vpop.f32.mrb[0].mxu0
      %351 = vmatprep.mubr.bf16.mxu0 0
      %352 = vmatmul.mubr.bf16.gmra.mrb[0].mxu0 %v266
      %v353 = vpop.f32.mrb[0].mxu0
      %v354 = vadd.f32 %v198, %v353
      %v355 = vpop.f32.mrb[0].mxu0
      %v356 = vpop.f32.mrb[0].mxu0
      %v357 = vadd.f32 %v198, %v356
      %v358 = vpop.f32.mrb[0].mxu0
      %359 = vmatprep.mubr.bf16.mxu0 0
      %360 = vmatmul.mubr.bf16.gmra.mrb[0].mxu0 %v269
      %v361 = vpop.f32.mrb[0].mxu0
      %v362 = vadd.f32 %v198, %v361
      %v363 = vpop.f32.mrb[0].mxu0
      %v364 = vpop.f32.mrb[0].mxu0
      %v365 = vadd.f32 %v198, %v364
      %v366 = vpop.f32.mrb[0].mxu0
      %367 = vdwg.mxu0
      %v368 = vmax.f32 %v306, 0.0
      %v369 = vmax.f32 %v309, 0.0
      %v370 = vmax.f32 %v314, 0.0
      %v371 = vmax.f32 %v317, 0.0
      %v372 = vmax.f32 %v322, 0.0
      %v373 = vmax.f32 %v325, 0.0
      %v374 = vmax.f32 %v330, 0.0
      %v375 = vmax.f32 %v333, 0.0
      %v376 = vmax.f32 %v338, 0.0
      %v377 = vmax.f32 %v341, 0.0
      %v378 = vmax.f32 %v346, 0.0
      %v379 = vmax.f32 %v349, 0.0
      %v380 = vmax.f32 %v354, 0.0
      %v381 = vmax.f32 %v357, 0.0
      %v382 = vmax.f32 %v362, 0.0
      %v383 = vmax.f32 %v365, 0.0
      %v384 = vpack.c.bf16 %v369, %v368
      %v385 = vpack.c.bf16 %v371, %v370
      %v386 = vpack.c.bf16 %v373, %v372
      %v387 = vpack.c.bf16 %v375, %v374
      %v388 = vpack.c.bf16 %v377, %v376
      %v389 = vpack.c.bf16 %v379, %v378
      %v390 = vpack.c.bf16 %v381, %v380
      %v391 = vpack.c.bf16 %v383, %v382
      %v400 = vunpack.c.l.b16 %v384
      %v401 = vunpack.c.h.b16 %v384
      %v402 = vunpack.c.l.b16 %v385
      %v403 = vunpack.c.h.b16 %v385
      %v404 = vunpack.c.l.b16 %v386
      %v405 = vunpack.c.h.b16 %v386
      %v406 = vunpack.c.l.b16 %v387
      %v407 = vunpack.c.h.b16 %v387
      %v408 = vunpack.c.l.b16 %v388
      %v409 = vunpack.c.h.b16 %v388
      %v410 = vunpack.c.l.b16 %v389
      %v411 = vunpack.c.h.b16 %v389
      %v412 = vunpack.c.l.b16 %v390
      %v413 = vunpack.c.h.b16 %v390
      %v414 = vunpack.c.l.b16 %v391
      %v415 = vunpack.c.h.b16 %v391
      %v416 = vpack.c.b16 %v400, %v400
      %v417 = vpack.c.b16 %v401, %v401
      %v418 = vpack.c.b16 %v402, %v402
      %v419 = vpack.c.b16 %v403, %v403
      %v420 = vpack.c.b16 %v404, %v404
      %v421 = vpack.c.b16 %v405, %v405
      %v422 = vpack.c.b16 %v406, %v406
      %v423 = vpack.c.b16 %v407, %v407
      %v424 = vpack.c.b16 %v408, %v408
      %v425 = vpack.c.b16 %v409, %v409
      %v426 = vpack.c.b16 %v410, %v410
      %v427 = vpack.c.b16 %v411, %v411
      %v428 = vpack.c.b16 %v412, %v412
      %v429 = vpack.c.b16 %v413, %v413
      %v430 = vpack.c.b16 %v414, %v414
      %v431 = vpack.c.b16 %v415, %v415
      %vm448 = vcmask 60416
      %449 = vst.msk [vmem:[%s172] sm:$0xf] %vm448, %v416
      %450 = vst.msk [vmem:[%s172 + $0x4] sm:$0xf] %vm448, %v417
      %451 = vst.msk [vmem:[%s172 + $0x8] sm:$0xf] %vm448, %v418
      %452 = vst.msk [vmem:[%s172 + $0xc] sm:$0xf] %vm448, %v419
      %453 = vst.msk [vmem:[%s172 + $0x10] sm:$0xf] %vm448, %v420
      %454 = vst.msk [vmem:[%s172 + $0x14] sm:$0xf] %vm448, %v421
      %455 = vst.msk [vmem:[%s172 + $0x18] sm:$0xf] %vm448, %v422
      %456 = vst.msk [vmem:[%s172 + $0x1c] sm:$0xf] %vm448, %v423
      %457 = vst.msk [vmem:[%s172 + $0x20] sm:$0xf] %vm448, %v424
      %458 = vst.msk [vmem:[%s172 + $0x24] sm:$0xf] %vm448, %v425
      %459 = vst.msk [vmem:[%s172 + $0x28] sm:$0xf] %vm448, %v426
      %460 = vst.msk [vmem:[%s172 + $0x2c] sm:$0xf] %vm448, %v427
      %461 = vst.msk [vmem:[%s172 + $0x30] sm:$0xf] %vm448, %v428
      %462 = vst.msk [vmem:[%s172 + $0x34] sm:$0xf] %vm448, %v429
      %463 = vst.msk [vmem:[%s172 + $0x38] sm:$0xf] %vm448, %v430
      %464 = vst.msk [vmem:[%s172 + $0x3c] sm:$0xf] %vm448, %v431
      %s465 = smul.u32 16, %s14
      %p466 = scmp.lt.s32.totalorder %s465, 63
      %s467 = scalar_select %p466, %s465, 63
      %s468 = smul.addr %s467, 4
      %s469 = scalar_lea.vmem %s3, %s468
      // Predicated region
      $region33: #{bottleneck_block.3} parent=31 // pred_check
        %p470 = pneg %p100
      $region34: #{bottleneck_block.3} parent=31 // pred_check_branch
        %472 = sbr.rel (%p470) target = $region36
      $region35: #{bottleneck_block.3} parent=31 // pred_region
        %s473 = smul.u32 16, %s14
      $region36: #{bottleneck_block.3} parent=31 // pred_fallthru
        _
    $region32: #{bottleneck_block.3} parent=5 // pred_fallthru
      _
    %p474 = scmp.le.s32.totalorder 2, %s9
    // Predicated region
    $region37: #{bottleneck_block.3} parent=5 // pred_check
      %p475 = pneg %p474
    $region38: #{bottleneck_block.3} parent=5 // pred_check_branch
      %477 = sbr.rel (%p475) target = $region40
    $region39: #{bottleneck_block.3} parent=5 // pred_region
      %s478 = ssub.s32 %s9, 2
      // Predicated region
      $region41: #{bottleneck_block.3} parent=39 // pred_check
        %p479 = pneg %p106
      $region42: #{bottleneck_block.3} parent=39 // pred_check_branch
        %481 = sbr.rel (%p479) target = $region44
      $region43: #{bottleneck_block.3} parent=39 // pred_region
        %s482 = smul.u32 16, %s15
        %p483 = scmp.lt.s32.totalorder %s482, 63
        %s484 = scalar_select %p483, %s482, 63
        %s485 = smul.addr %s484, 4
        %s486 = scalar_lea.vmem %s3, %s485
      $region44: #{bottleneck_block.3} parent=39 // pred_fallthru
        _
    $region40: #{bottleneck_block.3} parent=5 // pred_fallthru
      _
  $region6: #{bottleneck_block.3} parent=0 // loop_footer
    %s13 = sadd.s32 1, %s9
  $region7: #{bottleneck_block.3} parent=0 // loop_footer_branch
    %8 = sbr.rel target = $region3
  $region8: #{bottleneck_block.3} parent=0 // loop_exit
    _

// kernel: bottleneck_block.5
$region0: #{bottleneck_block.5}
  #allocation0 [shape = 'u32[]', space=smem, size = 0x4, offset = 0x4, fixed_abs, tag = 'smem constant byte address 0x4 - core index']
  #allocation1 [shape = 'u32[144,128]{1,0:T(1,128)}', space=vmem, size = 0x12000, scoped, tag = 'internal scratch']
  %s0 = inlined_call_operand.vmem [shape: bf16[512,8], index: 0, kind: input, shape index: {}]
  %s1 = inlined_call_operand.vmem [shape: bf16[8,32], index: 1, kind: input, shape index: {}]
  %s2 = inlined_call_operand.vmem [shape: f32[1,32], index: 2, kind: input, shape index: {}]
  %s3 = inlined_call_operand.vmem [shape: bf16[512,16], index: 3, kind: input, shape index: {}]
  %s4 = inlined_call_operand.vmem [shape: bf16[16,32], index: 4, kind: input, shape index: {}]
  %s5 = inlined_call_operand.vmem [shape: f32[1,32], index: 5, kind: input, shape index: {}]
  %s6 = inlined_call_operand.hbm [shape: f32[512,32], index: 6, kind: output, shape index: {}]
  %s7 = sld [smem:[#allocation0]]
  $region57: #{bottleneck_block.5} parent=0
    _
  %s9 = ssub.s32 1, %s7
  %s10 = scalar_select 0, %s9, %s7
  $region1: #{bottleneck_block.5} parent=0
    #allocation2 [shape = 'u8[131072]{0}', space=vmem, size = 0x20000, scoped, tag = 'output window, operand 0']
    #allocation3 [shape = 's32[2]{0}', space=sflag, size = 0x8, scoped, tag = 'scoped memory for bottleneck_block.5']
    %11 = vsyncpa [#allocation3], 0
    %s12 = scalar_lea.sflag [#allocation3], 1
    %13 = vsyncpa %s12, 0
    loop: start=0, step=1, limit=6
    $region2: #{bottleneck_block.5} parent=1 // loop_pre_header
      _
    $region3: #{bottleneck_block.5} parent=1 // loop_header
      %s15 = sphi 0, %s19
      %p16 = scmp.ge.s32.totalorder %s15, 6
      %s25 = sphi 0, %s27
      %s28 = sphi 0, %s25
      %s29 = sphi 0, %s28
      %s45 = sphi 0, %s29
      %s49 = sphi 0, %s49
      %s51 = sphi 0, %s49
      %s52 = sphi 0, %s51
      %s66 = sphi 0, %s52
      %s70 = sphi 0, %s70
      %s72 = sphi 0, %s70
      %s73 = sphi 0, %s72
      %s87 = sphi 0, %s73
      %s93 = sphi 0, %s95
      %s96 = sphi 0, %s93
      %s97 = sphi 0, %s96
      %s113 = sphi 0, %s97
      %s117 = sphi 0, %s117
      %s119 = sphi 0, %s117
      %s120 = sphi 0, %s119
      %s134 = sphi 0, %s120
      %s138 = sphi 0, %s138
      %s140 = sphi 0, %s138
      %s141 = sphi 0, %s140
      %s155 = sphi 0, %s141
      %s161 = sphi 0, %s163
      %s164 = sphi 0, %s161
      %s165 = sphi 0, %s164
      %s181 = sphi 0, %s165
    $region4: #{bottleneck_block.5} parent=1 // loop_header_branch
      %18 = sbr.rel (%p16) target = $region8
    $region5: #{bottleneck_block.5} parent=1 // loop_body
      %s20 = ssub.s32 %s15, 1
      %s21 = ssub.s32 %s15, 2
      %s22 = sadd.s32 %s15, 1
      %s23 = ssub.s32 %s15, %s22
      %p24 = scmp.eq.s32.totalorder %s23, 0
      %s26 = sadd.s32 %s25, 1
      %s27 = scalar_select %p24, %s25, %s26
      %p30 = pneg %p24
      %p31 = scmp.eq.s32.totalorder %s15, 3
      %p32 = por %p30, %p31
      %p33 = scmp.ne.s32.totalorder %s25, %s28
      %p34 = scmp.eq.s32.totalorder %s15, 0
      %p35 = por %p33, %p34
      %p36 = scmp.ne.s32.totalorder %s25, %s28
      %p37 = scmp.eq.s32.totalorder %s20, 3
      %p38 = por %p36, %p37
      %p39 = scmp.ne.s32.totalorder %s28, %s29
      %p40 = scmp.eq.s32.totalorder %s20, 0
      %p41 = por %p39, %p40
      %p42 = scmp.ne.s32.totalorder %s28, %s29
      %p43 = scmp.eq.s32.totalorder %s21, 3
      %p44 = por %p42, %p43
      %p46 = scmp.ne.s32.totalorder %s29, %s45
      %p47 = scmp.eq.s32.totalorder %s21, 0
      %p48 = por %p46, %p47
      %s50 = sadd.s32 %s49, 1
      %p53 = scmp.eq.s32.totalorder %s15, 3
      %p54 = scmp.ne.s32.totalorder %s49, %s51
      %p55 = scmp.eq.s32.totalorder %s15, 0
      %p56 = por %p54, %p55
      %p57 = scmp.ne.s32.totalorder %s49, %s51
      %p58 = scmp.eq.s32.totalorder %s20, 3
      %p59 = por %p57, %p58
      %p60 = scmp.ne.s32.totalorder %s51, %s52
      %p61 = scmp.eq.s32.totalorder %s20, 0
      %p62 = por %p60, %p61
      %p63 = scmp.ne.s32.totalorder %s51, %s52
      %p64 = scmp.eq.s32.totalorder %s21, 3
      %p65 = por %p63, %p64
      %p67 = scmp.ne.s32.totalorder %s52, %s66
      %p68 = scmp.eq.s32.totalorder %s21, 0
      %p69 = por %p67, %p68
      %s71 = sadd.s32 %s70, 1
      %p74 = scmp.eq.s32.totalorder %s15, 3
      %p75 = scmp.ne.s32.totalorder %s70, %s72
      %p76 = scmp.eq.s32.totalorder %s15, 0
      %p77 = por %p75, %p76
      %p78 = scmp.ne.s32.totalorder %s70, %s72
      %p79 = scmp.eq.s32.totalorder %s20, 3
      %p80 = por %p78, %p79
      %p81 = scmp.ne.s32.totalorder %s72, %s73
      %p82 = scmp.eq.s32.totalorder %s20, 0
      %p83 = por %p81, %p82
      %p84 = scmp.ne.s32.totalorder %s72, %s73
      %p85 = scmp.eq.s32.totalorder %s21, 3
      %p86 = por %p84, %p85
      %p88 = scmp.ne.s32.totalorder %s73, %s87
      %p89 = scmp.eq.s32.totalorder %s21, 0
      %p90 = por %p88, %p89
      %s91 = ssub.s32 %s15, %s22
      %p92 = scmp.eq.s32.totalorder %s91, 0
      %s94 = sadd.s32 %s93, 1
      %s95 = scalar_select %p92, %s93, %s94
      %p98 = pneg %p92
      %p99 = scmp.eq.s32.totalorder %s15, 3
      %p100 = por %p98, %p99
      %p101 = scmp.ne.s32.totalorder %s93, %s96
      %p102 = scmp.eq.s32.totalorder %s15, 0
      %p103 = por %p101, %p102
      %p104 = scmp.ne.s32.totalorder %s93, %s96
      %p105 = scmp.eq.s32.totalorder %s20, 3
      %p106 = por %p104, %p105
      %p107 = scmp.ne.s32.totalorder %s96, %s97
      %p108 = scmp.eq.s32.totalorder %s20, 0
      %p109 = por %p107, %p108
      %p110 = scmp.ne.s32.totalorder %s96, %s97
      %p111 = scmp.eq.s32.totalorder %s21, 3
      %p112 = por %p110, %p111
      %p114 = scmp.ne.s32.totalorder %s97, %s113
      %p115 = scmp.eq.s32.totalorder %s21, 0
      %p116 = por %p114, %p115
      %s118 = sadd.s32 %s117, 1
      %p121 = scmp.eq.s32.totalorder %s15, 3
      %p122 = scmp.ne.s32.totalorder %s117, %s119
      %p123 = scmp.eq.s32.totalorder %s15, 0
      %p124 = por %p122, %p123
      %p125 = scmp.ne.s32.totalorder %s117, %s119
      %p126 = scmp.eq.s32.totalorder %s20, 3
      %p127 = por %p125, %p126
      %p128 = scmp.ne.s32.totalorder %s119, %s120
      %p129 = scmp.eq.s32.totalorder %s20, 0
      %p130 = por %p128, %p129
      %p131 = scmp.ne.s32.totalorder %s119, %s120
      %p132 = scmp.eq.s32.totalorder %s21, 3
      %p133 = por %p131, %p132
      %p135 = scmp.ne.s32.totalorder %s120, %s134
      %p136 = scmp.eq.s32.totalorder %s21, 0
      %p137 = por %p135, %p136
      %s139 = sadd.s32 %s138, 1
      %p142 = scmp.eq.s32.totalorder %s15, 3
      %p143 = scmp.ne.s32.totalorder %s138, %s140
      %p144 = scmp.eq.s32.totalorder %s15, 0
      %p145 = por %p143, %p144
      %p146 = scmp.ne.s32.totalorder %s138, %s140
      %p147 = scmp.eq.s32.totalorder %s20, 3
      %p148 = por %p146, %p147
      %p149 = scmp.ne.s32.totalorder %s140, %s141
      %p150 = scmp.eq.s32.totalorder %s20, 0
      %p151 = por %p149, %p150
      %p152 = scmp.ne.s32.totalorder %s140, %s141
      %p153 = scmp.eq.s32.totalorder %s21, 3
      %p154 = por %p152, %p153
      %p156 = scmp.ne.s32.totalorder %s141, %s155
      %p157 = scmp.eq.s32.totalorder %s21, 0
      %p158 = por %p156, %p157
      %s159 = ssub.s32 %s15, %s22
      %p160 = scmp.eq.s32.totalorder %s159, 0
      %s162 = sadd.s32 %s161, 1
      %s163 = scalar_select %p160, %s161, %s162
      %p166 = pneg %p160
      %p167 = scmp.eq.s32.totalorder %s15, 3
      %p168 = por %p166, %p167
      %p169 = scmp.ne.s32.totalorder %s161, %s164
      %p170 = scmp.eq.s32.totalorder %s15, 0
      %p171 = por %p169, %p170
      %p172 = scmp.ne.s32.totalorder %s161, %s164
      %p173 = scmp.eq.s32.totalorder %s20, 3
      %p174 = por %p172, %p173
      %p175 = scmp.ne.s32.totalorder %s164, %s165
      %p176 = scmp.eq.s32.totalorder %s20, 0
      %p177 = por %p175, %p176
      %p178 = scmp.ne.s32.totalorder %s164, %s165
      %p179 = scmp.eq.s32.totalorder %s21, 3
      %p180 = por %p178, %p179
      %p182 = scmp.ne.s32.totalorder %s165, %s181
      %p183 = scmp.eq.s32.totalorder %s21, 0
      %p184 = por %p182, %p183
      %p185 = scmp.le.s32.totalorder 1, %s15
      %p186 = scmp.lt.s32.totalorder %s15, 5
      %p187 = pnand %p185, %p186
      %p188 = pneg %p187
      // Predicated region
      $region9: #{bottleneck_block.5} parent=5 // pred_check
        _
      $region10: #{bottleneck_block.5} parent=5 // pred_check_branch
        %190 = sbr.rel (%p187) target = $region12
      $region11: #{bottleneck_block.5} parent=5 // pred_region
        %s191 = ssub.s32 %s15, 1
        // Predicated region
        $region13: #{bottleneck_block.5} parent=11 // pred_check
          %p192 = pneg %p62
        $region14: #{bottleneck_block.5} parent=11 // pred_check_branch
          %194 = sbr.rel (%p192) target = $region16
        $region15: #{bottleneck_block.5} parent=11 // pred_region
          _
        $region16: #{bottleneck_block.5} parent=11 // pred_fallthru
          _
        // Predicated region
        $region17: #{bottleneck_block.5} parent=11 // pred_check
          %p195 = pneg %p83
        $region18: #{bottleneck_block.5} parent=11 // pred_check_branch
          %197 = sbr.rel (%p195) target = $region20
        $region19: #{bottleneck_block.5} parent=11 // pred_region
          _
        $region20: #{bottleneck_block.5} parent=11 // pred_fallthru
          _
        // Predicated region
        $region21: #{bottleneck_block.5} parent=11 // pred_check
          %p198 = pneg %p130
        $region22: #{bottleneck_block.5} parent=11 // pred_check_branch
          %200 = sbr.rel (%p198) target = $region24
        $region23: #{bottleneck_block.5} parent=11 // pred_region
          _
        $region24: #{bottleneck_block.5} parent=11 // pred_fallthru
          _
        // Predicated region
        $region25: #{bottleneck_block.5} parent=11 // pred_check
          %p201 = pneg %p151
        $region26: #{bottleneck_block.5} parent=11 // pred_check_branch
          %203 = sbr.rel (%p201) target = $region28
        $region27: #{bottleneck_block.5} parent=11 // pred_region
          _
        $region28: #{bottleneck_block.5} parent=11 // pred_fallthru
          _
      $region12: #{bottleneck_block.5} parent=5 // pred_fallthru
        _
      %p204 = scmp.lt.s32.totalorder %s15, 4
      // Predicated region
      $region29: #{bottleneck_block.5} parent=5 // pred_check
        %p205 = pneg %p204
      $region30: #{bottleneck_block.5} parent=5 // pred_check_branch
        %207 = sbr.rel (%p205) target = $region32
      $region31: #{bottleneck_block.5} parent=5 // pred_region
        // Predicated region
        $region33: #{bottleneck_block.5} parent=31 // pred_check
          %p208 = pneg %p35
        $region34: #{bottleneck_block.5} parent=31 // pred_check_branch
          %210 = sbr.rel (%p208) target = $region36
        $region35: #{bottleneck_block.5} parent=31 // pred_region
          %s211 = smul.u32 16, %s15
          %p212 = scmp.lt.s32.totalorder %s211, 63
          %s213 = scalar_select %p212, %s211, 63
          %s214 = smul.addr %s213, 4
          %s215 = scalar_lea.vmem %s0, %s214
          %s216 = smul.u32 16, %s15
        $region36: #{bottleneck_block.5} parent=31 // pred_fallthru
          _
        // Predicated region
        $region37: #{bottleneck_block.5} parent=31 // pred_check
          %p217 = pneg %p103
        $region38: #{bottleneck_block.5} parent=31 // pred_check_branch
          %219 = sbr.rel (%p217) target = $region40
        $region39: #{bottleneck_block.5} parent=31 // pred_region
          %s220 = smul.u32 16, %s15
          %p221 = scmp.lt.s32.totalorder %s220, 63
          %s222 = scalar_select %p221, %s220, 63
          %s223 = smul.addr %s222, 4
          %s224 = scalar_lea.vmem %s3, %s223
          %s225 = smul.u32 16, %s15
        $region40: #{bottleneck_block.5} parent=31 // pred_fallthru
          _
      $region32: #{bottleneck_block.5} parent=5 // pred_fallthru
        _
      %p226 = scmp.le.s32.totalorder 1, %s15
      %p227 = scmp.lt.s32.totalorder %s15, 5
      %p228 = pnand %p226, %p227
      %p229 = pneg %p228
      // Predicated region
      $region41: #{bottleneck_block.5} parent=5 // pred_check
        _
      $region42: #{bottleneck_block.5} parent=5 // pred_check_branch
        %231 = sbr.rel (%p228) target = $region44
      $region43: #{bottleneck_block.5} parent=5 // pred_region
        %s232 = ssub.s32 %s15, 1
        %s233 = smul.u32 16, %s20
        %p234 = scmp.lt.s32.totalorder %s233, 63
        %s235 = scalar_select %p234, %s233, 63
        %s236 = smul.addr %s235, 4
        %s237 = scalar_lea.vmem %s0, %s236
        %p238 = pneg %p41
        %p239 = pneg %p38
        %p240 = pneg %p62
        %p241 = pneg %p59
        %p242 = pneg %p83
        %p243 = pneg %p80
        %s244 = smul.u32 16, %s20
        %p245 = scmp.lt.s32.totalorder %s244, 63
        %s246 = scalar_select %p245, %s244, 63
        %s247 = smul.addr %s246, 4
        %s248 = scalar_lea.vmem %s3, %s247
        %p249 = pneg %p109
        %p250 = pneg %p106
        %p251 = pneg %p130
        %p252 = pneg %p127
        %p253 = pneg %p151
        %p254 = pneg %p148
        %p255 = pneg %p177
        %p256 = pneg %p174
        %s257 = sand.u32 %s164, 1
        %s258 = scalar_lea.sflag [#allocation3], %s257
        %s259 = sand.u32 %s164, 1
        %s260 = smul.addr %s259, 128
        %s261 = scalar_lea.vmem [#allocation2], %s260
        %s262 = smul.u32 16, %s20
        %p263 = scmp.lt.s32.totalorder %s262, 63
        %s264 = scalar_select %p263, %s262, 63
        %s265 = smul.addr %s264, 4
        %s266 = scalar_lea.vmem %s0, %s265
        %s267 = smul.u32 16, %s20
        %s268 = smul.u32 16, %s20
        %p269 = scmp.lt.s32.totalorder %s268, 63
        %s270 = scalar_select %p269, %s268, 63
        %s271 = smul.addr %s270, 4
        %s272 = scalar_lea.vmem %s3, %s271
        %s273 = smul.u32 16, %s20
        %s274 = smul.u32 16, %s20
        %v276 = vld [vmem:[%s266] sm:$0xf]
        %v277 = vld [vmem:[%s266 + $0x4] sm:$0xf]
        %v278 = vld [vmem:[%s266 + $0x8] sm:$0xf]
        %v279 = vld [vmem:[%s266 + $0xc] sm:$0xf]
        %v280 = vld [vmem:[%s266 + $0x10] sm:$0xf]
        %v281 = vld [vmem:[%s266 + $0x14] sm:$0xf]
        %v282 = vld [vmem:[%s266 + $0x18] sm:$0xf]
        %v283 = vld [vmem:[%s266 + $0x1c] sm:$0xf]
        %v284 = vld [vmem:[%s266 + $0x20] sm:$0xf]
        %v285 = vld [vmem:[%s266 + $0x24] sm:$0xf]
        %v286 = vld [vmem:[%s266 + $0x28] sm:$0xf]
        %v287 = vld [vmem:[%s266 + $0x2c] sm:$0xf]
        %v288 = vld [vmem:[%s266 + $0x30] sm:$0xf]
        %v289 = vld [vmem:[%s266 + $0x34] sm:$0xf]
        %v290 = vld [vmem:[%s266 + $0x38] sm:$0xf]
        %v291 = vld [vmem:[%s266 + $0x3c] sm:$0xf]
        %v292 = vld [vmem:[%s1] sm:$0xf]
        %v293 = vld [vmem:[%s2] sm:$0x1]
        %v295 = vlaneseq
        %v296 = vshrl.u32 %v295, 7
        %v297 = vsub.s32 0, %v296
        %v298 = vrot.slane %v293, %v297
        %v316 = vunpack.c.l.b16 %v276
        %v317 = vunpack.c.l.b16 %v277
        %v318 = vunpack.c.l.b16 %v278
        %v319 = vunpack.c.l.b16 %v279
        %v320 = vunpack.c.l.b16 %v280
        %v321 = vunpack.c.l.b16 %v281
        %v322 = vunpack.c.l.b16 %v282
        %v323 = vunpack.c.l.b16 %v283
        %v324 = vunpack.c.l.b16 %v284
        %v325 = vunpack.c.l.b16 %v285
        %v326 = vunpack.c.l.b16 %v286
        %v327 = vunpack.c.l.b16 %v287
        %v328 = vunpack.c.l.b16 %v288
        %v329 = vunpack.c.l.b16 %v289
        %v330 = vunpack.c.l.b16 %v290
        %v331 = vunpack.c.l.b16 %v291
        %v332 = vpack.c.b16 %v317, %v316
        %v333 = vpack.c.b16 %v319, %v318
        %v334 = vpack.c.b16 %v321, %v320
        %v335 = vpack.c.b16 %v323, %v322
        %v336 = vpack.c.b16 %v325, %v324
        %v337 = vpack.c.b16 %v327, %v326
        %v338 = vpack.c.b16 %v329, %v328
        %v339 = vpack.c.b16 %v331, %v330
        %vm340 = vcmask 64512
        %v342 = vsel %vm340, %v332, 0
        %v345 = vsel %vm340, %v333, 0
        %v348 = vsel %vm340, %v334, 0
        %v351 = vsel %vm340, %v335, 0
        %v354 = vsel %vm340, %v336, 0
        %v357 = vsel %vm340, %v337, 0
        %v360 = vsel %vm340, %v338, 0
        %v363 = vsel %vm340, %v339, 0
        %vm365 = vcmask 1043456
        %v367 = vsel %vm365, %v292, 0
        %369 = vmatprep.subr.bf16.mxu0 0
        %370 = vmatpush1.bf16.msra.mxu0 %v367
        %371 = vmatprep.subr.bf16.mxu0 0
        %372 = vmatpush1.bf16.msra.mxu0 0
        %373 = vmatprep.subr.bf16.mxu0 0
        %374 = vmatpush1.bf16.msra.mxu0 0
        %375 = vmatprep.subr.bf16.mxu0 0
        %376 = vmatpush1.bf16.msra.mxu0 0
        %377 = vmatprep.subr.bf16.mxu0 0
        %378 = vmatpush1.bf16.msra.mxu0 0
        %379 = vmatprep.subr.bf16.mxu0 0
        %380 = vmatpush1.bf16.msra.mxu0 0
        %381 = vmatprep.subr.bf16.mxu0 0
        %382 = vmatpush1.bf16.msra.mxu0 0
        %383 = vmatprep.subr.bf16.mxu0 0
        %384 = vmatpush1.bf16.msra.mxu0 0
        %385 = vmatprep.subr.bf16.mxu0 0
        %386 = vmatpush1.bf16.msra.mxu0 0
        %387 = vmatprep.subr.bf16.mxu0 0
        %388 = vmatpush1.bf16.msra.mxu0 0
        %389 = vmatprep.subr.bf16.mxu0 0
        %390 = vmatpush1.bf16.msra.mxu0 0
        %391 = vmatprep.subr.bf16.mxu0 0
        %392 = vmatpush1.bf16.msra.mxu0 0
        %393 = vmatprep.subr.bf16.mxu0 0
        %394 = vmatpush1.bf16.msra.mxu0 0
        %395 = vmatprep.subr.bf16.mxu0 0
        %396 = vmatpush1.bf16.msra.mxu0 0
        %397 = vmatprep.subr.bf16.mxu0 0
        %398 = vmatpush1.bf16.msra.mxu0 0
        %399 = vmatprep.subr.bf16.mxu0 0
        %400 = vmatpush1.bf16.msra.mxu0 0
        %401 = vmatprep.mubr.bf16.mxu0 0
        %402 = vmatmul.mubr.bf16.gmra.mrb[0].mxu0 %v342
        %v403 = vpop.f32.mrb[0].mxu0
        %v404 = vadd.f32 %v298, %v403
        %v405 = vpop.f32.mrb[0].mxu0
        %v406 = vpop.f32.mrb[0].mxu0
        %v407 = vadd.f32 %v298, %v406
        %v408 = vpop.f32.mrb[0].mxu0
        %409 = vmatprep.mubr.bf16.mxu0 0
        %410 = vmatmul.mubr.bf16.gmra.mrb[0].mxu0 %v345
        %v411 = vpop.f32.mrb[0].mxu0
        %v412 = vadd.f32 %v298, %v411
        %v413 = vpop.f32.mrb[0].mxu0
        %v414 = vpop.f32.mrb[0].mxu0
        %v415 = vadd.f32 %v298, %v414
        %v416 = vpop.f32.mrb[0].mxu0
        %417 = vmatprep.mubr.bf16.mxu0 0
        %418 = vmatmul.mubr.bf16.gmra.mrb[0].mxu0 %v348
        %v419 = vpop.f32.mrb[0].mxu0
        %v420 = vadd.f32 %v298, %v419
        %v421 = vpop.f32.mrb[0].mxu0
        %v422 = vpop.f32.mrb[0].mxu0
        %v423 = vadd.f32 %v298, %v422
        %v424 = vpop.f32.mrb[0].mxu0
        %425 = vmatprep.mubr.bf16.mxu0 0
        %426 = vmatmul.mubr.bf16.gmra.mrb[0].mxu0 %v351
        %v427 = vpop.f32.mrb[0].mxu0
        %v428 = vadd.f32 %v298, %v427
        %v429 = vpop.f32.mrb[0].mxu0
        %v430 = vpop.f32.mrb[0].mxu0
        %v431 = vadd.f32 %v298, %v430
        %v432 = vpop.f32.mrb[0].mxu0
        %433 = vmatprep.mubr.bf16.mxu0 0
        %434 = vmatmul.mubr.bf16.gmra.mrb[0].mxu0 %v354
        %v435 = vpop.f32.mrb[0].mxu0
        %v436 = vadd.f32 %v298, %v435
        %v437 = vpop.f32.mrb[0].mxu0
        %v438 = vpop.f32.mrb[0].mxu0
        %v439 = vadd.f32 %v298, %v438
        %v440 = vpop.f32.mrb[0].mxu0
        %441 = vmatprep.mubr.bf16.mxu0 0
        %442 = vmatmul.mubr.bf16.gmra.mrb[0].mxu0 %v357
        %v443 = vpop.f32.mrb[0].mxu0
        %v444 = vadd.f32 %v298, %v443
        %v445 = vpop.f32.mrb[0].mxu0
        %v446 = vpop.f32.mrb[0].mxu0
        %v447 = vadd.f32 %v298, %v446
        %v448 = vpop.f32.mrb[0].mxu0
        %449 = vmatprep.mubr.bf16.mxu0 0
        %450 = vmatmul.mubr.bf16.gmra.mrb[0].mxu0 %v360
        %v451 = vpop.f32.mrb[0].mxu0
        %v452 = vadd.f32 %v298, %v451
        %v453 = vpop.f32.mrb[0].mxu0
        %v454 = vpop.f32.mrb[0].mxu0
        %v455 = vadd.f32 %v298, %v454
        %v456 = vpop.f32.mrb[0].mxu0
        %457 = vmatprep.mubr.bf16.mxu0 0
        %458 = vmatmul.mubr.bf16.gmra.mrb[0].mxu0 %v363
        %v459 = vpop.f32.mrb[0].mxu0
        %v460 = vadd.f32 %v298, %v459
        %v461 = vpop.f32.mrb[0].mxu0
        %v462 = vpop.f32.mrb[0].mxu0
        %v463 = vadd.f32 %v298, %v462
        %v464 = vpop.f32.mrb[0].mxu0
        %465 = vdwg.mxu0
        %v466 = vld [vmem:[%s272] sm:$0xf]
        %v467 = vld [vmem:[%s272 + $0x4] sm:$0xf]
        %v468 = vld [vmem:[%s272 + $0x8] sm:$0xf]
        %v469 = vld [vmem:[%s272 + $0xc] sm:$0xf]
        %v470 = vld [vmem:[%s272 + $0x10] sm:$0xf]
        %v471 = vld [vmem:[%s272 + $0x14] sm:$0xf]
        %v472 = vld [vmem:[%s272 + $0x18] sm:$0xf]
        %v473 = vld [vmem:[%s272 + $0x1c] sm:$0xf]
        %v474 = vld [vmem:[%s272 + $0x20] sm:$0xf]
        %v475 = vld [vmem:[%s272 + $0x24] sm:$0xf]
        %v476 = vld [vmem:[%s272 + $0x28] sm:$0xf]
        %v477 = vld [vmem:[%s272 + $0x2c] sm:$0xf]
        %v478 = vld [vmem:[%s272 + $0x30] sm:$0xf]
        %v479 = vld [vmem:[%s272 + $0x34] sm:$0xf]
        %v480 = vld [vmem:[%s272 + $0x38] sm:$0xf]
        %v481 = vld [vmem:[%s272 + $0x3c] sm:$0xf]
        %v482 = vld [vmem:[%s4] sm:$0xf]
        %v483 = vld [vmem:[%s4 + $0x4] sm:$0xf]
        %v484 = vld [vmem:[%s5] sm:$0x1]
        %v486 = vlaneseq
        %v487 = vshrl.u32 %v486, 7
        %v488 = vsub.s32 0, %v487
        %v489 = vrot.slane %v484, %v488
        %v507 = vunpack.c.l.b16 %v466
        %v508 = vunpack.c.l.b16 %v467
        %v509 = vunpack.c.l.b16 %v468
        %v510 = vunpack.c.l.b16 %v469
        %v511 = vunpack.c.l.b16 %v470
        %v512 = vunpack.c.l.b16 %v471
        %v513 = vunpack.c.l.b16 %v472
        %v514 = vunpack.c.l.b16 %v473
        %v515 = vunpack.c.l.b16 %v474
        %v516 = vunpack.c.l.b16 %v475
        %v517 = vunpack.c.l.b16 %v476
        %v518 = vunpack.c.l.b16 %v477
        %v519 = vunpack.c.l.b16 %v478
        %v520 = vunpack.c.l.b16 %v479
        %v521 = vunpack.c.l.b16 %v480
        %v522 = vunpack.c.l.b16 %v481
        %v523 = vpack.c.b16 %v508, %v507
        %v524 = vpack.c.b16 %v510, %v509
        %v525 = vpack.c.b16 %v512, %v511
        %v526 = vpack.c.b16 %v514, %v513
        %v527 = vpack.c.b16 %v516, %v515
        %v528 = vpack.c.b16 %v518, %v517
        %v529 = vpack.c.b16 %v520, %v519
        %v530 = vpack.c.b16 %v522, %v521
        %v533 = vunpack.c.l.b16 %v482
        %v534 = vunpack.c.l.b16 %v483
        %v535 = vpack.c.b16 %v534, %v533
        %vm537 = vcmask 130048
        %v539 = vsel %vm537, %v523, 0
        %v542 = vsel %vm537, %v524, 0
        %v545 = vsel %vm537, %v525, 0
        %v548 = vsel %vm537, %v526, 0
        %v551 = vsel %vm537, %v527, 0
        %v554 = vsel %vm537, %v528, 0
        %v557 = vsel %vm537, %v529, 0
        %v560 = vsel %vm537, %v530, 0
        %562 = vmatprep.subr.bf16.mxu0 0
        %563 = vmatpush1.bf16.msra.mxu0 %v535
        %564 = vmatprep.subr.bf16.mxu0 0
        %565 = vmatpush1.bf16.msra.mxu0 0
        %566 = vmatprep.subr.bf16.mxu0 0
        %567 = vmatpush1.bf16.msra.mxu0 0
        %568 = vmatprep.subr.bf16.mxu0 0
        %569 = vmatpush1.bf16.msra.mxu0 0
        %570 = vmatprep.subr.bf16.mxu0 0
        %571 = vmatpush1.bf16.msra.mxu0 0
        %572 = vmatprep.subr.bf16.mxu0 0
        %573 = vmatpush1.bf16.msra.mxu0 0
        %574 = vmatprep.subr.bf16.mxu0 0
        %575 = vmatpush1.bf16.msra.mxu0 0
        %576 = vmatprep.subr.bf16.mxu0 0
        %577 = vmatpush1.bf16.msra.mxu0 0
        %578 = vmatprep.subr.bf16.mxu0 0
        %579 = vmatpush1.bf16.msra.mxu0 0
        %580 = vmatprep.subr.bf16.mxu0 0
        %581 = vmatpush1.bf16.msra.mxu0 0
        %582 = vmatprep.subr.bf16.mxu0 0
        %583 = vmatpush1.bf16.msra.mxu0 0
        %584 = vmatprep.subr.bf16.mxu0 0
        %585 = vmatpush1.bf16.msra.mxu0 0
        %586 = vmatprep.subr.bf16.mxu0 0
        %587 = vmatpush1.bf16.msra.mxu0 0
        %588 = vmatprep.subr.bf16.mxu0 0
        %589 = vmatpush1.bf16.msra.mxu0 0
        %590 = vmatprep.subr.bf16.mxu0 0
        %591 = vmatpush1.bf16.msra.mxu0 0
        %592 = vmatprep.subr.bf16.mxu0 0
        %593 = vmatpush1.bf16.msra.mxu0 0
        %594 = vmatprep.mubr.bf16.mxu0 0
        %595 = vmatmul.mubr.bf16.gmra.mrb[0].mxu0 %v539
        %v596 = vpop.f32.mrb[0].mxu0
        %v597 = vadd.f32 %v489, %v596
        %v598 = vpop.f32.mrb[0].mxu0
        %v599 = vpop.f32.mrb[0].mxu0
        %v600 = vadd.f32 %v489, %v599
        %v601 = vpop.f32.mrb[0].mxu0
        %602 = vmatprep.mubr.bf16.mxu0 0
        %603 = vmatmul.mubr.bf16.gmra.mrb[0].mxu0 %v542
        %v604 = vpop.f32.mrb[0].mxu0
        %v605 = vadd.f32 %v489, %v604
        %v606 = vpop.f32.mrb[0].mxu0
        %v607 = vpop.f32.mrb[0].mxu0
        %v608 = vadd.f32 %v489, %v607
        %v609 = vpop.f32.mrb[0].mxu0
        %610 = vmatprep.mubr.bf16.mxu0 0
        %611 = vmatmul.mubr.bf16.gmra.mrb[0].mxu0 %v545
        %v612 = vpop.f32.mrb[0].mxu0
        %v613 = vadd.f32 %v489, %v612
        %v614 = vpop.f32.mrb[0].mxu0
        %v615 = vpop.f32.mrb[0].mxu0
        %v616 = vadd.f32 %v489, %v615
        %v617 = vpop.f32.mrb[0].mxu0
        %618 = vmatprep.mubr.bf16.mxu0 0
        %619 = vmatmul.mubr.bf16.gmra.mrb[0].mxu0 %v548
        %v620 = vpop.f32.mrb[0].mxu0
        %v621 = vadd.f32 %v489, %v620
        %v622 = vpop.f32.mrb[0].mxu0
        %v623 = vpop.f32.mrb[0].mxu0
        %v624 = vadd.f32 %v489, %v623
        %v625 = vpop.f32.mrb[0].mxu0
        %626 = vmatprep.mubr.bf16.mxu0 0
        %627 = vmatmul.mubr.bf16.gmra.mrb[0].mxu0 %v551
        %v628 = vpop.f32.mrb[0].mxu0
        %v629 = vadd.f32 %v489, %v628
        %v630 = vpop.f32.mrb[0].mxu0
        %v631 = vpop.f32.mrb[0].mxu0
        %v632 = vadd.f32 %v489, %v631
        %v633 = vpop.f32.mrb[0].mxu0
        %634 = vmatprep.mubr.bf16.mxu0 0
        %635 = vmatmul.mubr.bf16.gmra.mrb[0].mxu0 %v554
        %v636 = vpop.f32.mrb[0].mxu0
        %v637 = vadd.f32 %v489, %v636
        %v638 = vpop.f32.mrb[0].mxu0
        %v639 = vpop.f32.mrb[0].mxu0
        %v640 = vadd.f32 %v489, %v639
        %v641 = vpop.f32.mrb[0].mxu0
        %642 = vmatprep.mubr.bf16.mxu0 0
        %643 = vmatmul.mubr.bf16.gmra.mrb[0].mxu0 %v557
        %v644 = vpop.f32.mrb[0].mxu0
        %v645 = vadd.f32 %v489, %v644
        %v646 = vpop.f32.mrb[0].mxu0
        %v647 = vpop.f32.mrb[0].mxu0
        %v648 = vadd.f32 %v489, %v647
        %v649 = vpop.f32.mrb[0].mxu0
        %650 = vmatprep.mubr.bf16.mxu0 0
        %651 = vmatmul.mubr.bf16.gmra.mrb[0].mxu0 %v560
        %v652 = vpop.f32.mrb[0].mxu0
        %v653 = vadd.f32 %v489, %v652
        %v654 = vpop.f32.mrb[0].mxu0
        %v655 = vpop.f32.mrb[0].mxu0
        %v656 = vadd.f32 %v489, %v655
        %v657 = vpop.f32.mrb[0].mxu0
        %658 = vdwg.mxu0
        %v659 = vadd.f32 %v404, %v597
        %v660 = vadd.f32 %v407, %v600
        %v661 = vadd.f32 %v412, %v605
        %v662 = vadd.f32 %v415, %v608
        %v663 = vadd.f32 %v420, %v613
        %v664 = vadd.f32 %v423, %v616
        %v665 = vadd.f32 %v428, %v621
        %v666 = vadd.f32 %v431, %v624
        %v667 = vadd.f32 %v436, %v629
        %v668 = vadd.f32 %v439, %v632
        %v669 = vadd.f32 %v444, %v637
        %v670 = vadd.f32 %v447, %v640
        %v671 = vadd.f32 %v452, %v645
        %v672 = vadd.f32 %v455, %v648
        %v673 = vadd.f32 %v460, %v653
        %v674 = vadd.f32 %v463, %v656
        %v675 = vmax.f32 %v659, 0.0
        %v676 = vmax.f32 %v660, 0.0
        %v677 = vmax.f32 %v661, 0.0
        %v678 = vmax.f32 %v662, 0.0
        %v679 = vmax.f32 %v663, 0.0
        %v680 = vmax.f32 %v664, 0.0
        %v681 = vmax.f32 %v665, 0.0
        %v682 = vmax.f32 %v666, 0.0
        %v683 = vmax.f32 %v667, 0.0
        %v684 = vmax.f32 %v668, 0.0
        %v685 = vmax.f32 %v669, 0.0
        %v686 = vmax.f32 %v670, 0.0
        %v687 = vmax.f32 %v671, 0.0
        %v688 = vmax.f32 %v672, 0.0
        %v689 = vmax.f32 %v673, 0.0
        %v690 = vmax.f32 %v674, 0.0
        %vm691 = vcmask 261120
        %692 = vst.msk [vmem:[%s261] sm:$0xff] %vm691, %v675
        %693 = vst.msk [vmem:[%s261 + $0x8] sm:$0xff] %vm691, %v676
        %694 = vst.msk [vmem:[%s261 + $0x10] sm:$0xff] %vm691, %v677
        %695 = vst.msk [vmem:[%s261 + $0x18] sm:$0xff] %vm691, %v678
        %696 = vst.msk [vmem:[%s261 + $0x20] sm:$0xff] %vm691, %v679
        %697 = vst.msk [vmem:[%s261 + $0x28] sm:$0xff] %vm691, %v680
        %698 = vst.msk [vmem:[%s261 + $0x30] sm:$0xff] %vm691, %v681
        %699 = vst.msk [vmem:[%s261 + $0x38] sm:$0xff] %vm691, %v682
        %700 = vst.msk [vmem:[%s261 + $0x40] sm:$0xff] %vm691, %v683
        %701 = vst.msk [vmem:[%s261 + $0x48] sm:$0xff] %vm691, %v684
        %702 = vst.msk [vmem:[%s261 + $0x50] sm:$0xff] %vm691, %v685
        %703 = vst.msk [vmem:[%s261 + $0x58] sm:$0xff] %vm691, %v686
        %704 = vst.msk [vmem:[%s261 + $0x60] sm:$0xff] %vm691, %v687
        %705 = vst.msk [vmem:[%s261 + $0x68] sm:$0xff] %vm691, %v688
        %706 = vst.msk [vmem:[%s261 + $0x70] sm:$0xff] %vm691, %v689
        %707 = vst.msk [vmem:[%s261 + $0x78] sm:$0xff] %vm691, %v690
        %s708 = sand.u32 %s164, 1
        %s709 = scalar_lea.sflag [#allocation3], %s708
        %s710 = sand.u32 %s164, 1
        %s711 = smul.addr %s710, 128
        %s712 = scalar_lea.vmem [#allocation2], %s711
        // Predicated region
        $region45: #{bottleneck_block.5} parent=43 // pred_check
          %p713 = pneg %p174
        $region46: #{bottleneck_block.5} parent=43 // pred_check_branch
          %715 = sbr.rel (%p713) target = $region48
        $region47: #{bottleneck_block.5} parent=43 // pred_region
          %s716 = smul.u32 16, %s20
          %s718 = ssub.s32 2048, 2048
          %719 = vsyncadd %s709, %s718
          %s720 = smul.addr %s716, 128
          %s721 = scalar_lea.hbm %s6, %s720
          %s722 = sshll.u32 %s712, 4
          %s723 = int_to_ptr.vmem [resolvable:$true] %s722
          %728 = dma.vmem_to_hbm [thread:$0]  %s723, 2048, %s721, %s709, 128, 128, 8
        $region48: #{bottleneck_block.5} parent=43 // pred_fallthru
          _
      $region44: #{bottleneck_block.5} parent=5 // pred_fallthru
        _
      %p729 = scmp.le.s32.totalorder 2, %s15
      // Predicated region
      $region49: #{bottleneck_block.5} parent=5 // pred_check
        %p730 = pneg %p729
      $region50: #{bottleneck_block.5} parent=5 // pred_check_branch
        %732 = sbr.rel (%p730) target = $region52
      $region51: #{bottleneck_block.5} parent=5 // pred_region
        %s733 = ssub.s32 %s15, 2
        // Predicated region
        $region53: #{bottleneck_block.5} parent=51 // pred_check
          %p734 = pneg %p180
        $region54: #{bottleneck_block.5} parent=51 // pred_check_branch
          %736 = sbr.rel (%p734) target = $region56
        $region55: #{bottleneck_block.5} parent=51 // pred_region
          %s737 = sand.u32 %s165, 1
          %s738 = scalar_lea.sflag [#allocation3], %s737
          %s739 = sand.u32 %s165, 1
          %s740 = smul.addr %s739, 128
          %s741 = scalar_lea.vmem [#allocation2], %s740
          %742 = dma.done %s738, 2048
        $region56: #{bottleneck_block.5} parent=51 // pred_fallthru
          _
      $region52: #{bottleneck_block.5} parent=5 // pred_fallthru
        _
    $region6: #{bottleneck_block.5} parent=1 // loop_footer
      %s19 = sadd.s32 1, %s15
    $region7: #{bottleneck_block.5} parent=1 // loop_footer_branch
      %14 = sbr.rel target = $region3
    $region8: #{bottleneck_block.5} parent=1 // loop_exit
      _
    %743 = vsyncpa [#allocation3], 1
    %s744 = scalar_lea.sflag [#allocation3], 1
    %745 = vsyncpa %s744, 1

// kernel: bottleneck_block.4
$region0: #{bottleneck_block.4}
  #allocation0 [shape = 'u32[]', space=smem, size = 0x4, offset = 0x4, fixed_abs, tag = 'smem constant byte address 0x4 - core index']
  #allocation1 [shape = 'u32[144,128]{1,0:T(1,128)}', space=vmem, size = 0x12000, scoped, tag = 'internal scratch']
  #allocation2 [shape = 'bf16[18,16,24]{2,1,0:T(16,128)(2,1)}', space=vmem, size = 0x12000, scoped, tag = 'scratch operand']
  #allocation3 [shape = 'f32[256,8]{1,0:T(8,128)}', space=vmem, size = 0x20000, scoped, tag = 'scratch operand']
  %s0 = inlined_call_operand.vmem [shape: bf16[2,16,16,8], index: 0, kind: input, shape index: {}]
  %s1 = inlined_call_operand.vmem [shape: bf16[3,24,8], index: 1, kind: input, shape index: {}]
  %s2 = inlined_call_operand.vmem [shape: f32[1,8], index: 2, kind: input, shape index: {}]
  %s3 = inlined_call_operand.vmem [shape: bf16[2,256,8], index: 3, kind: output, shape index: {}]
  %s4 = sld [smem:[#allocation0]]
  $region45: #{bottleneck_block.4} parent=0
    _
  %s6 = ssub.s32 1, %s4
  %s7 = scalar_select 0, %s6, %s4
  loop: start=0, step=1, limit=4
  $region2: #{bottleneck_block.4} parent=0 // loop_pre_header
    _
  $region3: #{bottleneck_block.4} parent=0 // loop_header
    %s9 = sphi 0, %s13
    %p10 = scmp.ge.s32.totalorder %s9, 4
    %s19 = sphi 0, %s21
    %s22 = sphi 0, %s19
    %s23 = sphi 0, %s22
    %s39 = sphi 0, %s23
    %s43 = sphi 0, %s43
    %s45 = sphi 0, %s43
    %s46 = sphi 0, %s45
    %s60 = sphi 0, %s46
    %s64 = sphi 0, %s64
    %s66 = sphi 0, %s64
    %s67 = sphi 0, %s66
    %s81 = sphi 0, %s67
    %s87 = sphi 0, %s89
    %s90 = sphi 0, %s87
    %s91 = sphi 0, %s90
    %s107 = sphi 0, %s91
  $region4: #{bottleneck_block.4} parent=0 // loop_header_branch
    %12 = sbr.rel (%p10) target = $region8
  $region5: #{bottleneck_block.4} parent=0 // loop_body
    %s14 = ssub.s32 %s9, 1
    %s15 = ssub.s32 %s9, 2
    %s16 = sadd.s32 %s9, 1
    %s17 = ssub.s32 %s9, %s16
    %p18 = scmp.eq.s32.totalorder %s17, 0
    %s20 = sadd.s32 %s19, 1
    %s21 = scalar_select %p18, %s19, %s20
    %p24 = pneg %p18
    %p25 = scmp.eq.s32.totalorder %s9, 1
    %p26 = por %p24, %p25
    %p27 = scmp.ne.s32.totalorder %s19, %s22
    %p28 = scmp.eq.s32.totalorder %s9, 0
    %p29 = por %p27, %p28
    %p30 = scmp.ne.s32.totalorder %s19, %s22
    %p31 = scmp.eq.s32.totalorder %s14, 1
    %p32 = por %p30, %p31
    %p33 = scmp.ne.s32.totalorder %s22, %s23
    %p34 = scmp.eq.s32.totalorder %s14, 0
    %p35 = por %p33, %p34
    %p36 = scmp.ne.s32.totalorder %s22, %s23
    %p37 = scmp.eq.s32.totalorder %s15, 1
    %p38 = por %p36, %p37
    %p40 = scmp.ne.s32.totalorder %s23, %s39
    %p41 = scmp.eq.s32.totalorder %s15, 0
    %p42 = por %p40, %p41
    %s44 = sadd.s32 %s43, 1
    %p47 = scmp.eq.s32.totalorder %s9, 1
    %p48 = scmp.ne.s32.totalorder %s43, %s45
    %p49 = scmp.eq.s32.totalorder %s9, 0
    %p50 = por %p48, %p49
    %p51 = scmp.ne.s32.totalorder %s43, %s45
    %p52 = scmp.eq.s32.totalorder %s14, 1
    %p53 = por %p51, %p52
    %p54 = scmp.ne.s32.totalorder %s45, %s46
    %p55 = scmp.eq.s32.totalorder %s14, 0
    %p56 = por %p54, %p55
    %p57 = scmp.ne.s32.totalorder %s45, %s46
    %p58 = scmp.eq.s32.totalorder %s15, 1
    %p59 = por %p57, %p58
    %p61 = scmp.ne.s32.totalorder %s46, %s60
    %p62 = scmp.eq.s32.totalorder %s15, 0
    %p63 = por %p61, %p62
    %s65 = sadd.s32 %s64, 1
    %p68 = scmp.eq.s32.totalorder %s9, 1
    %p69 = scmp.ne.s32.totalorder %s64, %s66
    %p70 = scmp.eq.s32.totalorder %s9, 0
    %p71 = por %p69, %p70
    %p72 = scmp.ne.s32.totalorder %s64, %s66
    %p73 = scmp.eq.s32.totalorder %s14, 1
    %p74 = por %p72, %p73
    %p75 = scmp.ne.s32.totalorder %s66, %s67
    %p76 = scmp.eq.s32.totalorder %s14, 0
    %p77 = por %p75, %p76
    %p78 = scmp.ne.s32.totalorder %s66, %s67
    %p79 = scmp.eq.s32.totalorder %s15, 1
    %p80 = por %p78, %p79
    %p82 = scmp.ne.s32.totalorder %s67, %s81
    %p83 = scmp.eq.s32.totalorder %s15, 0
    %p84 = por %p82, %p83
    %s85 = ssub.s32 %s9, %s16
    %p86 = scmp.eq.s32.totalorder %s85, 0
    %s88 = sadd.s32 %s87, 1
    %s89 = scalar_select %p86, %s87, %s88
    %p92 = pneg %p86
    %p93 = scmp.eq.s32.totalorder %s9, 1
    %p94 = por %p92, %p93
    %p95 = scmp.ne.s32.totalorder %s87, %s90
    %p96 = scmp.eq.s32.totalorder %s9, 0
    %p97 = por %p95, %p96
    %p98 = scmp.ne.s32.totalorder %s87, %s90
    %p99 = scmp.eq.s32.totalorder %s14, 1
    %p100 = por %p98, %p99
    %p101 = scmp.ne.s32.totalorder %s90, %s91
    %p102 = scmp.eq.s32.totalorder %s14, 0
    %p103 = por %p101, %p102
    %p104 = scmp.ne.s32.totalorder %s90, %s91
    %p105 = scmp.eq.s32.totalorder %s15, 1
    %p106 = por %p104, %p105
    %p108 = scmp.ne.s32.totalorder %s91, %s107
    %p109 = scmp.eq.s32.totalorder %s15, 0
    %p110 = por %p108, %p109
    %p111 = scmp.le.s32.totalorder 1, %s9
    %p112 = scmp.lt.s32.totalorder %s9, 3
    %p113 = pnand %p111, %p112
    %p114 = pneg %p113
    // Predicated region
    $region9: #{bottleneck_block.4} parent=5 // pred_check
      _
    $region10: #{bottleneck_block.4} parent=5 // pred_check_branch
      %116 = sbr.rel (%p113) target = $region12
    $region11: #{bottleneck_block.4} parent=5 // pred_region
      %s117 = ssub.s32 %s9, 1
      // Predicated region
      $region13: #{bottleneck_block.4} parent=11 // pred_check
        %p118 = pneg %p56
      $region14: #{bottleneck_block.4} parent=11 // pred_check_branch
        %120 = sbr.rel (%p118) target = $region16
      $region15: #{bottleneck_block.4} parent=11 // pred_region
        _
      $region16: #{bottleneck_block.4} parent=11 // pred_fallthru
        _
      // Predicated region
      $region17: #{bottleneck_block.4} parent=11 // pred_check
        %p121 = pneg %p77
      $region18: #{bottleneck_block.4} parent=11 // pred_check_branch
        %123 = sbr.rel (%p121) target = $region20
      $region19: #{bottleneck_block.4} parent=11 // pred_region
        _
      $region20: #{bottleneck_block.4} parent=11 // pred_fallthru
        _
    $region12: #{bottleneck_block.4} parent=5 // pred_fallthru
      _
    %p124 = scmp.lt.s32.totalorder %s9, 2
    // Predicated region
    $region21: #{bottleneck_block.4} parent=5 // pred_check
      %p125 = pneg %p124
    $region22: #{bottleneck_block.4} parent=5 // pred_check_branch
      %127 = sbr.rel (%p125) target = $region24
    $region23: #{bottleneck_block.4} parent=5 // pred_region
      // Predicated region
      $region25: #{bottleneck_block.4} parent=23 // pred_check
        %p128 = pneg %p29
      $region26: #{bottleneck_block.4} parent=23 // pred_check_branch
        %130 = sbr.rel (%p128) target = $region28
      $region27: #{bottleneck_block.4} parent=23 // pred_region
        %p131 = scmp.lt.s32.totalorder %s9, 1
        %s132 = scalar_select %p131, %s9, 1
        %s133 = smul.addr %s132, 32
        %s134 = smul.addr %s133, 4
        %s135 = scalar_lea.vmem %s0, %s134
      $region28: #{bottleneck_block.4} parent=23 // pred_fallthru
        _
    $region24: #{bottleneck_block.4} parent=5 // pred_fallthru
      _
    %p136 = scmp.le.s32.totalorder 1, %s9
    %p137 = scmp.lt.s32.totalorder %s9, 3
    %p138 = pnand %p136, %p137
    %p139 = pneg %p138
    // Predicated region
    $region29: #{bottleneck_block.4} parent=5 // pred_check
      _
    $region30: #{bottleneck_block.4} parent=5 // pred_check_branch
      %141 = sbr.rel (%p138) target = $region32
    $region31: #{bottleneck_block.4} parent=5 // pred_region
      %s142 = ssub.s32 %s9, 1
      %p143 = scmp.lt.s32.totalorder %s14, 1
      %s144 = scalar_select %p143, %s14, 1
      %s145 = smul.addr %s144, 32
      %s146 = smul.addr %s145, 4
      %s147 = scalar_lea.vmem %s0, %s146
      %p148 = pneg %p35
      %p149 = pneg %p32
      %p150 = pneg %p56
      %p151 = pneg %p53
      %p152 = pneg %p77
      %p153 = pneg %p74
      %p154 = pneg %p103
      %p155 = pneg %p100
      %p156 = scmp.lt.s32.totalorder %s14, 1
      %s157 = scalar_select %p156, %s14, 1
      %s158 = smul.addr %s157, 32
      %s159 = smul.addr %s158, 4
      %s160 = scalar_lea.vmem %s3, %s159
      %p161 = scmp.lt.s32.totalorder %s14, 1
      %s162 = scalar_select %p161, %s14, 1
      %s163 = smul.addr %s162, 32
      %s164 = smul.addr %s163, 4
      %s165 = scalar_lea.vmem %s0, %s164
      %p166 = scmp.lt.s32.totalorder %s14, 1
      %s167 = scalar_select %p166, %s14, 1
      %s168 = smul.addr %s167, 32
      %s169 = smul.addr %s168, 4
      %s170 = scalar_lea.vmem %s3, %s169
      %v172 = vld [vmem:[%s165] sm:$0xf]
      %v173 = vld [vmem:[%s165 + $0x4] sm:$0xf]
      %v174 = vld [vmem:[%s165 + $0x8] sm:$0xf]
      %v175 = vld [vmem:[%s165 + $0xc] sm:$0xf]
      %v176 = vld [vmem:[%s165 + $0x10] sm:$0xf]
      %v177 = vld [vmem:[%s165 + $0x14] sm:$0xf]
      %v178 = vld [vmem:[%s165 + $0x18] sm:$0xf]
      %v179 = vld [vmem:[%s165 + $0x1c] sm:$0xf]
      %v180 = vld [vmem:[%s165 + $0x20] sm:$0xf]
      %v181 = vld [vmem:[%s165 + $0x24] sm:$0xf]
      %v182 = vld [vmem:[%s165 + $0x28] sm:$0xf]
      %v183 = vld [vmem:[%s165 + $0x2c] sm:$0xf]
      %v184 = vld [vmem:[%s165 + $0x30] sm:$0xf]
      %v185 = vld [vmem:[%s165 + $0x34] sm:$0xf]
      %v186 = vld [vmem:[%s165 + $0x38] sm:$0xf]
      %v187 = vld [vmem:[%s165 + $0x3c] sm:$0xf]
      %v188 = vld [vmem:[%s165 + $0x40] sm:$0xf]
      %v189 = vld [vmem:[%s165 + $0x44] sm:$0xf]
      %v190 = vld [vmem:[%s165 + $0x48] sm:$0xf]
      %v191 = vld [vmem:[%s165 + $0x4c] sm:$0xf]
      %v192 = vld [vmem:[%s165 + $0x50] sm:$0xf]
      %v193 = vld [vmem:[%s165 + $0x54] sm:$0xf]
      %v194 = vld [vmem:[%s165 + $0x58] sm:$0xf]
      %v195 = vld [vmem:[%s165 + $0x5c] sm:$0xf]
      %v196 = vld [vmem:[%s165 + $0x60] sm:$0xf]
      %v197 = vld [vmem:[%s165 + $0x64] sm:$0xf]
      %v198 = vld [vmem:[%s165 + $0x68] sm:$0xf]
      %v199 = vld [vmem:[%s165 + $0x6c] sm:$0xf]
      %v200 = vld [vmem:[%s165 + $0x70] sm:$0xf]
      %v201 = vld [vmem:[%s165 + $0x74] sm:$0xf]
      %v202 = vld [vmem:[%s165 + $0x78] sm:$0xf]
      %v203 = vld [vmem:[%s165 + $0x7c] sm:$0xf]
      %vm204 = vcmask 195584
      %205 = vst.msk [vmem:[#allocation2] sm:$0xff] %vm204, 0
      %s206 = scalar_lea.vmem [#allocation2], 136
      %207 = vst.msk [vmem:[%s206] sm:$0xff] %vm204, 0
      %s208 = scalar_lea.vmem [#allocation2], 8
      %vm209 = vcmask 57344
      %vm210 = vsmask.f32 256
      %vm211 = vmand %vm209, %vm210
      %v212 = vld [vmem:[%s208] sm:$0x1]
      %v213 = vsel %vm211, 0, %v212
      %214 = vst [vmem:[%s208] sm:$0x1] %v213
      %v215 = vld [vmem:[%s208 + $0x8] sm:$0x1]
      %v216 = vsel %vm211, 0, %v215
      %217 = vst [vmem:[%s208 + $0x8] sm:$0x1] %v216
      %v218 = vld [vmem:[%s208 + $0x10] sm:$0x1]
      %v219 = vsel %vm211, 0, %v218
      %220 = vst [vmem:[%s208 + $0x10] sm:$0x1] %v219
      %v221 = vld [vmem:[%s208 + $0x18] sm:$0x1]
      %v222 = vsel %vm211, 0, %v221
      %223 = vst [vmem:[%s208 + $0x18] sm:$0x1] %v222
      %v224 = vld [vmem:[%s208 + $0x20] sm:$0x1]
      %v225 = vsel %vm211, 0, %v224
      %226 = vst [vmem:[%s208 + $0x20] sm:$0x1] %v225
      %v227 = vld [vmem:[%s208 + $0x28] sm:$0x1]
      %v228 = vsel %vm211, 0, %v227
      %229 = vst [vmem:[%s208 + $0x28] sm:$0x1] %v228
      %v230 = vld [vmem:[%s208 + $0x30] sm:$0x1]
      %v231 = vsel %vm211, 0, %v230
      %232 = vst [vmem:[%s208 + $0x30] sm:$0x1] %v231
      %v233 = vld [vmem:[%s208 + $0x38] sm:$0x1]
      %v234 = vsel %vm211, 0, %v233
      %235 = vst [vmem:[%s208 + $0x38] sm:$0x1] %v234
      %v236 = vld [vmem:[%s208 + $0x40] sm:$0x1]
      %v237 = vsel %vm211, 0, %v236
      %238 = vst [vmem:[%s208 + $0x40] sm:$0x1] %v237
      %v239 = vld [vmem:[%s208 + $0x48] sm:$0x1]
      %v240 = vsel %vm211, 0, %v239
      %241 = vst [vmem:[%s208 + $0x48] sm:$0x1] %v240
      %v242 = vld [vmem:[%s208 + $0x50] sm:$0x1]
      %v243 = vsel %vm211, 0, %v242
      %244 = vst [vmem:[%s208 + $0x50] sm:$0x1] %v243
      %v245 = vld [vmem:[%s208 + $0x58] sm:$0x1]
      %v246 = vsel %vm211, 0, %v245
      %247 = vst [vmem:[%s208 + $0x58] sm:$0x1] %v246
      %v248 = vld [vmem:[%s208 + $0x60] sm:$0x1]
      %v249 = vsel %vm211, 0, %v248
      %250 = vst [vmem:[%s208 + $0x60] sm:$0x1] %v249
      %v251 = vld [vmem:[%s208 + $0x68] sm:$0x1]
      %v252 = vsel %vm211, 0, %v251
      %253 = vst [vmem:[%s208 + $0x68] sm:$0x1] %v252
      %v254 = vld [vmem:[%s208 + $0x70] sm:$0x1]
      %v255 = vsel %vm211, 0, %v254
      %256 = vst [vmem:[%s208 + $0x70] sm:$0x1] %v255
      %v257 = vld [vmem:[%s208 + $0x78] sm:$0x1]
      %v258 = vsel %vm211, 0, %v257
      %259 = vst [vmem:[%s208 + $0x78] sm:$0x1] %v258
      %vm260 = vcmask 195719
      %vm261 = vsmask.f32 7966
      %vm262 = vmand %vm260, %vm261
      %v263 = vld [vmem:[%s208] sm:$0x80]
      %v264 = vsel %vm262, 0, %v263
      %265 = vst [vmem:[%s208] sm:$0x80] %v264
      %v266 = vld [vmem:[%s208 + $0x8] sm:$0x80]
      %v267 = vsel %vm262, 0, %v266
      %268 = vst [vmem:[%s208 + $0x8] sm:$0x80] %v267
      %v269 = vld [vmem:[%s208 + $0x10] sm:$0x80]
      %v270 = vsel %vm262, 0, %v269
      %271 = vst [vmem:[%s208 + $0x10] sm:$0x80] %v270
      %v272 = vld [vmem:[%s208 + $0x18] sm:$0x80]
      %v273 = vsel %vm262, 0, %v272
      %274 = vst [vmem:[%s208 + $0x18] sm:$0x80] %v273
      %v275 = vld [vmem:[%s208 + $0x20] sm:$0x80]
      %v276 = vsel %vm262, 0, %v275
      %277 = vst [vmem:[%s208 + $0x20] sm:$0x80] %v276
      %v278 = vld [vmem:[%s208 + $0x28] sm:$0x80]
      %v279 = vsel %vm262, 0, %v278
      %280 = vst [vmem:[%s208 + $0x28] sm:$0x80] %v279
      %v281 = vld [vmem:[%s208 + $0x30] sm:$0x80]
      %v282 = vsel %vm262, 0, %v281
      %283 = vst [vmem:[%s208 + $0x30] sm:$0x80] %v282
      %v284 = vld [vmem:[%s208 + $0x38] sm:$0x80]
      %v285 = vsel %vm262, 0, %v284
      %286 = vst [vmem:[%s208 + $0x38] sm:$0x80] %v285
      %v287 = vld [vmem:[%s208 + $0x40] sm:$0x80]
      %v288 = vsel %vm262, 0, %v287
      %289 = vst [vmem:[%s208 + $0x40] sm:$0x80] %v288
      %v290 = vld [vmem:[%s208 + $0x48] sm:$0x80]
      %v291 = vsel %vm262, 0, %v290
      %292 = vst [vmem:[%s208 + $0x48] sm:$0x80] %v291
      %v293 = vld [vmem:[%s208 + $0x50] sm:$0x80]
      %v294 = vsel %vm262, 0, %v293
      %295 = vst [vmem:[%s208 + $0x50] sm:$0x80] %v294
      %v296 = vld [vmem:[%s208 + $0x58] sm:$0x80]
      %v297 = vsel %vm262, 0, %v296
      %298 = vst [vmem:[%s208 + $0x58] sm:$0x80] %v297
      %v299 = vld [vmem:[%s208 + $0x60] sm:$0x80]
      %v300 = vsel %vm262, 0, %v299
      %301 = vst [vmem:[%s208 + $0x60] sm:$0x80] %v300
      %v302 = vld [vmem:[%s208 + $0x68] sm:$0x80]
      %v303 = vsel %vm262, 0, %v302
      %304 = vst [vmem:[%s208 + $0x68] sm:$0x80] %v303
      %v305 = vld [vmem:[%s208 + $0x70] sm:$0x80]
      %v306 = vsel %vm262, 0, %v305
      %307 = vst [vmem:[%s208 + $0x70] sm:$0x80] %v306
      %v308 = vld [vmem:[%s208 + $0x78] sm:$0x80]
      %v309 = vsel %vm262, 0, %v308
      %310 = vst [vmem:[%s208 + $0x78] sm:$0x80] %v309
      %v343 = vunpack.c.l.b16 %v172
      %v344 = vunpack.c.l.b16 %v173
      %v345 = vunpack.c.l.b16 %v174
      %v346 = vunpack.c.l.b16 %v175
      %v347 = vunpack.c.l.b16 %v176
      %v348 = vunpack.c.l.b16 %v177
      %v349 = vunpack.c.l.b16 %v178
      %v350 = vunpack.c.l.b16 %v179
      %v351 = vunpack.c.l.b16 %v180
      %v352 = vunpack.c.l.b16 %v181
      %v353 = vunpack.c.l.b16 %v182
      %v354 = vunpack.c.l.b16 %v183
      %v355 = vunpack.c.l.b16 %v184
      %v356 = vunpack.c.l.b16 %v185
      %v357 = vunpack.c.l.b16 %v186
      %v358 = vunpack.c.l.b16 %v187
      %v359 = vunpack.c.l.b16 %v188
      %v360 = vunpack.c.l.b16 %v189
      %v361 = vunpack.c.l.b16 %v190
      %v362 = vunpack.c.l.b16 %v191
      %v363 = vunpack.c.l.b16 %v192
      %v364 = vunpack.c.l.b16 %v193
      %v365 = vunpack.c.l.b16 %v194
      %v366 = vunpack.c.l.b16 %v195
      %v367 = vunpack.c.l.b16 %v196
      %v368 = vunpack.c.l.b16 %v197
      %v369 = vunpack.c.l.b16 %v198
      %v370 = vunpack.c.l.b16 %v199
      %v371 = vunpack.c.l.b16 %v200
      %v372 = vunpack.c.l.b16 %v201
      %v373 = vunpack.c.l.b16 %v202
      %v374 = vunpack.c.l.b16 %v203
      %v375 = vpack.c.b16 %v344, %v343
      %v376 = vpack.c.b16 %v346, %v345
      %v377 = vpack.c.b16 %v348, %v347
      %v378 = vpack.c.b16 %v350, %v349
      %v379 = vpack.c.b16 %v352, %v351
      %v380 = vpack.c.b16 %v354, %v353
      %v381 = vpack.c.b16 %v356, %v355
      %v382 = vpack.c.b16 %v358, %v357
      %v383 = vpack.c.b16 %v360, %v359
      %v384 = vpack.c.b16 %v362, %v361
      %v385 = vpack.c.b16 %v364, %v363
      %v386 = vpack.c.b16 %v366, %v365
      %v387 = vpack.c.b16 %v368, %v367
      %v388 = vpack.c.b16 %v370, %v369
      %v389 = vpack.c.b16 %v372, %v371
      %v390 = vpack.c.b16 %v374, %v373
      %v392 = vshrl.u32 %v375, 16
      %v394 = vrot.slane %v392, 7
      %v395 = vshll.u32 %v375, 16
      %v397 = vor.u32 %v394, %v395
      %v399 = vshrl.u32 %v376, 16
      %v401 = vrot.slane %v399, 7
      %v402 = vshll.u32 %v376, 16
      %v404 = vor.u32 %v401, %v402
      %v406 = vshrl.u32 %v377, 16
      %v408 = vrot.slane %v406, 7
      %v409 = vshll.u32 %v377, 16
      %v411 = vor.u32 %v408, %v409
      %v413 = vshrl.u32 %v378, 16
      %v415 = vrot.slane %v413, 7
      %v416 = vshll.u32 %v378, 16
      %v418 = vor.u32 %v415, %v416
      %v420 = vshrl.u32 %v379, 16
      %v422 = vrot.slane %v420, 7
      %v423 = vshll.u32 %v379, 16
      %v425 = vor.u32 %v422, %v423
      %v427 = vshrl.u32 %v380, 16
      %v429 = vrot.slane %v427, 7
      %v430 = vshll.u32 %v380, 16
      %v432 = vor.u32 %v429, %v430
      %v434 = vshrl.u32 %v381, 16
      %v436 = vrot.slane %v434, 7
      %v437 = vshll.u32 %v381, 16
      %v439 = vor.u32 %v436, %v437
      %v441 = vshrl.u32 %v382, 16
      %v443 = vrot.slane %v441, 7
      %v444 = vshll.u32 %v382, 16
      %v446 = vor.u32 %v443, %v444
      %v448 = vshrl.u32 %v383, 16
      %v450 = vrot.slane %v448, 7
      %v451 = vshll.u32 %v383, 16
      %v453 = vor.u32 %v450, %v451
      %v455 = vshrl.u32 %v384, 16
      %v457 = vrot.slane %v455, 7
      %v458 = vshll.u32 %v384, 16
      %v460 = vor.u32 %v457, %v458
      %v462 = vshrl.u32 %v385, 16
      %v464 = vrot.slane %v462, 7
      %v465 = vshll.u32 %v385, 16
      %v467 = vor.u32 %v464, %v465
      %v469 = vshrl.u32 %v386, 16
      %v471 = vrot.slane %v469, 7
      %v472 = vshll.u32 %v386, 16
      %v474 = vor.u32 %v471, %v472
      %v476 = vshrl.u32 %v387, 16
      %v478 = vrot.slane %v476, 7
      %v479 = vshll.u32 %v387, 16
      %v481 = vor.u32 %v478, %v479
      %v483 = vshrl.u32 %v388, 16
      %v485 = vrot.slane %v483, 7
      %v486 = vshll.u32 %v388, 16
      %v488 = vor.u32 %v485, %v486
      %v490 = vshrl.u32 %v389, 16
      %v492 = vrot.slane %v490, 7
      %v493 = vshll.u32 %v389, 16
      %v495 = vor.u32 %v492, %v493
      %v497 = vshrl.u32 %v390, 16
      %v499 = vrot.slane %v497, 7
      %v500 = vshll.u32 %v390, 16
      %v502 = vor.u32 %v499, %v500
      %vm519 = vcmask 64512
      %vm520 = vsmask.f32 7938
      %vm521 = vmand %vm519, %vm520
      %v522 = vld [vmem:[%s208] sm:$0xff]
      %v523 = vsel %vm521, %v397, %v522
      %524 = vst [vmem:[%s208] sm:$0xff] %v523
      %v525 = vld [vmem:[%s208 + $0x8] sm:$0xff]
      %v526 = vsel %vm521, %v404, %v525
      %527 = vst [vmem:[%s208 + $0x8] sm:$0xff] %v526
      %v528 = vld [vmem:[%s208 + $0x10] sm:$0xff]
      %v529 = vsel %vm521, %v411, %v528
      %530 = vst [vmem:[%s208 + $0x10] sm:$0xff] %v529
      %v531 = vld [vmem:[%s208 + $0x18] sm:$0xff]
      %v532 = vsel %vm521, %v418, %v531
      %533 = vst [vmem:[%s208 + $0x18] sm:$0xff] %v532
      %v534 = vld [vmem:[%s208 + $0x20] sm:$0xff]
      %v535 = vsel %vm521, %v425, %v534
      %536 = vst [vmem:[%s208 + $0x20] sm:$0xff] %v535
      %v537 = vld [vmem:[%s208 + $0x28] sm:$0xff]
      %v538 = vsel %vm521, %v432, %v537
      %539 = vst [vmem:[%s208 + $0x28] sm:$0xff] %v538
      %v540 = vld [vmem:[%s208 + $0x30] sm:$0xff]
      %v541 = vsel %vm521, %v439, %v540
      %542 = vst [vmem:[%s208 + $0x30] sm:$0xff] %v541
      %v543 = vld [vmem:[%s208 + $0x38] sm:$0xff]
      %v544 = vsel %vm521, %v446, %v543
      %545 = vst [vmem:[%s208 + $0x38] sm:$0xff] %v544
      %v546 = vld [vmem:[%s208 + $0x40] sm:$0xff]
      %v547 = vsel %vm521, %v453, %v546
      %548 = vst [vmem:[%s208 + $0x40] sm:$0xff] %v547
      %v549 = vld [vmem:[%s208 + $0x48] sm:$0xff]
      %v550 = vsel %vm521, %v460, %v549
      %551 = vst [vmem:[%s208 + $0x48] sm:$0xff] %v550
      %v552 = vld [vmem:[%s208 + $0x50] sm:$0xff]
      %v553 = vsel %vm521, %v467, %v552
      %554 = vst [vmem:[%s208 + $0x50] sm:$0xff] %v553
      %v555 = vld [vmem:[%s208 + $0x58] sm:$0xff]
      %v556 = vsel %vm521, %v474, %v555
      %557 = vst [vmem:[%s208 + $0x58] sm:$0xff] %v556
      %v558 = vld [vmem:[%s208 + $0x60] sm:$0xff]
      %v559 = vsel %vm521, %v481, %v558
      %560 = vst [vmem:[%s208 + $0x60] sm:$0xff] %v559
      %v561 = vld [vmem:[%s208 + $0x68] sm:$0xff]
      %v562 = vsel %vm521, %v488, %v561
      %563 = vst [vmem:[%s208 + $0x68] sm:$0xff] %v562
      %v564 = vld [vmem:[%s208 + $0x70] sm:$0xff]
      %v565 = vsel %vm521, %v495, %v564
      %566 = vst [vmem:[%s208 + $0x70] sm:$0xff] %v565
      %v567 = vld [vmem:[%s208 + $0x78] sm:$0xff]
      %v568 = vsel %vm521, %v502, %v567
      %569 = vst [vmem:[%s208 + $0x78] sm:$0xff] %v568
      %570 = vrot.lane.b32.xlu0 %v375, 8
      %v571 = vpop.permute.xlu0 %570
      %572 = vrot.lane.b32.xlu0 %v376, 8
      %v573 = vpop.permute.xlu0 %572
      %574 = vrot.lane.b32.xlu0 %v377, 8
      %v575 = vpop.permute.xlu0 %574
      %576 = vrot.lane.b32.xlu0 %v378, 8
      %v577 = vpop.permute.xlu0 %576
      %578 = vrot.lane.b32.xlu0 %v379, 8
      %v579 = vpop.permute.xlu0 %578
      %580 = vrot.lane.b32.xlu0 %v380, 8
      %v581 = vpop.permute.xlu0 %580
      %582 = vrot.lane.b32.xlu0 %v381, 8
      %v583 = vpop.permute.xlu0 %582
      %584 = vrot.lane.b32.xlu0 %v382, 8
      %v585 = vpop.permute.xlu0 %584
      %586 = vrot.lane.b32.xlu0 %v383, 8
      %v587 = vpop.permute.xlu0 %586
      %588 = vrot.lane.b32.xlu0 %v384, 8
      %v589 = vpop.permute.xlu0 %588
      %590 = vrot.lane.b32.xlu0 %v385, 8
      %v591 = vpop.permute.xlu0 %590
      %592 = vrot.lane.b32.xlu0 %v386, 8
      %v593 = vpop.permute.xlu0 %592
      %594 = vrot.lane.b32.xlu0 %v387, 8
      %v595 = vpop.permute.xlu0 %594
      %596 = vrot.lane.b32.xlu0 %v388, 8
      %v597 = vpop.permute.xlu0 %596
      %598 = vrot.lane.b32.xlu0 %v389, 8
      %v599 = vpop.permute.xlu0 %598
      %600 = vrot.lane.b32.xlu0 %v390, 8
      %v601 = vpop.permute.xlu0 %600
      %vm618 = vcmask 130112
      %619 = vst.msk [vmem:[%s208] sm:$0xff] %vm618, %v571
      %620 = vst.msk [vmem:[%s208 + $0x8] sm:$0xff] %vm618, %v573
      %621 = vst.msk [vmem:[%s208 + $0x10] sm:$0xff] %vm618, %v575
      %622 = vst.msk [vmem:[%s208 + $0x18] sm:$0xff] %vm618, %v577
      %623 = vst.msk [vmem:[%s208 + $0x20] sm:$0xff] %vm618, %v579
      %624 = vst.msk [vmem:[%s208 + $0x28] sm:$0xff] %vm618, %v581
      %625 = vst.msk [vmem:[%s208 + $0x30] sm:$0xff] %vm618, %v583
      %626 = vst.msk [vmem:[%s208 + $0x38] sm:$0xff] %vm618, %v585
      %627 = vst.msk [vmem:[%s208 + $0x40] sm:$0xff] %vm618, %v587
      %628 = vst.msk [vmem:[%s208 + $0x48] sm:$0xff] %vm618, %v589
      %629 = vst.msk [vmem:[%s208 + $0x50] sm:$0xff] %vm618, %v591
      %630 = vst.msk [vmem:[%s208 + $0x58] sm:$0xff] %vm618, %v593
      %631 = vst.msk [vmem:[%s208 + $0x60] sm:$0xff] %vm618, %v595
      %632 = vst.msk [vmem:[%s208 + $0x68] sm:$0xff] %vm618, %v597
      %633 = vst.msk [vmem:[%s208 + $0x70] sm:$0xff] %vm618, %v599
      %634 = vst.msk [vmem:[%s208 + $0x78] sm:$0xff] %vm618, %v601
      %v635 = vrot.slane %v395, 1
      %v636 = vor.u32 %v392, %v635
      %v637 = vrot.slane %v402, 1
      %v638 = vor.u32 %v399, %v637
      %v639 = vrot.slane %v409, 1
      %v640 = vor.u32 %v406, %v639
      %v641 = vrot.slane %v416, 1
      %v642 = vor.u32 %v413, %v641
      %v643 = vrot.slane %v423, 1
      %v644 = vor.u32 %v420, %v643
      %v645 = vrot.slane %v430, 1
      %v646 = vor.u32 %v427, %v645
      %v647 = vrot.slane %v437, 1
      %v648 = vor.u32 %v434, %v647
      %v649 = vrot.slane %v444, 1
      %v650 = vor.u32 %v441, %v649
      %v651 = vrot.slane %v451, 1
      %v652 = vor.u32 %v448, %v651
      %v653 = vrot.slane %v458, 1
      %v654 = vor.u32 %v455, %v653
      %v655 = vrot.slane %v465, 1
      %v656 = vor.u32 %v462, %v655
      %v657 = vrot.slane %v472, 1
      %v658 = vor.u32 %v469, %v657
      %v659 = vrot.slane %v479, 1
      %v660 = vor.u32 %v476, %v659
      %v661 = vrot.slane %v486, 1
      %v662 = vor.u32 %v483, %v661
      %v663 = vrot.slane %v493, 1
      %v664 = vor.u32 %v490, %v663
      %v665 = vrot.slane %v500, 1
      %v666 = vor.u32 %v497, %v665
      %667 = vrot.lane.b32.xlu0 %v636, 16
      %v668 = vpop.permute.xlu0 %667
      %669 = vrot.lane.b32.xlu0 %v638, 16
      %v670 = vpop.permute.xlu0 %669
      %671 = vrot.lane.b32.xlu0 %v640, 16
      %v672 = vpop.permute.xlu0 %671
      %673 = vrot.lane.b32.xlu0 %v642, 16
      %v674 = vpop.permute.xlu0 %673
      %675 = vrot.lane.b32.xlu0 %v644, 16
      %v676 = vpop.permute.xlu0 %675
      %677 = vrot.lane.b32.xlu0 %v646, 16
      %v678 = vpop.permute.xlu0 %677
      %679 = vrot.lane.b32.xlu0 %v648, 16
      %v680 = vpop.permute.xlu0 %679
      %681 = vrot.lane.b32.xlu0 %v650, 16
      %v682 = vpop.permute.xlu0 %681
      %683 = vrot.lane.b32.xlu0 %v652, 16
      %v684 = vpop.permute.xlu0 %683
      %685 = vrot.lane.b32.xlu0 %v654, 16
      %v686 = vpop.permute.xlu0 %685
      %687 = vrot.lane.b32.xlu0 %v656, 16
      %v688 = vpop.permute.xlu0 %687
      %689 = vrot.lane.b32.xlu0 %v658, 16
      %v690 = vpop.permute.xlu0 %689
      %691 = vrot.lane.b32.xlu0 %v660, 16
      %v692 = vpop.permute.xlu0 %691
      %693 = vrot.lane.b32.xlu0 %v662, 16
      %v694 = vpop.permute.xlu0 %693
      %695 = vrot.lane.b32.xlu0 %v664, 16
      %v696 = vpop.permute.xlu0 %695
      %697 = vrot.lane.b32.xlu0 %v666, 16
      %v698 = vpop.permute.xlu0 %697
      %vm715 = vcmask 195712
      %vm716 = vsmask.f32 7424
      %vm717 = vmand %vm715, %vm716
      %v718 = vld [vmem:[%s208] sm:$0xff]
      %v719 = vsel %vm717, %v668, %v718
      %720 = vst [vmem:[%s208] sm:$0xff] %v719
      %v721 = vld [vmem:[%s208 + $0x8] sm:$0xff]
      %v722 = vsel %vm717, %v670, %v721
      %723 = vst [vmem:[%s208 + $0x8] sm:$0xff] %v722
      %v724 = vld [vmem:[%s208 + $0x10] sm:$0xff]
      %v725 = vsel %vm717, %v672, %v724
      %726 = vst [vmem:[%s208 + $0x10] sm:$0xff] %v725
      %v727 = vld [vmem:[%s208 + $0x18] sm:$0xff]
      %v728 = vsel %vm717, %v674, %v727
      %729 = vst [vmem:[%s208 + $0x18] sm:$0xff] %v728
      %v730 = vld [vmem:[%s208 + $0x20] sm:$0xff]
      %v731 = vsel %vm717, %v676, %v730
      %732 = vst [vmem:[%s208 + $0x20] sm:$0xff] %v731
      %v733 = vld [vmem:[%s208 + $0x28] sm:$0xff]
      %v734 = vsel %vm717, %v678, %v733
      %735 = vst [vmem:[%s208 + $0x28] sm:$0xff] %v734
      %v736 = vld [vmem:[%s208 + $0x30] sm:$0xff]
      %v737 = vsel %vm717, %v680, %v736
      %738 = vst [vmem:[%s208 + $0x30] sm:$0xff] %v737
      %v739 = vld [vmem:[%s208 + $0x38] sm:$0xff]
      %v740 = vsel %vm717, %v682, %v739
      %741 = vst [vmem:[%s208 + $0x38] sm:$0xff] %v740
      %v742 = vld [vmem:[%s208 + $0x40] sm:$0xff]
      %v743 = vsel %vm717, %v684, %v742
      %744 = vst [vmem:[%s208 + $0x40] sm:$0xff] %v743
      %v745 = vld [vmem:[%s208 + $0x48] sm:$0xff]
      %v746 = vsel %vm717, %v686, %v745
      %747 = vst [vmem:[%s208 + $0x48] sm:$0xff] %v746
      %v748 = vld [vmem:[%s208 + $0x50] sm:$0xff]
      %v749 = vsel %vm717, %v688, %v748
      %750 = vst [vmem:[%s208 + $0x50] sm:$0xff] %v749
      %v751 = vld [vmem:[%s208 + $0x58] sm:$0xff]
      %v752 = vsel %vm717, %v690, %v751
      %753 = vst [vmem:[%s208 + $0x58] sm:$0xff] %v752
      %v754 = vld [vmem:[%s208 + $0x60] sm:$0xff]
      %v755 = vsel %vm717, %v692, %v754
      %756 = vst [vmem:[%s208 + $0x60] sm:$0xff] %v755
      %v757 = vld [vmem:[%s208 + $0x68] sm:$0xff]
      %v758 = vsel %vm717, %v694, %v757
      %759 = vst [vmem:[%s208 + $0x68] sm:$0xff] %v758
      %v760 = vld [vmem:[%s208 + $0x70] sm:$0xff]
      %v761 = vsel %vm717, %v696, %v760
      %762 = vst [vmem:[%s208 + $0x70] sm:$0xff] %v761
      %v763 = vld [vmem:[%s208 + $0x78] sm:$0xff]
      %v764 = vsel %vm717, %v698, %v763
      %765 = vst [vmem:[%s208 + $0x78] sm:$0xff] %v764
      %v766 = vld [vmem:[#allocation2] sm:$0xff]
      %v767 = vld [vmem:[#allocation2 + $0x8] sm:$0xff]
      %v768 = vld [vmem:[#allocation2 + $0x10] sm:$0xff]
      %v769 = vld [vmem:[#allocation2 + $0x18] sm:$0xff]
      %v770 = vld [vmem:[#allocation2 + $0x20] sm:$0xff]
      %v771 = vld [vmem:[#allocation2 + $0x28] sm:$0xff]
      %v772 = vld [vmem:[#allocation2 + $0x30] sm:$0xff]
      %v773 = vld [vmem:[#allocation2 + $0x38] sm:$0xff]
      %v774 = vld [vmem:[#allocation2 + $0x40] sm:$0xff]
      %v775 = vld [vmem:[#allocation2 + $0x48] sm:$0xff]
      %v776 = vld [vmem:[#allocation2 + $0x50] sm:$0xff]
      %v777 = vld [vmem:[#allocation2 + $0x58] sm:$0xff]
      %v778 = vld [vmem:[#allocation2 + $0x60] sm:$0xff]
      %v779 = vld [vmem:[#allocation2 + $0x68] sm:$0xff]
      %v780 = vld [vmem:[#allocation2 + $0x70] sm:$0xff]
      %v781 = vld [vmem:[#allocation2 + $0x78] sm:$0xff]
      %v782 = vld [vmem:[%s1] sm:$0xf]
      %v783 = vld [vmem:[%s1 + $0x4] sm:$0xf]
      %v784 = vld [vmem:[%s1 + $0x8] sm:$0xf]
      %v788 = vunpack.c.l.b16 %v782
      %v789 = vunpack.c.l.b16 %v783
      %v790 = vunpack.c.l.b16 %v784
      %v791 = vpack.c.b16 %v789, %v788
      %v792 = vpack.c.b16 %v790, %v790
      %v795 = vsel %vm204, %v766, 0
      %v798 = vsel %vm204, %v767, 0
      %v801 = vsel %vm204, %v768, 0
      %v804 = vsel %vm204, %v769, 0
      %v807 = vsel %vm204, %v770, 0
      %v810 = vsel %vm204, %v771, 0
      %v813 = vsel %vm204, %v772, 0
      %v816 = vsel %vm204, %v773, 0
      %v819 = vsel %vm204, %v774, 0
      %v822 = vsel %vm204, %v775, 0
      %v825 = vsel %vm204, %v776, 0
      %v828 = vsel %vm204, %v777, 0
      %v831 = vsel %vm204, %v778, 0
      %v834 = vsel %vm204, %v779, 0
      %v837 = vsel %vm204, %v780, 0
      %v840 = vsel %vm204, %v781, 0
      %vm842 = vcmask 1043456
      %v844 = vsel %vm842, %v792, 0
      %846 = vmatprep.subr.bf16.mxu0 0
      %847 = vmatpush1.bf16.msra.mxu0 %v791
      %848 = vmatprep.subr.bf16.mxu0 0
      %849 = vmatpush1.bf16.msra.mxu0 %v844
      %850 = vmatprep.subr.bf16.mxu0 0
      %851 = vmatpush1.bf16.msra.mxu0 0
      %852 = vmatprep.subr.bf16.mxu0 0
      %853 = vmatpush1.bf16.msra.mxu0 0
      %854 = vmatprep.subr.bf16.mxu0 0
      %855 = vmatpush1.bf16.msra.mxu0 0
      %856 = vmatprep.subr.bf16.mxu0 0
      %857 = vmatpush1.bf16.msra.mxu0 0
      %858 = vmatprep.subr.bf16.mxu0 0
      %859 = vmatpush1.bf16.msra.mxu0 0
      %860 = vmatprep.subr.bf16.mxu0 0
      %861 = vmatpush1.bf16.msra.mxu0 0
      %862 = vmatprep.subr.bf16.mxu0 0
      %863 = vmatpush1.bf16.msra.mxu0 0
      %864 = vmatprep.subr.bf16.mxu0 0
      %865 = vmatpush1.bf16.msra.mxu0 0
      %866 = vmatprep.subr.bf16.mxu0 0
      %867 = vmatpush1.bf16.msra.mxu0 0
      %868 = vmatprep.subr.bf16.mxu0 0
      %869 = vmatpush1.bf16.msra.mxu0 0
      %870 = vmatprep.subr.bf16.mxu0 0
      %871 = vmatpush1.bf16.msra.mxu0 0
      %872 = vmatprep.subr.bf16.mxu0 0
      %873 = vmatpush1.bf16.msra.mxu0 0
      %874 = vmatprep.subr.bf16.mxu0 0
      %875 = vmatpush1.bf16.msra.mxu0 0
      %876 = vmatprep.subr.bf16.mxu0 0
      %877 = vmatpush1.bf16.msra.mxu0 0
      %878 = vmatprep.mubr.bf16.mxu0 0
      %879 = vmatmul.mubr.bf16.gmra.mrb[0].mxu0 %v795
      %v880 = vpop.f32.mrb[0].mxu0
      %v881 = vadd.f32 0.0, %v880
      %v882 = vpop.f32.mrb[0].mxu0
      %v883 = vpop.f32.mrb[0].mxu0
      %v884 = vadd.f32 0.0, %v883
      %v885 = vpop.f32.mrb[0].mxu0
      %886 = vmatprep.mubr.bf16.mxu0 0
      %887 = vmatmul.mubr.bf16.gmra.mrb[0].mxu0 %v798
      %v888 = vpop.f32.mrb[0].mxu0
      %v889 = vadd.f32 0.0, %v888
      %v890 = vpop.f32.mrb[0].mxu0
      %v891 = vpop.f32.mrb[0].mxu0
      %v892 = vadd.f32 0.0, %v891
      %v893 = vpop.f32.mrb[0].mxu0
      %894 = vmatprep.mubr.bf16.mxu0 0
      %895 = vmatmul.mubr.bf16.gmra.mrb[0].mxu0 %v801
      %v896 = vpop.f32.mrb[0].mxu0
      %v897 = vadd.f32 0.0, %v896
      %v898 = vpop.f32.mrb[0].mxu0
      %v899 = vpop.f32.mrb[0].mxu0
      %v900 = vadd.f32 0.0, %v899
      %v901 = vpop.f32.mrb[0].mxu0
      %902 = vmatprep.mubr.bf16.mxu0 0
      %903 = vmatmul.mubr.bf16.gmra.mrb[0].mxu0 %v804
      %v904 = vpop.f32.mrb[0].mxu0
      %v905 = vadd.f32 0.0, %v904
      %v906 = vpop.f32.mrb[0].mxu0
      %v907 = vpop.f32.mrb[0].mxu0
      %v908 = vadd.f32 0.0, %v907
      %v909 = vpop.f32.mrb[0].mxu0
      %910 = vmatprep.mubr.bf16.mxu0 0
      %911 = vmatmul.mubr.bf16.gmra.mrb[0].mxu0 %v807
      %v912 = vpop.f32.mrb[0].mxu0
      %v913 = vadd.f32 0.0, %v912
      %v914 = vpop.f32.mrb[0].mxu0
      %v915 = vpop.f32.mrb[0].mxu0
      %v916 = vadd.f32 0.0, %v915
      %v917 = vpop.f32.mrb[0].mxu0
      %918 = vmatprep.mubr.bf16.mxu0 0
      %919 = vmatmul.mubr.bf16.gmra.mrb[0].mxu0 %v810
      %v920 = vpop.f32.mrb[0].mxu0
      %v921 = vadd.f32 0.0, %v920
      %v922 = vpop.f32.mrb[0].mxu0
      %v923 = vpop.f32.mrb[0].mxu0
      %v924 = vadd.f32 0.0, %v923
      %v925 = vpop.f32.mrb[0].mxu0
      %926 = vmatprep.mubr.bf16.mxu0 0
      %927 = vmatmul.mubr.bf16.gmra.mrb[0].mxu0 %v813
      %v928 = vpop.f32.mrb[0].mxu0
      %v929 = vadd.f32 0.0, %v928
      %v930 = vpop.f32.mrb[0].mxu0
      %v931 = vpop.f32.mrb[0].mxu0
      %v932 = vadd.f32 0.0, %v931
      %v933 = vpop.f32.mrb[0].mxu0
      %934 = vmatprep.mubr.bf16.mxu0 0
      %935 = vmatmul.mubr.bf16.gmra.mrb[0].mxu0 %v816
      %v936 = vpop.f32.mrb[0].mxu0
      %v937 = vadd.f32 0.0, %v936
      %v938 = vpop.f32.mrb[0].mxu0
      %v939 = vpop.f32.mrb[0].mxu0
      %v940 = vadd.f32 0.0, %v939
      %v941 = vpop.f32.mrb[0].mxu0
      %942 = vmatprep.mubr.bf16.mxu0 0
      %943 = vmatmul.mubr.bf16.gmra.mrb[0].mxu0 %v819
      %v944 = vpop.f32.mrb[0].mxu0
      %v945 = vadd.f32 0.0, %v944
      %v946 = vpop.f32.mrb[0].mxu0
      %v947 = vpop.f32.mrb[0].mxu0
      %v948 = vadd.f32 0.0, %v947
      %v949 = vpop.f32.mrb[0].mxu0
      %950 = vmatprep.mubr.bf16.mxu0 0
      %951 = vmatmul.mubr.bf16.gmra.mrb[0].mxu0 %v822
      %v952 = vpop.f32.mrb[0].mxu0
      %v953 = vadd.f32 0.0, %v952
      %v954 = vpop.f32.mrb[0].mxu0
      %v955 = vpop.f32.mrb[0].mxu0
      %v956 = vadd.f32 0.0, %v955
      %v957 = vpop.f32.mrb[0].mxu0
      %958 = vmatprep.mubr.bf16.mxu0 0
      %959 = vmatmul.mubr.bf16.gmra.mrb[0].mxu0 %v825
      %v960 = vpop.f32.mrb[0].mxu0
      %v961 = vadd.f32 0.0, %v960
      %v962 = vpop.f32.mrb[0].mxu0
      %v963 = vpop.f32.mrb[0].mxu0
      %v964 = vadd.f32 0.0, %v963
      %v965 = vpop.f32.mrb[0].mxu0
      %966 = vmatprep.mubr.bf16.mxu0 0
      %967 = vmatmul.mubr.bf16.gmra.mrb[0].mxu0 %v828
      %v968 = vpop.f32.mrb[0].mxu0
      %v969 = vadd.f32 0.0, %v968
      %v970 = vpop.f32.mrb[0].mxu0
      %v971 = vpop.f32.mrb[0].mxu0
      %v972 = vadd.f32 0.0, %v971
      %v973 = vpop.f32.mrb[0].mxu0
      %974 = vmatprep.mubr.bf16.mxu0 0
      %975 = vmatmul.mubr.bf16.gmra.mrb[0].mxu0 %v831
      %v976 = vpop.f32.mrb[0].mxu0
      %v977 = vadd.f32 0.0, %v976
      %v978 = vpop.f32.mrb[0].mxu0
      %v979 = vpop.f32.mrb[0].mxu0
      %v980 = vadd.f32 0.0, %v979
      %v981 = vpop.f32.mrb[0].mxu0
      %982 = vmatprep.mubr.bf16.mxu0 0
      %983 = vmatmul.mubr.bf16.gmra.mrb[0].mxu0 %v834
      %v984 = vpop.f32.mrb[0].mxu0
      %v985 = vadd.f32 0.0, %v984
      %v986 = vpop.f32.mrb[0].mxu0
      %v987 = vpop.f32.mrb[0].mxu0
      %v988 = vadd.f32 0.0, %v987
      %v989 = vpop.f32.mrb[0].mxu0
      %990 = vmatprep.mubr.bf16.mxu0 0
      %991 = vmatmul.mubr.bf16.gmra.mrb[0].mxu0 %v837
      %v992 = vpop.f32.mrb[0].mxu0
      %v993 = vadd.f32 0.0, %v992
      %v994 = vpop.f32.mrb[0].mxu0
      %v995 = vpop.f32.mrb[0].mxu0
      %v996 = vadd.f32 0.0, %v995
      %v997 = vpop.f32.mrb[0].mxu0
      %998 = vmatprep.mubr.bf16.mxu0 0
      %999 = vmatmul.mubr.bf16.gmra.mrb[0].mxu0 %v840
      %v1000 = vpop.f32.mrb[0].mxu0
      %v1001 = vadd.f32 0.0, %v1000
      %v1002 = vpop.f32.mrb[0].mxu0
      %v1003 = vpop.f32.mrb[0].mxu0
      %v1004 = vadd.f32 0.0, %v1003
      %v1005 = vpop.f32.mrb[0].mxu0
      %1006 = vdwg.mxu0
      %vm1007 = vcmask 64512
      %1008 = vst.msk [vmem:[#allocation3] sm:$0xff] %vm1007, %v881
      %1009 = vst.msk [vmem:[#allocation3 + $0x8] sm:$0xff] %vm1007, %v884
      %1010 = vst.msk [vmem:[#allocation3 + $0x10] sm:$0xff] %vm1007, %v889
      %1011 = vst.msk [vmem:[#allocation3 + $0x18] sm:$0xff] %vm1007, %v892
      %1012 = vst.msk [vmem:[#allocation3 + $0x20] sm:$0xff] %vm1007, %v897
      %1013 = vst.msk [vmem:[#allocation3 + $0x28] sm:$0xff] %vm1007, %v900
      %1014 = vst.msk [vmem:[#allocation3 + $0x30] sm:$0xff] %vm1007, %v905
      %1015 = vst.msk [vmem:[#allocation3 + $0x38] sm:$0xff] %vm1007, %v908
      %1016 = vst.msk [vmem:[#allocation3 + $0x40] sm:$0xff] %vm1007, %v913
      %1017 = vst.msk [vmem:[#allocation3 + $0x48] sm:$0xff] %vm1007, %v916
      %1018 = vst.msk [vmem:[#allocation3 + $0x50] sm:$0xff] %vm1007, %v921
      %1019 = vst.msk [vmem:[#allocation3 + $0x58] sm:$0xff] %vm1007, %v924
      %1020 = vst.msk [vmem:[#allocation3 + $0x60] sm:$0xff] %vm1007, %v929
      %1021 = vst.msk [vmem:[#allocation3 + $0x68] sm:$0xff] %vm1007, %v932
      %1022 = vst.msk [vmem:[#allocation3 + $0x70] sm:$0xff] %vm1007, %v937
      %1023 = vst.msk [vmem:[#allocation3 + $0x78] sm:$0xff] %vm1007, %v940
      %1024 = vst.msk [vmem:[#allocation3 + $0x80] sm:$0xff] %vm1007, %v945
      %1025 = vst.msk [vmem:[#allocation3 + $0x88] sm:$0xff] %vm1007, %v948
      %1026 = vst.msk [vmem:[#allocation3 + $0x90] sm:$0xff] %vm1007, %v953
      %1027 = vst.msk [vmem:[#allocation3 + $0x98] sm:$0xff] %vm1007, %v956
      %1028 = vst.msk [vmem:[#allocation3 + $0xa0] sm:$0xff] %vm1007, %v961
      %1029 = vst.msk [vmem:[#allocation3 + $0xa8] sm:$0xff] %vm1007, %v964
      %1030 = vst.msk [vmem:[#allocation3 + $0xb0] sm:$0xff] %vm1007, %v969
      %1031 = vst.msk [vmem:[#allocation3 + $0xb8] sm:$0xff] %vm1007, %v972
      %1032 = vst.msk [vmem:[#allocation3 + $0xc0] sm:$0xff] %vm1007, %v977
      %1033 = vst.msk [vmem:[#allocation3 + $0xc8] sm:$0xff] %vm1007, %v980
      %1034 = vst.msk [vmem:[#allocation3 + $0xd0] sm:$0xff] %vm1007, %v985
      %1035 = vst.msk [vmem:[#allocation3 + $0xd8] sm:$0xff] %vm1007, %v988
      %1036 = vst.msk [vmem:[#allocation3 + $0xe0] sm:$0xff] %vm1007, %v993
      %1037 = vst.msk [vmem:[#allocation3 + $0xe8] sm:$0xff] %vm1007, %v996
      %1038 = vst.msk [vmem:[#allocation3 + $0xf0] sm:$0xff] %vm1007, %v1001
      %1039 = vst.msk [vmem:[#allocation3 + $0xf8] sm:$0xff] %vm1007, %v1004
      %v1040 = vld [vmem:[%s208] sm:$0xff]
      %v1041 = vld [vmem:[%s208 + $0x8] sm:$0xff]
      %v1042 = vld [vmem:[%s208 + $0x10] sm:$0xff]
      %v1043 = vld [vmem:[%s208 + $0x18] sm:$0xff]
      %v1044 = vld [vmem:[%s208 + $0x20] sm:$0xff]
      %v1045 = vld [vmem:[%s208 + $0x28] sm:$0xff]
      %v1046 = vld [vmem:[%s208 + $0x30] sm:$0xff]
      %v1047 = vld [vmem:[%s208 + $0x38] sm:$0xff]
      %v1048 = vld [vmem:[%s208 + $0x40] sm:$0xff]
      %v1049 = vld [vmem:[%s208 + $0x48] sm:$0xff]
      %v1050 = vld [vmem:[%s208 + $0x50] sm:$0xff]
      %v1051 = vld [vmem:[%s208 + $0x58] sm:$0xff]
      %v1052 = vld [vmem:[%s208 + $0x60] sm:$0xff]
      %v1053 = vld [vmem:[%s208 + $0x68] sm:$0xff]
      %v1054 = vld [vmem:[%s208 + $0x70] sm:$0xff]
      %v1055 = vld [vmem:[%s208 + $0x78] sm:$0xff]
      %s1056 = scalar_lea.vmem %s1, 12
      %v1057 = vld [vmem:[%s1056] sm:$0xf]
      %v1058 = vld [vmem:[%s1056 + $0x4] sm:$0xf]
      %v1059 = vld [vmem:[%s1056 + $0x8] sm:$0xf]
      %v1063 = vunpack.c.l.b16 %v1057
      %v1064 = vunpack.c.l.b16 %v1058
      %v1065 = vunpack.c.l.b16 %v1059
      %v1066 = vpack.c.b16 %v1064, %v1063
      %v1067 = vpack.c.b16 %v1065, %v1065
      %v1070 = vsel %vm204, %v1040, 0
      %v1073 = vsel %vm204, %v1041, 0
      %v1076 = vsel %vm204, %v1042, 0
      %v1079 = vsel %vm204, %v1043, 0
      %v1082 = vsel %vm204, %v1044, 0
      %v1085 = vsel %vm204, %v1045, 0
      %v1088 = vsel %vm204, %v1046, 0
      %v1091 = vsel %vm204, %v1047, 0
      %v1094 = vsel %vm204, %v1048, 0
      %v1097 = vsel %vm204, %v1049, 0
      %v1100 = vsel %vm204, %v1050, 0
      %v1103 = vsel %vm204, %v1051, 0
      %v1106 = vsel %vm204, %v1052, 0
      %v1109 = vsel %vm204, %v1053, 0
      %v1112 = vsel %vm204, %v1054, 0
      %v1115 = vsel %vm204, %v1055, 0
      %v1118 = vsel %vm842, %v1067, 0
      %1120 = vmatprep.subr.bf16.mxu0 0
      %1121 = vmatpush1.bf16.msra.mxu0 %v1066
      %1122 = vmatprep.subr.bf16.mxu0 0
      %1123 = vmatpush1.bf16.msra.mxu0 %v1118
      %1124 = vmatprep.subr.bf16.mxu0 0
      %1125 = vmatpush1.bf16.msra.mxu0 0
      %1126 = vmatprep.subr.bf16.mxu0 0
      %1127 = vmatpush1.bf16.msra.mxu0 0
      %1128 = vmatprep.subr.bf16.mxu0 0
      %1129 = vmatpush1.bf16.msra.mxu0 0
      %1130 = vmatprep.subr.bf16.mxu0 0
      %1131 = vmatpush1.bf16.msra.mxu0 0
      %1132 = vmatprep.subr.bf16.mxu0 0
      %1133 = vmatpush1.bf16.msra.mxu0 0
      %1134 = vmatprep.subr.bf16.mxu0 0
      %1135 = vmatpush1.bf16.msra.mxu0 0
      %1136 = vmatprep.subr.bf16.mxu0 0
      %1137 = vmatpush1.bf16.msra.mxu0 0
      %1138 = vmatprep.subr.bf16.mxu0 0
      %1139 = vmatpush1.bf16.msra.mxu0 0
      %1140 = vmatprep.subr.bf16.mxu0 0
      %1141 = vmatpush1.bf16.msra.mxu0 0
      %1142 = vmatprep.subr.bf16.mxu0 0
      %1143 = vmatpush1.bf16.msra.mxu0 0
      %1144 = vmatprep.subr.bf16.mxu0 0
      %1145 = vmatpush1.bf16.msra.mxu0 0
      %1146 = vmatprep.subr.bf16.mxu0 0
      %1147 = vmatpush1.bf16.msra.mxu0 0
      %1148 = vmatprep.subr.bf16.mxu0 0
      %1149 = vmatpush1.bf16.msra.mxu0 0
      %1150 = vmatprep.subr.bf16.mxu0 0
      %1151 = vmatpush1.bf16.msra.mxu0 0
      %1152 = vmatprep.mubr.bf16.mxu0 0
      %1153 = vmatmul.mubr.bf16.gmra.mrb[0].mxu0 %v1070
      %v1154 = vpop.f32.mrb[0].mxu0
      %v1155 = vadd.f32 0.0, %v1154
      %v1156 = vpop.f32.mrb[0].mxu0
      %v1157 = vpop.f32.mrb[0].mxu0
      %v1158 = vadd.f32 0.0, %v1157
      %v1159 = vpop.f32.mrb[0].mxu0
      %1160 = vmatprep.mubr.bf16.mxu0 0
      %1161 = vmatmul.mubr.bf16.gmra.mrb[0].mxu0 %v1073
      %v1162 = vpop.f32.mrb[0].mxu0
      %v1163 = vadd.f32 0.0, %v1162
      %v1164 = vpop.f32.mrb[0].mxu0
      %v1165 = vpop.f32.mrb[0].mxu0
      %v1166 = vadd.f32 0.0, %v1165
      %v1167 = vpop.f32.mrb[0].mxu0
      %1168 = vmatprep.mubr.bf16.mxu0 0
      %1169 = vmatmul.mubr.bf16.gmra.mrb[0].mxu0 %v1076
      %v1170 = vpop.f32.mrb[0].mxu0
      %v1171 = vadd.f32 0.0, %v1170
      %v1172 = vpop.f32.mrb[0].mxu0
      %v1173 = vpop.f32.mrb[0].mxu0
      %v1174 = vadd.f32 0.0, %v1173
      %v1175 = vpop.f32.mrb[0].mxu0
      %1176 = vmatprep.mubr.bf16.mxu0 0
      %1177 = vmatmul.mubr.bf16.gmra.mrb[0].mxu0 %v1079
      %v1178 = vpop.f32.mrb[0].mxu0
      %v1179 = vadd.f32 0.0, %v1178
      %v1180 = vpop.f32.mrb[0].mxu0
      %v1181 = vpop.f32.mrb[0].mxu0
      %v1182 = vadd.f32 0.0, %v1181
      %v1183 = vpop.f32.mrb[0].mxu0
      %1184 = vmatprep.mubr.bf16.mxu0 0
      %1185 = vmatmul.mubr.bf16.gmra.mrb[0].mxu0 %v1082
      %v1186 = vpop.f32.mrb[0].mxu0
      %v1187 = vadd.f32 0.0, %v1186
      %v1188 = vpop.f32.mrb[0].mxu0
      %v1189 = vpop.f32.mrb[0].mxu0
      %v1190 = vadd.f32 0.0, %v1189
      %v1191 = vpop.f32.mrb[0].mxu0
      %1192 = vmatprep.mubr.bf16.mxu0 0
      %1193 = vmatmul.mubr.bf16.gmra.mrb[0].mxu0 %v1085
      %v1194 = vpop.f32.mrb[0].mxu0
      %v1195 = vadd.f32 0.0, %v1194
      %v1196 = vpop.f32.mrb[0].mxu0
      %v1197 = vpop.f32.mrb[0].mxu0
      %v1198 = vadd.f32 0.0, %v1197
      %v1199 = vpop.f32.mrb[0].mxu0
      %1200 = vmatprep.mubr.bf16.mxu0 0
      %1201 = vmatmul.mubr.bf16.gmra.mrb[0].mxu0 %v1088
      %v1202 = vpop.f32.mrb[0].mxu0
      %v1203 = vadd.f32 0.0, %v1202
      %v1204 = vpop.f32.mrb[0].mxu0
      %v1205 = vpop.f32.mrb[0].mxu0
      %v1206 = vadd.f32 0.0, %v1205
      %v1207 = vpop.f32.mrb[0].mxu0
      %1208 = vmatprep.mubr.bf16.mxu0 0
      %1209 = vmatmul.mubr.bf16.gmra.mrb[0].mxu0 %v1091
      %v1210 = vpop.f32.mrb[0].mxu0
      %v1211 = vadd.f32 0.0, %v1210
      %v1212 = vpop.f32.mrb[0].mxu0
      %v1213 = vpop.f32.mrb[0].mxu0
      %v1214 = vadd.f32 0.0, %v1213
      %v1215 = vpop.f32.mrb[0].mxu0
      %1216 = vmatprep.mubr.bf16.mxu0 0
      %1217 = vmatmul.mubr.bf16.gmra.mrb[0].mxu0 %v1094
      %v1218 = vpop.f32.mrb[0].mxu0
      %v1219 = vadd.f32 0.0, %v1218
      %v1220 = vpop.f32.mrb[0].mxu0
      %v1221 = vpop.f32.mrb[0].mxu0
      %v1222 = vadd.f32 0.0, %v1221
      %v1223 = vpop.f32.mrb[0].mxu0
      %1224 = vmatprep.mubr.bf16.mxu0 0
      %1225 = vmatmul.mubr.bf16.gmra.mrb[0].mxu0 %v1097
      %v1226 = vpop.f32.mrb[0].mxu0
      %v1227 = vadd.f32 0.0, %v1226
      %v1228 = vpop.f32.mrb[0].mxu0
      %v1229 = vpop.f32.mrb[0].mxu0
      %v1230 = vadd.f32 0.0, %v1229
      %v1231 = vpop.f32.mrb[0].mxu0
      %1232 = vmatprep.mubr.bf16.mxu0 0
      %1233 = vmatmul.mubr.bf16.gmra.mrb[0].mxu0 %v1100
      %v1234 = vpop.f32.mrb[0].mxu0
      %v1235 = vadd.f32 0.0, %v1234
      %v1236 = vpop.f32.mrb[0].mxu0
      %v1237 = vpop.f32.mrb[0].mxu0
      %v1238 = vadd.f32 0.0, %v1237
      %v1239 = vpop.f32.mrb[0].mxu0
      %1240 = vmatprep.mubr.bf16.mxu0 0
      %1241 = vmatmul.mubr.bf16.gmra.mrb[0].mxu0 %v1103
      %v1242 = vpop.f32.mrb[0].mxu0
      %v1243 = vadd.f32 0.0, %v1242
      %v1244 = vpop.f32.mrb[0].mxu0
      %v1245 = vpop.f32.mrb[0].mxu0
      %v1246 = vadd.f32 0.0, %v1245
      %v1247 = vpop.f32.mrb[0].mxu0
      %1248 = vmatprep.mubr.bf16.mxu0 0
      %1249 = vmatmul.mubr.bf16.gmra.mrb[0].mxu0 %v1106
      %v1250 = vpop.f32.mrb[0].mxu0
      %v1251 = vadd.f32 0.0, %v1250
      %v1252 = vpop.f32.mrb[0].mxu0
      %v1253 = vpop.f32.mrb[0].mxu0
      %v1254 = vadd.f32 0.0, %v1253
      %v1255 = vpop.f32.mrb[0].mxu0
      %1256 = vmatprep.mubr.bf16.mxu0 0
      %1257 = vmatmul.mubr.bf16.gmra.mrb[0].mxu0 %v1109
      %v1258 = vpop.f32.mrb[0].mxu0
      %v1259 = vadd.f32 0.0, %v1258
      %v1260 = vpop.f32.mrb[0].mxu0
      %v1261 = vpop.f32.mrb[0].mxu0
      %v1262 = vadd.f32 0.0, %v1261
      %v1263 = vpop.f32.mrb[0].mxu0
      %1264 = vmatprep.mubr.bf16.mxu0 0
      %1265 = vmatmul.mubr.bf16.gmra.mrb[0].mxu0 %v1112
      %v1266 = vpop.f32.mrb[0].mxu0
      %v1267 = vadd.f32 0.0, %v1266
      %v1268 = vpop.f32.mrb[0].mxu0
      %v1269 = vpop.f32.mrb[0].mxu0
      %v1270 = vadd.f32 0.0, %v1269
      %v1271 = vpop.f32.mrb[0].mxu0
      %1272 = vmatprep.mubr.bf16.mxu0 0
      %1273 = vmatmul.mubr.bf16.gmra.mrb[0].mxu0 %v1115
      %v1274 = vpop.f32.mrb[0].mxu0
      %v1275 = vadd.f32 0.0, %v1274
      %v1276 = vpop.f32.mrb[0].mxu0
      %v1277 = vpop.f32.mrb[0].mxu0
      %v1278 = vadd.f32 0.0, %v1277
      %v1279 = vpop.f32.mrb[0].mxu0
      %1280 = vdwg.mxu0
      %v1281 = vld [vmem:[#allocation3] sm:$0xff]
      %v1282 = vld [vmem:[#allocation3 + $0x8] sm:$0xff]
      %v1283 = vld [vmem:[#allocation3 + $0x10] sm:$0xff]
      %v1284 = vld [vmem:[#allocation3 + $0x18] sm:$0xff]
      %v1285 = vld [vmem:[#allocation3 + $0x20] sm:$0xff]
      %v1286 = vld [vmem:[#allocation3 + $0x28] sm:$0xff]
      %v1287 = vld [vmem:[#allocation3 + $0x30] sm:$0xff]
      %v1288 = vld [vmem:[#allocation3 + $0x38] sm:$0xff]
      %v1289 = vld [vmem:[#allocation3 + $0x40] sm:$0xff]
      %v1290 = vld [vmem:[#allocation3 + $0x48] sm:$0xff]
      %v1291 = vld [vmem:[#allocation3 + $0x50] sm:$0xff]
      %v1292 = vld [vmem:[#allocation3 + $0x58] sm:$0xff]
      %v1293 = vld [vmem:[#allocation3 + $0x60] sm:$0xff]
      %v1294 = vld [vmem:[#allocation3 + $0x68] sm:$0xff]
      %v1295 = vld [vmem:[#allocation3 + $0x70] sm:$0xff]
      %v1296 = vld [vmem:[#allocation3 + $0x78] sm:$0xff]
      %v1297 = vld [vmem:[#allocation3 + $0x80] sm:$0xff]
      %v1298 = vld [vmem:[#allocation3 + $0x88] sm:$0xff]
      %v1299 = vld [vmem:[#allocation3 + $0x90] sm:$0xff]
      %v1300 = vld [vmem:[#allocation3 + $0x98] sm:$0xff]
      %v1301 = vld [vmem:[#allocation3 + $0xa0] sm:$0xff]
      %v1302 = vld [vmem:[#allocation3 + $0xa8] sm:$0xff]
      %v1303 = vld [vmem:[#allocation3 + $0xb0] sm:$0xff]
      %v1304 = vld [vmem:[#allocation3 + $0xb8] sm:$0xff]
      %v1305 = vld [vmem:[#allocation3 + $0xc0] sm:$0xff]
      %v1306 = vld [vmem:[#allocation3 + $0xc8] sm:$0xff]
      %v1307 = vld [vmem:[#allocation3 + $0xd0] sm:$0xff]
      %v1308 = vld [vmem:[#allocation3 + $0xd8] sm:$0xff]
      %v1309 = vld [vmem:[#allocation3 + $0xe0] sm:$0xff]
      %v1310 = vld [vmem:[#allocation3 + $0xe8] sm:$0xff]
      %v1311 = vld [vmem:[#allocation3 + $0xf0] sm:$0xff]
      %v1312 = vld [vmem:[#allocation3 + $0xf8] sm:$0xff]
      %v1313 = vadd.f32 %v1281, %v1155
      %v1314 = vadd.f32 %v1282, %v1158
      %v1315 = vadd.f32 %v1283, %v1163
      %v1316 = vadd.f32 %v1284, %v1166
      %v1317 = vadd.f32 %v1285, %v1171
      %v1318 = vadd.f32 %v1286, %v1174
      %v1319 = vadd.f32 %v1287, %v1179
      %v1320 = vadd.f32 %v1288, %v1182
      %v1321 = vadd.f32 %v1289, %v1187
      %v1322 = vadd.f32 %v1290, %v1190
      %v1323 = vadd.f32 %v1291, %v1195
      %v1324 = vadd.f32 %v1292, %v1198
      %v1325 = vadd.f32 %v1293, %v1203
      %v1326 = vadd.f32 %v1294, %v1206
      %v1327 = vadd.f32 %v1295, %v1211
      %v1328 = vadd.f32 %v1296, %v1214
      %v1329 = vadd.f32 %v1297, %v1219
      %v1330 = vadd.f32 %v1298, %v1222
      %v1331 = vadd.f32 %v1299, %v1227
      %v1332 = vadd.f32 %v1300, %v1230
      %v1333 = vadd.f32 %v1301, %v1235
      %v1334 = vadd.f32 %v1302, %v1238
      %v1335 = vadd.f32 %v1303, %v1243
      %v1336 = vadd.f32 %v1304, %v1246
      %v1337 = vadd.f32 %v1305, %v1251
      %v1338 = vadd.f32 %v1306, %v1254
      %v1339 = vadd.f32 %v1307, %v1259
      %v1340 = vadd.f32 %v1308, %v1262
      %v1341 = vadd.f32 %v1309, %v1267
      %v1342 = vadd.f32 %v1310, %v1270
      %v1343 = vadd.f32 %v1311, %v1275
      %v1344 = vadd.f32 %v1312, %v1278
      %1345 = vst.msk [vmem:[#allocation3] sm:$0xff] %vm1007, %v1313
      %1346 = vst.msk [vmem:[#allocation3 + $0x8] sm:$0xff] %vm1007, %v1314
      %1347 = vst.msk [vmem:[#allocation3 + $0x10] sm:$0xff] %vm1007, %v1315
      %1348 = vst.msk [vmem:[#allocation3 + $0x18] sm:$0xff] %vm1007, %v1316
      %1349 = vst.msk [vmem:[#allocation3 + $0x20] sm:$0xff] %vm1007, %v1317
      %1350 = vst.msk [vmem:[#allocation3 + $0x28] sm:$0xff] %vm1007, %v1318
      %1351 = vst.msk [vmem:[#allocation3 + $0x30] sm:$0xff] %vm1007, %v1319
      %1352 = vst.msk [vmem:[#allocation3 + $0x38] sm:$0xff] %vm1007, %v1320
      %1353 = vst.msk [vmem:[#allocation3 + $0x40] sm:$0xff] %vm1007, %v1321
      %1354 = vst.msk [vmem:[#allocation3 + $0x48] sm:$0xff] %vm1007, %v1322
      %1355 = vst.msk [vmem:[#allocation3 + $0x50] sm:$0xff] %vm1007, %v1323
      %1356 = vst.msk [vmem:[#allocation3 + $0x58] sm:$0xff] %vm1007, %v1324
      %1357 = vst.msk [vmem:[#allocation3 + $0x60] sm:$0xff] %vm1007, %v1325
      %1358 = vst.msk [vmem:[#allocation3 + $0x68] sm:$0xff] %vm1007, %v1326
      %1359 = vst.msk [vmem:[#allocation3 + $0x70] sm:$0xff] %vm1007, %v1327
      %1360 = vst.msk [vmem:[#allocation3 + $0x78] sm:$0xff] %vm1007, %v1328
      %1361 = vst.msk [vmem:[#allocation3 + $0x80] sm:$0xff] %vm1007, %v1329
      %1362 = vst.msk [vmem:[#allocation3 + $0x88] sm:$0xff] %vm1007, %v1330
      %1363 = vst.msk [vmem:[#allocation3 + $0x90] sm:$0xff] %vm1007, %v1331
      %1364 = vst.msk [vmem:[#allocation3 + $0x98] sm:$0xff] %vm1007, %v1332
      %1365 = vst.msk [vmem:[#allocation3 + $0xa0] sm:$0xff] %vm1007, %v1333
      %1366 = vst.msk [vmem:[#allocation3 + $0xa8] sm:$0xff] %vm1007, %v1334
      %1367 = vst.msk [vmem:[#allocation3 + $0xb0] sm:$0xff] %vm1007, %v1335
      %1368 = vst.msk [vmem:[#allocation3 + $0xb8] sm:$0xff] %vm1007, %v1336
      %1369 = vst.msk [vmem:[#allocation3 + $0xc0] sm:$0xff] %vm1007, %v1337
      %1370 = vst.msk [vmem:[#allocation3 + $0xc8] sm:$0xff] %vm1007, %v1338
      %1371 = vst.msk [vmem:[#allocation3 + $0xd0] sm:$0xff] %vm1007, %v1339
      %1372 = vst.msk [vmem:[#allocation3 + $0xd8] sm:$0xff] %vm1007, %v1340
      %1373 = vst.msk [vmem:[#allocation3 + $0xe0] sm:$0xff] %vm1007, %v1341
      %1374 = vst.msk [vmem:[#allocation3 + $0xe8] sm:$0xff] %vm1007, %v1342
      %1375 = vst.msk [vmem:[#allocation3 + $0xf0] sm:$0xff] %vm1007, %v1343
      %1376 = vst.msk [vmem:[#allocation3 + $0xf8] sm:$0xff] %vm1007, %v1344
      %s1377 = scalar_lea.vmem [#allocation2], 16
      %v1378 = vld [vmem:[%s1377] sm:$0xff]
      %v1379 = vld [vmem:[%s1377 + $0x8] sm:$0xff]
      %v1380 = vld [vmem:[%s1377 + $0x10] sm:$0xff]
      %v1381 = vld [vmem:[%s1377 + $0x18] sm:$0xff]
      %v1382 = vld [vmem:[%s1377 + $0x20] sm:$0xff]
      %v1383 = vld [vmem:[%s1377 + $0x28] sm:$0xff]
      %v1384 = vld [vmem:[%s1377 + $0x30] sm:$0xff]
      %v1385 = vld [vmem:[%s1377 + $0x38] sm:$0xff]
      %v1386 = vld [vmem:[%s1377 + $0x40] sm:$0xff]
      %v1387 = vld [vmem:[%s1377 + $0x48] sm:$0xff]
      %v1388 = vld [vmem:[%s1377 + $0x50] sm:$0xff]
      %v1389 = vld [vmem:[%s1377 + $0x58] sm:$0xff]
      %v1390 = vld [vmem:[%s1377 + $0x60] sm:$0xff]
      %v1391 = vld [vmem:[%s1377 + $0x68] sm:$0xff]
      %v1392 = vld [vmem:[%s1377 + $0x70] sm:$0xff]
      %v1393 = vld [vmem:[%s1377 + $0x78] sm:$0xff]
      %s1394 = scalar_lea.vmem %s1, 24
      %v1395 = vld [vmem:[%s1394] sm:$0xf]
      %v1396 = vld [vmem:[%s1394 + $0x4] sm:$0xf]
      %v1397 = vld [vmem:[%s1394 + $0x8] sm:$0xf]
      %v1401 = vunpack.c.l.b16 %v1395
      %v1402 = vunpack.c.l.b16 %v1396
      %v1403 = vunpack.c.l.b16 %v1397
      %v1404 = vpack.c.b16 %v1402, %v1401
      %v1405 = vpack.c.b16 %v1403, %v1403
      %v1408 = vsel %vm204, %v1378, 0
      %v1411 = vsel %vm204, %v1379, 0
      %v1414 = vsel %vm204, %v1380, 0
      %v1417 = vsel %vm204, %v1381, 0
      %v1420 = vsel %vm204, %v1382, 0
      %v1423 = vsel %vm204, %v1383, 0
      %v1426 = vsel %vm204, %v1384, 0
      %v1429 = vsel %vm204, %v1385, 0
      %v1432 = vsel %vm204, %v1386, 0
      %v1435 = vsel %vm204, %v1387, 0
      %v1438 = vsel %vm204, %v1388, 0
      %v1441 = vsel %vm204, %v1389, 0
      %v1444 = vsel %vm204, %v1390, 0
      %v1447 = vsel %vm204, %v1391, 0
      %v1450 = vsel %vm204, %v1392, 0
      %v1453 = vsel %vm204, %v1393, 0
      %v1456 = vsel %vm842, %v1405, 0
      %1458 = vmatprep.subr.bf16.mxu0 0
      %1459 = vmatpush1.bf16.msra.mxu0 %v1404
      %1460 = vmatprep.subr.bf16.mxu0 0
      %1461 = vmatpush1.bf16.msra.mxu0 %v1456
      %1462 = vmatprep.subr.bf16.mxu0 0
      %1463 = vmatpush1.bf16.msra.mxu0 0
      %1464 = vmatprep.subr.bf16.mxu0 0
      %1465 = vmatpush1.bf16.msra.mxu0 0
      %1466 = vmatprep.subr.bf16.mxu0 0
      %1467 = vmatpush1.bf16.msra.mxu0 0
      %1468 = vmatprep.subr.bf16.mxu0 0
      %1469 = vmatpush1.bf16.msra.mxu0 0
      %1470 = vmatprep.subr.bf16.mxu0 0
      %1471 = vmatpush1.bf16.msra.mxu0 0
      %1472 = vmatprep.subr.bf16.mxu0 0
      %1473 = vmatpush1.bf16.msra.mxu0 0
      %1474 = vmatprep.subr.bf16.mxu0 0
      %1475 = vmatpush1.bf16.msra.mxu0 0
      %1476 = vmatprep.subr.bf16.mxu0 0
      %1477 = vmatpush1.bf16.msra.mxu0 0
      %1478 = vmatprep.subr.bf16.mxu0 0
      %1479 = vmatpush1.bf16.msra.mxu0 0
      %1480 = vmatprep.subr.bf16.mxu0 0
      %1481 = vmatpush1.bf16.msra.mxu0 0
      %1482 = vmatprep.subr.bf16.mxu0 0
      %1483 = vmatpush1.bf16.msra.mxu0 0
      %1484 = vmatprep.subr.bf16.mxu0 0
      %1485 = vmatpush1.bf16.msra.mxu0 0
      %1486 = vmatprep.subr.bf16.mxu0 0
      %1487 = vmatpush1.bf16.msra.mxu0 0
      %1488 = vmatprep.subr.bf16.mxu0 0
      %1489 = vmatpush1.bf16.msra.mxu0 0
      %1490 = vmatprep.mubr.bf16.mxu0 0
      %1491 = vmatmul.mubr.bf16.gmra.mrb[0].mxu0 %v1408
      %v1492 = vpop.f32.mrb[0].mxu0
      %v1493 = vadd.f32 0.0, %v1492
      %v1494 = vpop.f32.mrb[0].mxu0
      %v1495 = vpop.f32.mrb[0].mxu0
      %v1496 = vadd.f32 0.0, %v1495
      %v1497 = vpop.f32.mrb[0].mxu0
      %1498 = vmatprep.mubr.bf16.mxu0 0
      %1499 = vmatmul.mubr.bf16.gmra.mrb[0].mxu0 %v1411
      %v1500 = vpop.f32.mrb[0].mxu0
      %v1501 = vadd.f32 0.0, %v1500
      %v1502 = vpop.f32.mrb[0].mxu0
      %v1503 = vpop.f32.mrb[0].mxu0
      %v1504 = vadd.f32 0.0, %v1503
      %v1505 = vpop.f32.mrb[0].mxu0
      %1506 = vmatprep.mubr.bf16.mxu0 0
      %1507 = vmatmul.mubr.bf16.gmra.mrb[0].mxu0 %v1414
      %v1508 = vpop.f32.mrb[0].mxu0
      %v1509 = vadd.f32 0.0, %v1508
      %v1510 = vpop.f32.mrb[0].mxu0
      %v1511 = vpop.f32.mrb[0].mxu0
      %v1512 = vadd.f32 0.0, %v1511
      %v1513 = vpop.f32.mrb[0].mxu0
      %1514 = vmatprep.mubr.bf16.mxu0 0
      %1515 = vmatmul.mubr.bf16.gmra.mrb[0].mxu0 %v1417
      %v1516 = vpop.f32.mrb[0].mxu0
      %v1517 = vadd.f32 0.0, %v1516
      %v1518 = vpop.f32.mrb[0].mxu0
      %v1519 = vpop.f32.mrb[0].mxu0
      %v1520 = vadd.f32 0.0, %v1519
      %v1521 = vpop.f32.mrb[0].mxu0
      %1522 = vmatprep.mubr.bf16.mxu0 0
      %1523 = vmatmul.mubr.bf16.gmra.mrb[0].mxu0 %v1420
      %v1524 = vpop.f32.mrb[0].mxu0
      %v1525 = vadd.f32 0.0, %v1524
      %v1526 = vpop.f32.mrb[0].mxu0
      %v1527 = vpop.f32.mrb[0].mxu0
      %v1528 = vadd.f32 0.0, %v1527
      %v1529 = vpop.f32.mrb[0].mxu0
      %1530 = vmatprep.mubr.bf16.mxu0 0
      %1531 = vmatmul.mubr.bf16.gmra.mrb[0].mxu0 %v1423
      %v1532 = vpop.f32.mrb[0].mxu0
      %v1533 = vadd.f32 0.0, %v1532
      %v1534 = vpop.f32.mrb[0].mxu0
      %v1535 = vpop.f32.mrb[0].mxu0
      %v1536 = vadd.f32 0.0, %v1535
      %v1537 = vpop.f32.mrb[0].mxu0
      %1538 = vmatprep.mubr.bf16.mxu0 0
      %1539 = vmatmul.mubr.bf16.gmra.mrb[0].mxu0 %v1426
      %v1540 = vpop.f32.mrb[0].mxu0
      %v1541 = vadd.f32 0.0, %v1540
      %v1542 = vpop.f32.mrb[0].mxu0
      %v1543 = vpop.f32.mrb[0].mxu0
      %v1544 = vadd.f32 0.0, %v1543
      %v1545 = vpop.f32.mrb[0].mxu0
      %1546 = vmatprep.mubr.bf16.mxu0 0
      %1547 = vmatmul.mubr.bf16.gmra.mrb[0].mxu0 %v1429
      %v1548 = vpop.f32.mrb[0].mxu0
      %v1549 = vadd.f32 0.0, %v1548
      %v1550 = vpop.f32.mrb[0].mxu0
      %v1551 = vpop.f32.mrb[0].mxu0
      %v1552 = vadd.f32 0.0, %v1551
      %v1553 = vpop.f32.mrb[0].mxu0
      %1554 = vmatprep.mubr.bf16.mxu0 0
      %1555 = vmatmul.mubr.bf16.gmra.mrb[0].mxu0 %v1432
      %v1556 = vpop.f32.mrb[0].mxu0
      %v1557 = vadd.f32 0.0, %v1556
      %v1558 = vpop.f32.mrb[0].mxu0
      %v1559 = vpop.f32.mrb[0].mxu0
      %v1560 = vadd.f32 0.0, %v1559
      %v1561 = vpop.f32.mrb[0].mxu0
      %1562 = vmatprep.mubr.bf16.mxu0 0
      %1563 = vmatmul.mubr.bf16.gmra.mrb[0].mxu0 %v1435
      %v1564 = vpop.f32.mrb[0].mxu0
      %v1565 = vadd.f32 0.0, %v1564
      %v1566 = vpop.f32.mrb[0].mxu0
      %v1567 = vpop.f32.mrb[0].mxu0
      %v1568 = vadd.f32 0.0, %v1567
      %v1569 = vpop.f32.mrb[0].mxu0
      %1570 = vmatprep.mubr.bf16.mxu0 0
      %1571 = vmatmul.mubr.bf16.gmra.mrb[0].mxu0 %v1438
      %v1572 = vpop.f32.mrb[0].mxu0
      %v1573 = vadd.f32 0.0, %v1572
      %v1574 = vpop.f32.mrb[0].mxu0
      %v1575 = vpop.f32.mrb[0].mxu0
      %v1576 = vadd.f32 0.0, %v1575
      %v1577 = vpop.f32.mrb[0].mxu0
      %1578 = vmatprep.mubr.bf16.mxu0 0
      %1579 = vmatmul.mubr.bf16.gmra.mrb[0].mxu0 %v1441
      %v1580 = vpop.f32.mrb[0].mxu0
      %v1581 = vadd.f32 0.0, %v1580
      %v1582 = vpop.f32.mrb[0].mxu0
      %v1583 = vpop.f32.mrb[0].mxu0
      %v1584 = vadd.f32 0.0, %v1583
      %v1585 = vpop.f32.mrb[0].mxu0
      %1586 = vmatprep.mubr.bf16.mxu0 0
      %1587 = vmatmul.mubr.bf16.gmra.mrb[0].mxu0 %v1444
      %v1588 = vpop.f32.mrb[0].mxu0
      %v1589 = vadd.f32 0.0, %v1588
      %v1590 = vpop.f32.mrb[0].mxu0
      %v1591 = vpop.f32.mrb[0].mxu0
      %v1592 = vadd.f32 0.0, %v1591
      %v1593 = vpop.f32.mrb[0].mxu0
      %1594 = vmatprep.mubr.bf16.mxu0 0
      %1595 = vmatmul.mubr.bf16.gmra.mrb[0].mxu0 %v1447
      %v1596 = vpop.f32.mrb[0].mxu0
      %v1597 = vadd.f32 0.0, %v1596
      %v1598 = vpop.f32.mrb[0].mxu0
      %v1599 = vpop.f32.mrb[0].mxu0
      %v1600 = vadd.f32 0.0, %v1599
      %v1601 = vpop.f32.mrb[0].mxu0
      %1602 = vmatprep.mubr.bf16.mxu0 0
      %1603 = vmatmul.mubr.bf16.gmra.mrb[0].mxu0 %v1450
      %v1604 = vpop.f32.mrb[0].mxu0
      %v1605 = vadd.f32 0.0, %v1604
      %v1606 = vpop.f32.mrb[0].mxu0
      %v1607 = vpop.f32.mrb[0].mxu0
      %v1608 = vadd.f32 0.0, %v1607
      %v1609 = vpop.f32.mrb[0].mxu0
      %1610 = vmatprep.mubr.bf16.mxu0 0
      %1611 = vmatmul.mubr.bf16.gmra.mrb[0].mxu0 %v1453
      %v1612 = vpop.f32.mrb[0].mxu0
      %v1613 = vadd.f32 0.0, %v1612
      %v1614 = vpop.f32.mrb[0].mxu0
      %v1615 = vpop.f32.mrb[0].mxu0
      %v1616 = vadd.f32 0.0, %v1615
      %v1617 = vpop.f32.mrb[0].mxu0
      %1618 = vdwg.mxu0
      %v1619 = vld [vmem:[#allocation3] sm:$0xff]
      %v1620 = vld [vmem:[#allocation3 + $0x8] sm:$0xff]
      %v1621 = vld [vmem:[#allocation3 + $0x10] sm:$0xff]
      %v1622 = vld [vmem:[#allocation3 + $0x18] sm:$0xff]
      %v1623 = vld [vmem:[#allocation3 + $0x20] sm:$0xff]
      %v1624 = vld [vmem:[#allocation3 + $0x28] sm:$0xff]
      %v1625 = vld [vmem:[#allocation3 + $0x30] sm:$0xff]
      %v1626 = vld [vmem:[#allocation3 + $0x38] sm:$0xff]
      %v1627 = vld [vmem:[#allocation3 + $0x40] sm:$0xff]
      %v1628 = vld [vmem:[#allocation3 + $0x48] sm:$0xff]
      %v1629 = vld [vmem:[#allocation3 + $0x50] sm:$0xff]
      %v1630 = vld [vmem:[#allocation3 + $0x58] sm:$0xff]
      %v1631 = vld [vmem:[#allocation3 + $0x60] sm:$0xff]
      %v1632 = vld [vmem:[#allocation3 + $0x68] sm:$0xff]
      %v1633 = vld [vmem:[#allocation3 + $0x70] sm:$0xff]
      %v1634 = vld [vmem:[#allocation3 + $0x78] sm:$0xff]
      %v1635 = vld [vmem:[#allocation3 + $0x80] sm:$0xff]
      %v1636 = vld [vmem:[#allocation3 + $0x88] sm:$0xff]
      %v1637 = vld [vmem:[#allocation3 + $0x90] sm:$0xff]
      %v1638 = vld [vmem:[#allocation3 + $0x98] sm:$0xff]
      %v1639 = vld [vmem:[#allocation3 + $0xa0] sm:$0xff]
      %v1640 = vld [vmem:[#allocation3 + $0xa8] sm:$0xff]
      %v1641 = vld [vmem:[#allocation3 + $0xb0] sm:$0xff]
      %v1642 = vld [vmem:[#allocation3 + $0xb8] sm:$0xff]
      %v1643 = vld [vmem:[#allocation3 + $0xc0] sm:$0xff]
      %v1644 = vld [vmem:[#allocation3 + $0xc8] sm:$0xff]
      %v1645 = vld [vmem:[#allocation3 + $0xd0] sm:$0xff]
      %v1646 = vld [vmem:[#allocation3 + $0xd8] sm:$0xff]
      %v1647 = vld [vmem:[#allocation3 + $0xe0] sm:$0xff]
      %v1648 = vld [vmem:[#allocation3 + $0xe8] sm:$0xff]
      %v1649 = vld [vmem:[#allocation3 + $0xf0] sm:$0xff]
      %v1650 = vld [vmem:[#allocation3 + $0xf8] sm:$0xff]
      %v1651 = vadd.f32 %v1619, %v1493
      %v1652 = vadd.f32 %v1620, %v1496
      %v1653 = vadd.f32 %v1621, %v1501
      %v1654 = vadd.f32 %v1622, %v1504
      %v1655 = vadd.f32 %v1623, %v1509
      %v1656 = vadd.f32 %v1624, %v1512
      %v1657 = vadd.f32 %v1625, %v1517
      %v1658 = vadd.f32 %v1626, %v1520
      %v1659 = vadd.f32 %v1627, %v1525
      %v1660 = vadd.f32 %v1628, %v1528
      %v1661 = vadd.f32 %v1629, %v1533
      %v1662 = vadd.f32 %v1630, %v1536
      %v1663 = vadd.f32 %v1631, %v1541
      %v1664 = vadd.f32 %v1632, %v1544
      %v1665 = vadd.f32 %v1633, %v1549
      %v1666 = vadd.f32 %v1634, %v1552
      %v1667 = vadd.f32 %v1635, %v1557
      %v1668 = vadd.f32 %v1636, %v1560
      %v1669 = vadd.f32 %v1637, %v1565
      %v1670 = vadd.f32 %v1638, %v1568
      %v1671 = vadd.f32 %v1639, %v1573
      %v1672 = vadd.f32 %v1640, %v1576
      %v1673 = vadd.f32 %v1641, %v1581
      %v1674 = vadd.f32 %v1642, %v1584
      %v1675 = vadd.f32 %v1643, %v1589
      %v1676 = vadd.f32 %v1644, %v1592
      %v1677 = vadd.f32 %v1645, %v1597
      %v1678 = vadd.f32 %v1646, %v1600
      %v1679 = vadd.f32 %v1647, %v1605
      %v1680 = vadd.f32 %v1648, %v1608
      %v1681 = vadd.f32 %v1649, %v1613
      %v1682 = vadd.f32 %v1650, %v1616
      %1683 = vst.msk [vmem:[#allocation3] sm:$0xff] %vm1007, %v1651
      %1684 = vst.msk [vmem:[#allocation3 + $0x8] sm:$0xff] %vm1007, %v1652
      %1685 = vst.msk [vmem:[#allocation3 + $0x10] sm:$0xff] %vm1007, %v1653
      %1686 = vst.msk [vmem:[#allocation3 + $0x18] sm:$0xff] %vm1007, %v1654
      %1687 = vst.msk [vmem:[#allocation3 + $0x20] sm:$0xff] %vm1007, %v1655
      %1688 = vst.msk [vmem:[#allocation3 + $0x28] sm:$0xff] %vm1007, %v1656
      %1689 = vst.msk [vmem:[#allocation3 + $0x30] sm:$0xff] %vm1007, %v1657
      %1690 = vst.msk [vmem:[#allocation3 + $0x38] sm:$0xff] %vm1007, %v1658
      %1691 = vst.msk [vmem:[#allocation3 + $0x40] sm:$0xff] %vm1007, %v1659
      %1692 = vst.msk [vmem:[#allocation3 + $0x48] sm:$0xff] %vm1007, %v1660
      %1693 = vst.msk [vmem:[#allocation3 + $0x50] sm:$0xff] %vm1007, %v1661
      %1694 = vst.msk [vmem:[#allocation3 + $0x58] sm:$0xff] %vm1007, %v1662
      %1695 = vst.msk [vmem:[#allocation3 + $0x60] sm:$0xff] %vm1007, %v1663
      %1696 = vst.msk [vmem:[#allocation3 + $0x68] sm:$0xff] %vm1007, %v1664
      %1697 = vst.msk [vmem:[#allocation3 + $0x70] sm:$0xff] %vm1007, %v1665
      %1698 = vst.msk [vmem:[#allocation3 + $0x78] sm:$0xff] %vm1007, %v1666
      %1699 = vst.msk [vmem:[#allocation3 + $0x80] sm:$0xff] %vm1007, %v1667
      %1700 = vst.msk [vmem:[#allocation3 + $0x88] sm:$0xff] %vm1007, %v1668
      %1701 = vst.msk [vmem:[#allocation3 + $0x90] sm:$0xff] %vm1007, %v1669
      %1702 = vst.msk [vmem:[#allocation3 + $0x98] sm:$0xff] %vm1007, %v1670
      %1703 = vst.msk [vmem:[#allocation3 + $0xa0] sm:$0xff] %vm1007, %v1671
      %1704 = vst.msk [vmem:[#allocation3 + $0xa8] sm:$0xff] %vm1007, %v1672
      %1705 = vst.msk [vmem:[#allocation3 + $0xb0] sm:$0xff] %vm1007, %v1673
      %1706 = vst.msk [vmem:[#allocation3 + $0xb8] sm:$0xff] %vm1007, %v1674
      %1707 = vst.msk [vmem:[#allocation3 + $0xc0] sm:$0xff] %vm1007, %v1675
      %1708 = vst.msk [vmem:[#allocation3 + $0xc8] sm:$0xff] %vm1007, %v1676
      %1709 = vst.msk [vmem:[#allocation3 + $0xd0] sm:$0xff] %vm1007, %v1677
      %1710 = vst.msk [vmem:[#allocation3 + $0xd8] sm:$0xff] %vm1007, %v1678
      %1711 = vst.msk [vmem:[#allocation3 + $0xe0] sm:$0xff] %vm1007, %v1679
      %1712 = vst.msk [vmem:[#allocation3 + $0xe8] sm:$0xff] %vm1007, %v1680
      %1713 = vst.msk [vmem:[#allocation3 + $0xf0] sm:$0xff] %vm1007, %v1681
      %1714 = vst.msk [vmem:[#allocation3 + $0xf8] sm:$0xff] %vm1007, %v1682
      %v1715 = vld [vmem:[#allocation3] sm:$0xff]
      %v1716 = vld [vmem:[#allocation3 + $0x8] sm:$0xff]
      %v1717 = vld [vmem:[#allocation3 + $0x10] sm:$0xff]
      %v1718 = vld [vmem:[#allocation3 + $0x18] sm:$0xff]
      %v1719 = vld [vmem:[#allocation3 + $0x20] sm:$0xff]
      %v1720 = vld [vmem:[#allocation3 + $0x28] sm:$0xff]
      %v1721 = vld [vmem:[#allocation3 + $0x30] sm:$0xff]
      %v1722 = vld [vmem:[#allocation3 + $0x38] sm:$0xff]
      %v1723 = vld [vmem:[#allocation3 + $0x40] sm:$0xff]
      %v1724 = vld [vmem:[#allocation3 + $0x48] sm:$0xff]
      %v1725 = vld [vmem:[#allocation3 + $0x50] sm:$0xff]
      %v1726 = vld [vmem:[#allocation3 + $0x58] sm:$0xff]
      %v1727 = vld [vmem:[#allocation3 + $0x60] sm:$0xff]
      %v1728 = vld [vmem:[#allocation3 + $0x68] sm:$0xff]
      %v1729 = vld [vmem:[#allocation3 + $0x70] sm:$0xff]
      %v1730 = vld [vmem:[#allocation3 + $0x78] sm:$0xff]
      %v1731 = vld [vmem:[#allocation3 + $0x80] sm:$0xff]
      %v1732 = vld [vmem:[#allocation3 + $0x88] sm:$0xff]
      %v1733 = vld [vmem:[#allocation3 + $0x90] sm:$0xff]
      %v1734 = vld [vmem:[#allocation3 + $0x98] sm:$0xff]
      %v1735 = vld [vmem:[#allocation3 + $0xa0] sm:$0xff]
      %v1736 = vld [vmem:[#allocation3 + $0xa8] sm:$0xff]
      %v1737 = vld [vmem:[#allocation3 + $0xb0] sm:$0xff]
      %v1738 = vld [vmem:[#allocation3 + $0xb8] sm:$0xff]
      %v1739 = vld [vmem:[#allocation3 + $0xc0] sm:$0xff]
      %v1740 = vld [vmem:[#allocation3 + $0xc8] sm:$0xff]
      %v1741 = vld [vmem:[#allocation3 + $0xd0] sm:$0xff]
      %v1742 = vld [vmem:[#allocation3 + $0xd8] sm:$0xff]
      %v1743 = vld [vmem:[#allocation3 + $0xe0] sm:$0xff]
      %v1744 = vld [vmem:[#allocation3 + $0xe8] sm:$0xff]
      %v1745 = vld [vmem:[#allocation3 + $0xf0] sm:$0xff]
      %v1746 = vld [vmem:[#allocation3 + $0xf8] sm:$0xff]
      %v1747 = vld [vmem:[%s2] sm:$0x1]
      %v1749 = vlaneseq
      %v1750 = vshrl.u32 %v1749, 7
      %v1751 = vsub.s32 0, %v1750
      %v1752 = vrot.slane %v1747, %v1751
      %v1754 = vadd.f32 %v1715, %v1752
      %v1755 = vadd.f32 %v1716, %v1752
      %v1756 = vadd.f32 %v1717, %v1752
      %v1757 = vadd.f32 %v1718, %v1752
      %v1758 = vadd.f32 %v1719, %v1752
      %v1759 = vadd.f32 %v1720, %v1752
      %v1760 = vadd.f32 %v1721, %v1752
      %v1761 = vadd.f32 %v1722, %v1752
      %v1762 = vadd.f32 %v1723, %v1752
      %v1763 = vadd.f32 %v1724, %v1752
      %v1764 = vadd.f32 %v1725, %v1752
      %v1765 = vadd.f32 %v1726, %v1752
      %v1766 = vadd.f32 %v1727, %v1752
      %v1767 = vadd.f32 %v1728, %v1752
      %v1768 = vadd.f32 %v1729, %v1752
      %v1769 = vadd.f32 %v1730, %v1752
      %v1770 = vadd.f32 %v1731, %v1752
      %v1771 = vadd.f32 %v1732, %v1752
      %v1772 = vadd.f32 %v1733, %v1752
      %v1773 = vadd.f32 %v1734, %v1752
      %v1774 = vadd.f32 %v1735, %v1752
      %v1775 = vadd.f32 %v1736, %v1752
      %v1776 = vadd.f32 %v1737, %v1752
      %v1777 = vadd.f32 %v1738, %v1752
      %v1778 = vadd.f32 %v1739, %v1752
      %v1779 = vadd.f32 %v1740, %v1752
      %v1780 = vadd.f32 %v1741, %v1752
      %v1781 = vadd.f32 %v1742, %v1752
      %v1782 = vadd.f32 %v1743, %v1752
      %v1783 = vadd.f32 %v1744, %v1752
      %v1784 = vadd.f32 %v1745, %v1752
      %v1785 = vadd.f32 %v1746, %v1752
      %v1786 = vmax.f32 %v1754, 0.0
      %v1787 = vmax.f32 %v1755, 0.0
      %v1788 = vmax.f32 %v1756, 0.0
      %v1789 = vmax.f32 %v1757, 0.0
      %v1790 = vmax.f32 %v1758, 0.0
      %v1791 = vmax.f32 %v1759, 0.0
      %v1792 = vmax.f32 %v1760, 0.0
      %v1793 = vmax.f32 %v1761, 0.0
      %v1794 = vmax.f32 %v1762, 0.0
      %v1795 = vmax.f32 %v1763, 0.0
      %v1796 = vmax.f32 %v1764, 0.0
      %v1797 = vmax.f32 %v1765, 0.0
      %v1798 = vmax.f32 %v1766, 0.0
      %v1799 = vmax.f32 %v1767, 0.0
      %v1800 = vmax.f32 %v1768, 0.0
      %v1801 = vmax.f32 %v1769, 0.0
      %v1802 = vmax.f32 %v1770, 0.0
      %v1803 = vmax.f32 %v1771, 0.0
      %v1804 = vmax.f32 %v1772, 0.0
      %v1805 = vmax.f32 %v1773, 0.0
      %v1806 = vmax.f32 %v1774, 0.0
      %v1807 = vmax.f32 %v1775, 0.0
      %v1808 = vmax.f32 %v1776, 0.0
      %v1809 = vmax.f32 %v1777, 0.0
      %v1810 = vmax.f32 %v1778, 0.0
      %v1811 = vmax.f32 %v1779, 0.0
      %v1812 = vmax.f32 %v1780, 0.0
      %v1813 = vmax.f32 %v1781, 0.0
      %v1814 = vmax.f32 %v1782, 0.0
      %v1815 = vmax.f32 %v1783, 0.0
      %v1816 = vmax.f32 %v1784, 0.0
      %v1817 = vmax.f32 %v1785, 0.0
      %v1818 = vpack.c.bf16 %v1787, %v1786
      %v1819 = vpack.c.bf16 %v1789, %v1788
      %v1820 = vpack.c.bf16 %v1791, %v1790
      %v1821 = vpack.c.bf16 %v1793, %v1792
      %v1822 = vpack.c.bf16 %v1795, %v1794
      %v1823 = vpack.c.bf16 %v1797, %v1796
      %v1824 = vpack.c.bf16 %v1799, %v1798
      %v1825 = vpack.c.bf16 %v1801, %v1800
      %v1826 = vpack.c.bf16 %v1803, %v1802
      %v1827 = vpack.c.bf16 %v1805, %v1804
      %v1828 = vpack.c.bf16 %v1807, %v1806
      %v1829 = vpack.c.bf16 %v1809, %v1808
      %v1830 = vpack.c.bf16 %v1811, %v1810
      %v1831 = vpack.c.bf16 %v1813, %v1812
      %v1832 = vpack.c.bf16 %v1815, %v1814
      %v1833 = vpack.c.bf16 %v1817, %v1816
      %v1850 = vunpack.c.l.b16 %v1818
      %v1851 = vunpack.c.h.b16 %v1818
      %v1852 = vunpack.c.l.b16 %v1819
      %v1853 = vunpack.c.h.b16 %v1819
      %v1854 = vunpack.c.l.b16 %v1820
      %v1855 = vunpack.c.h.b16 %v1820
      %v1856 = vunpack.c.l.b16 %v1821
      %v1857 = vunpack.c.h.b16 %v1821
      %v1858 = vunpack.c.l.b16 %v1822
      %v1859 = vunpack.c.h.b16 %v1822
      %v1860 = vunpack.c.l.b16 %v1823
      %v1861 = vunpack.c.h.b16 %v1823
      %v1862 = vunpack.c.l.b16 %v1824
      %v1863 = vunpack.c.h.b16 %v1824
      %v1864 = vunpack.c.l.b16 %v1825
      %v1865 = vunpack.c.h.b16 %v1825
      %v1866 = vunpack.c.l.b16 %v1826
      %v1867 = vunpack.c.h.b16 %v1826
      %v1868 = vunpack.c.l.b16 %v1827
      %v1869 = vunpack.c.h.b16 %v1827
      %v1870 = vunpack.c.l.b16 %v1828
      %v1871 = vunpack.c.h.b16 %v1828
      %v1872 = vunpack.c.l.b16 %v1829
      %v1873 = vunpack.c.h.b16 %v1829
      %v1874 = vunpack.c.l.b16 %v1830
      %v1875 = vunpack.c.h.b16 %v1830
      %v1876 = vunpack.c.l.b16 %v1831
      %v1877 = vunpack.c.h.b16 %v1831
      %v1878 = vunpack.c.l.b16 %v1832
      %v1879 = vunpack.c.h.b16 %v1832
      %v1880 = vunpack.c.l.b16 %v1833
      %v1881 = vunpack.c.h.b16 %v1833
      %v1882 = vpack.c.b16 %v1850, %v1850
      %v1883 = vpack.c.b16 %v1851, %v1851
      %v1884 = vpack.c.b16 %v1852, %v1852
      %v1885 = vpack.c.b16 %v1853, %v1853
      %v1886 = vpack.c.b16 %v1854, %v1854
      %v1887 = vpack.c.b16 %v1855, %v1855
      %v1888 = vpack.c.b16 %v1856, %v1856
      %v1889 = vpack.c.b16 %v1857, %v1857
      %v1890 = vpack.c.b16 %v1858, %v1858
      %v1891 = vpack.c.b16 %v1859, %v1859
      %v1892 = vpack.c.b16 %v1860, %v1860
      %v1893 = vpack.c.b16 %v1861, %v1861
      %v1894 = vpack.c.b16 %v1862, %v1862
      %v1895 = vpack.c.b16 %v1863, %v1863
      %v1896 = vpack.c.b16 %v1864, %v1864
      %v1897 = vpack.c.b16 %v1865, %v1865
      %v1898 = vpack.c.b16 %v1866, %v1866
      %v1899 = vpack.c.b16 %v1867, %v1867
      %v1900 = vpack.c.b16 %v1868, %v1868
      %v1901 = vpack.c.b16 %v1869, %v1869
      %v1902 = vpack.c.b16 %v1870, %v1870
      %v1903 = vpack.c.b16 %v1871, %v1871
      %v1904 = vpack.c.b16 %v1872, %v1872
      %v1905 = vpack.c.b16 %v1873, %v1873
      %v1906 = vpack.c.b16 %v1874, %v1874
      %v1907 = vpack.c.b16 %v1875, %v1875
      %v1908 = vpack.c.b16 %v1876, %v1876
      %v1909 = vpack.c.b16 %v1877, %v1877
      %v1910 = vpack.c.b16 %v1878, %v1878
      %v1911 = vpack.c.b16 %v1879, %v1879
      %v1912 = vpack.c.b16 %v1880, %v1880
      %v1913 = vpack.c.b16 %v1881, %v1881
      %vm1946 = vcmask 60416
      %1947 = vst.msk [vmem:[%s170] sm:$0xf] %vm1946, %v1882
      %1948 = vst.msk [vmem:[%s170 + $0x4] sm:$0xf] %vm1946, %v1883
      %1949 = vst.msk [vmem:[%s170 + $0x8] sm:$0xf] %vm1946, %v1884
      %1950 = vst.msk [vmem:[%s170 + $0xc] sm:$0xf] %vm1946, %v1885
      %1951 = vst.msk [vmem:[%s170 + $0x10] sm:$0xf] %vm1946, %v1886
      %1952 = vst.msk [vmem:[%s170 + $0x14] sm:$0xf] %vm1946, %v1887
      %1953 = vst.msk [vmem:[%s170 + $0x18] sm:$0xf] %vm1946, %v1888
      %1954 = vst.msk [vmem:[%s170 + $0x1c] sm:$0xf] %vm1946, %v1889
      %1955 = vst.msk [vmem:[%s170 + $0x20] sm:$0xf] %vm1946, %v1890
      %1956 = vst.msk [vmem:[%s170 + $0x24] sm:$0xf] %vm1946, %v1891
      %1957 = vst.msk [vmem:[%s170 + $0x28] sm:$0xf] %vm1946, %v1892
      %1958 = vst.msk [vmem:[%s170 + $0x2c] sm:$0xf] %vm1946, %v1893
      %1959 = vst.msk [vmem:[%s170 + $0x30] sm:$0xf] %vm1946, %v1894
      %1960 = vst.msk [vmem:[%s170 + $0x34] sm:$0xf] %vm1946, %v1895
      %1961 = vst.msk [vmem:[%s170 + $0x38] sm:$0xf] %vm1946, %v1896
      %1962 = vst.msk [vmem:[%s170 + $0x3c] sm:$0xf] %vm1946, %v1897
      %1963 = vst.msk [vmem:[%s170 + $0x40] sm:$0xf] %vm1946, %v1898
      %1964 = vst.msk [vmem:[%s170 + $0x44] sm:$0xf] %vm1946, %v1899
      %1965 = vst.msk [vmem:[%s170 + $0x48] sm:$0xf] %vm1946, %v1900
      %1966 = vst.msk [vmem:[%s170 + $0x4c] sm:$0xf] %vm1946, %v1901
      %1967 = vst.msk [vmem:[%s170 + $0x50] sm:$0xf] %vm1946, %v1902
      %1968 = vst.msk [vmem:[%s170 + $0x54] sm:$0xf] %vm1946, %v1903
      %1969 = vst.msk [vmem:[%s170 + $0x58] sm:$0xf] %vm1946, %v1904
      %1970 = vst.msk [vmem:[%s170 + $0x5c] sm:$0xf] %vm1946, %v1905
      %1971 = vst.msk [vmem:[%s170 + $0x60] sm:$0xf] %vm1946, %v1906
      %1972 = vst.msk [vmem:[%s170 + $0x64] sm:$0xf] %vm1946, %v1907
      %1973 = vst.msk [vmem:[%s170 + $0x68] sm:$0xf] %vm1946, %v1908
      %1974 = vst.msk [vmem:[%s170 + $0x6c] sm:$0xf] %vm1946, %v1909
      %1975 = vst.msk [vmem:[%s170 + $0x70] sm:$0xf] %vm1946, %v1910
      %1976 = vst.msk [vmem:[%s170 + $0x74] sm:$0xf] %vm1946, %v1911
      %1977 = vst.msk [vmem:[%s170 + $0x78] sm:$0xf] %vm1946, %v1912
      %1978 = vst.msk [vmem:[%s170 + $0x7c] sm:$0xf] %vm1946, %v1913
      %p1979 = scmp.lt.s32.totalorder %s14, 1
      %s1980 = scalar_select %p1979, %s14, 1
      %s1981 = smul.addr %s1980, 32
      %s1982 = smul.addr %s1981, 4
      %s1983 = scalar_lea.vmem %s3, %s1982
      // Predicated region
      $region33: #{bottleneck_block.4} parent=31 // pred_check
        %p1984 = pneg %p100
      $region34: #{bottleneck_block.4} parent=31 // pred_check_branch
        %1986 = sbr.rel (%p1984) target = $region36
      $region35: #{bottleneck_block.4} parent=31 // pred_region
        _
      $region36: #{bottleneck_block.4} parent=31 // pred_fallthru
        _
    $region32: #{bottleneck_block.4} parent=5 // pred_fallthru
      _
    %p1987 = scmp.le.s32.totalorder 2, %s9
    // Predicated region
    $region37: #{bottleneck_block.4} parent=5 // pred_check
      %p1988 = pneg %p1987
    $region38: #{bottleneck_block.4} parent=5 // pred_check_branch
      %1990 = sbr.rel (%p1988) target = $region40
    $region39: #{bottleneck_block.4} parent=5 // pred_region
      %s1991 = ssub.s32 %s9, 2
      // Predicated region
      $region41: #{bottleneck_block.4} parent=39 // pred_check
        %p1992 = pneg %p106
      $region42: #{bottleneck_block.4} parent=39 // pred_check_branch
        %1994 = sbr.rel (%p1992) target = $region44
      $region43: #{bottleneck_block.4} parent=39 // pred_region
        %p1995 = scmp.lt.s32.totalorder %s15, 1
        %s1996 = scalar_select %p1995, %s15, 1
        %s1997 = smul.addr %s1996, 32
        %s1998 = smul.addr %s1997, 4
        %s1999 = scalar_lea.vmem %s3, %s1998
      $region44: #{bottleneck_block.4} parent=39 // pred_fallthru
        _
    $region40: #{bottleneck_block.4} parent=5 // pred_fallthru
      _
  $region6: #{bottleneck_block.4} parent=0 // loop_footer
    %s13 = sadd.s32 1, %s9
  $region7: #{bottleneck_block.4} parent=0 // loop_footer_branch
    %8 = sbr.rel target = $region3
  $region8: #{bottleneck_block.4} parent=0 // loop_exit
    _

</llo_original>
